<compile_context>
chip_gen: v5e
topology: v5e:2x2
jax: 0.10.0
libtpu: 0.0.40
codegen_flags: <defaults>
</compile_context>

<pallas_src>
import math

import jax
import jax.numpy as jnp
from jax.experimental import pallas as pl
from jax.experimental.pallas import tpu as pltpu


def _round_up(x: int, m: int) -> int:
    return ((x + m - 1) // m) * m


# ----------------------------------------------------------------------------
# Fused kernel: per (wsi, row-strip) grid step
#   scatter-average (InputLayer mode=4) -> SAME-padded strip in VMEM
#   -> 3x3 conv (9 accumulating MXU dots) + bias + ReLU
#   -> partial global-average-pool accumulated in VMEM f32 scratch
#   -> classifier + logits store on the last strip.
# ----------------------------------------------------------------------------
def _make_fused_kernel(*, h, w, strip_h, cin, cin_pad):
    pw = w + 2                      # SAME-padded width (zero halo columns)
    strip_rows = strip_h + 2        # strip + 2-row conv halo
    ragged = (h % strip_h) != 0     # last strip only partially inside the map
    inv_hw = 1.0 / float(h * w)

    def kernel(occ_ref, spatial_ref, emb_ref, wconv_ref, bconv_ref,
               wcls_ref, bcls_ref, out_ref, pooled_ref):
        b = pl.program_id(0)
        s = pl.program_id(1)
        n_strips = pl.num_programs(1)

        @pl.when(s == 0)
        def _():
            pooled_ref[...] = jnp.zeros_like(pooled_ref)

        count = occ_ref[b, s]                          # SMEM scalar (halo-incl.)
        valid_rows = jnp.minimum(strip_h, h - s * strip_h)

        @pl.when(count > 0)
        def _():
            # ---- scatter-average this WSI's tiles into the padded strip ----
            base = s * (strip_h * pw)                  # first padded flat index
            rel = spatial_ref[0] - base                # (1, T) int32
            row_ids = jax.lax.broadcasted_iota(
                jnp.int32, (strip_rows * pw, rel.shape[1]), 0)
            mask = (row_ids == rel).astype(jnp.bfloat16)           # (M, T)
            scat = jnp.dot(mask, emb_ref[0],
                           preferred_element_type=jnp.float32)     # (M, Cpad)
            counts = scat[:, cin:cin + 1]              # ones column -> dup count
            strip = scat * (1.0 / jnp.maximum(counts, 1.0))        # exact avg
            strip = strip.astype(jnp.bfloat16).reshape(strip_rows, pw, cin_pad)

            # ---- 3x3 SAME conv: 9 accumulating MXU dots (f32 accumulate) ----
            acc = None
            for dy in range(3):
                for dx in range(3):
                    view = strip[dy:dy + strip_h, dx:dx + w, :]
                    view = view.reshape(strip_h * w, cin_pad)
                    d = jnp.dot(view, wconv_ref[dy * 3 + dx],
                                preferred_element_type=jnp.float32)
                    acc = d if acc is None else acc + d
            act = jnp.maximum(acc + bconv_ref[...], 0.0)   # (strip_h*w, Cout)
            if ragged:                                      # mask phantom rows
                flat = jax.lax.broadcasted_iota(jnp.int32, (strip_h * w, 1), 0)
                act = act * (flat < valid_rows * w).astype(jnp.float32)
            pooled_ref[...] += jnp.sum(act, axis=0, keepdims=True)

        @pl.when(count == 0)
        def _():
            # Strip (including its halo rows) holds no tiles: the dense conv
            # output is bias at every valid cell -> closed-form pool term.
            n_cells = (valid_rows * w).astype(jnp.float32)
            pooled_ref[...] += n_cells * jnp.maximum(bconv_ref[...], 0.0)

        @pl.when(s == n_strips - 1)
        def _():
            pooled = pooled_ref[...] * inv_hw               # global avg pool
            logits = jnp.dot(pooled, wcls_ref[...],
                             preferred_element_type=jnp.float32) + bcls_ref[...]
            out_ref[0] = logits

    return kernel


def _fused_forward_call(occupancy, spatial, emb_aug, w_conv, b_conv,
                        w_cls, b_cls, *, h, w, strip_h, n_strips, cin,
                        cin_pad, cout_pad, n_classes, vmem_limit_bytes):
    b_wsi, _, t = spatial.shape
    kernel = _make_fused_kernel(h=h, w=w, strip_h=strip_h,
                                cin=cin, cin_pad=cin_pad)
    out = pl.pallas_call(
        kernel,
        out_shape=jax.ShapeDtypeStruct((b_wsi, 1, n_classes), jnp.float32),
        grid_spec=pltpu.PrefetchScalarGridSpec(
            num_scalar_prefetch=1,              # occupancy -> SMEM
            grid=(b_wsi, n_strips),
            in_specs=[
                pl.BlockSpec((1, 1, t), lambda b, s, occ: (b, 0, 0)),
                pl.BlockSpec((1, t, cin_pad), lambda b, s, occ: (b, 0, 0)),
                pl.BlockSpec((9, cin_pad, cout_pad), lambda b, s, occ: (0, 0, 0)),
                pl.BlockSpec((1, cout_pad), lambda b, s, occ: (0, 0)),
                pl.BlockSpec((cout_pad, n_classes), lambda b, s, occ: (0, 0)),
                pl.BlockSpec((1, n_classes), lambda b, s, occ: (0, 0)),
            ],
            out_specs=pl.BlockSpec((1, 1, n_classes),
                                   lambda b, s, occ: (b, 0, 0)),
            scratch_shapes=[pltpu.VMEM((1, cout_pad), jnp.float32)],
        ),
        compiler_params=pltpu.CompilerParams(
            # strips are a reduction axis (pooled accumulator) -> "arbitrary".
            # TODO(synk): for B_wsi < num TensorCores, emit per-strip partial
            # pools instead so the spatial axis can be megacore-parallel.
            dimension_semantics=("parallel", "arbitrary"),
            vmem_limit_bytes=vmem_limit_bytes),
    )(occupancy, spatial, emb_aug, w_conv, b_conv, w_cls, b_cls)
    return out.reshape(b_wsi, n_classes)


# ----------------------------------------------------------------------------
# SparseConvMIL (forward only) with deterministic synthetic parameters.
# ----------------------------------------------------------------------------
class SparseConvMILPallas:

    def __init__(self, latent_size, sparse_cnn_channels, n_classes,
                 sparse_map_downsample, max_coordinate, key, strip_h=None):
        self.sparse_map_downsample = sparse_map_downsample
        # TODO(synk): the reference sizes the sparse map as max(coords)+1 at
        # runtime (data-dependent shapes => host sync + retrace per batch);
        # here a static bound ceil(max_coordinate / downsample) is used, so
        # the global-average-pool denominator can differ when a batch does
        # not reach the maximum extent.
        self.h = self.w = int(math.ceil(max_coordinate / sparse_map_downsample))
        self.pw = self.w + 2

        if strip_h is None:
            strip_h = min(self.h, 64)       # multiples of 8 dividing h preferred
        self.strip_h = max(1, min(int(strip_h), self.h))
        self.n_strips = -(-self.h // self.strip_h)

        k1, k2, k3, k4 = jax.random.split(key, 4)
        cin, cout, ncls = latent_size, sparse_cnn_channels, n_classes
        self.cin, self.cout, self.n_classes = cin, cout, ncls
        self.cin_pad = _round_up(cin + 1, 128)   # features + count col, lane-dense
        self.cout_pad = _round_up(cout, 128)

        # sparse_cnn: one 3x3 conv (SAME) + bias + ReLU + global average pool.
        # TODO(synk): dense conv applies bias/ReLU at empty sites and pools over
        # H*W; sparseconvnet's submanifold conv only computes at active sites.
        w_conv = (jax.random.normal(k1, (9, cin, cout), jnp.float32)
                  * (1.0 / math.sqrt(9 * cin)))
        b_conv = jax.random.normal(k2, (1, cout), jnp.float32) * 0.01
        # wsi_embedding_classifier: Linear(cout -> n_classes).
        w_cls = (jax.random.normal(k3, (cout, ncls), jnp.float32)
                 * (1.0 / math.sqrt(cout)))
        b_cls = jax.random.normal(k4, (1, ncls), jnp.float32) * 0.01

        # Unpadded f32 copies (used by the pure-JAX reference check only).
        self.w_conv_ref, self.b_conv_ref = w_conv, b_conv
        self.w_cls_ref, self.b_cls_ref = w_cls, b_cls

        # Lane-dense padded kernel parameters (padded lanes are zero, so
        # logits are mathematically unchanged).
        wc = jnp.zeros((9, self.cin_pad, self.cout_pad), jnp.float32)
        wc = wc.at[:, :cin, :cout].set(w_conv)
        self.w_conv = wc.astype(jnp.bfloat16)
        self.b_conv = jnp.pad(b_conv, ((0, 0), (0, self.cout_pad - cout)))
        self.w_cls = jnp.pad(w_cls, ((0, self.cout_pad - cout), (0, 0)))
        self.b_cls = b_cls

        # Per-generation VMEM budget: ~75% of physical, capped at 100 MiB
        # (=> ~96 MiB on v5e/v6e, ~48 MiB on v7x).
        try:
            vmem_cap = int(pltpu.get_tpu_info().vmem_capacity_bytes)
        except Exception:
            vmem_cap = 64 * 1024 * 1024
        self.vmem_limit_bytes = int(min(vmem_cap * 3 // 4, 100 * 1024 * 1024))

        self._forward = jax.jit(self._forward_impl)

    def _forward_impl(self, tile_embeddings, tiles_original_locations):
        emb = jnp.squeeze(tile_embeddings, 0)              # (B*T, C)
        b, t, _ = tiles_original_locations.shape

        # Downsample + truncate, like `.long()` (assumes non-negative coords).
        locs = (tiles_original_locations
                / self.sparse_map_downsample).astype(jnp.int32)   # (B, T, 2)
        rows = locs[:, :, 0] + 1                           # padded row index
        cols = locs[:, :, 1] + 1                           # padded col index
        spatial = (rows * self.pw + cols).reshape(b, 1, t).astype(jnp.int32)

        # Per-(wsi, strip) occupancy, including the 2 conv-halo rows, for the
        # scalar-prefetched empty-strip skip.
        starts = jnp.arange(self.n_strips, dtype=jnp.int32) * self.strip_h
        in_strip = ((rows[:, :, None] >= starts[None, None, :]) &
                    (rows[:, :, None] < starts[None, None, :] + self.strip_h + 2))
        occupancy = jnp.sum(in_strip, axis=1).astype(jnp.int32)   # (B, n_strips)

        # Lane-dense augmented embeddings: [features | ones (count) | zeros].
        emb_aug = jnp.zeros((b * t, self.cin_pad), jnp.float32)
        emb_aug = emb_aug.at[:, :self.cin].set(emb)
        emb_aug = emb_aug.at[:, self.cin].set(1.0)
        emb_aug = emb_aug.reshape(b, t, self.cin_pad).astype(jnp.bfloat16)

        return _fused_forward_call(
            occupancy, spatial, emb_aug,
            self.w_conv, self.b_conv, self.w_cls, self.b_cls,
            h=self.h, w=self.w, strip_h=self.strip_h, n_strips=self.n_strips,
            cin=self.cin, cin_pad=self.cin_pad, cout_pad=self.cout_pad,
            n_classes=self.n_classes,
            vmem_limit_bytes=self.vmem_limit_bytes)

    def forward(self, tile_embeddings, tiles_original_locations):
        return self._forward(tile_embeddings, tiles_original_locations)


# ----------------------------------------------------------------------------
# Pure-JAX reference (same dense-conv / static-extent semantics) for checking.
# ----------------------------------------------------------------------------
def _reference_forward(model, tile_embeddings, tiles_original_locations):
    emb = jnp.squeeze(tile_embeddings, 0)
    b, t, _ = tiles_original_locations.shape
    c = emb.shape[1]
    locs = (tiles_original_locations / model.sparse_map_downsample).astype(jnp.int32)
    x = locs[..., 0].reshape(-1)
    y = locs[..., 1].reshape(-1)
    bidx = jnp.repeat(jnp.arange(b), t)
    dense = jnp.zeros((b, model.h, model.w, c), jnp.float32).at[bidx, x, y].add(emb)
    cnt = jnp.zeros((b, model.h, model.w, 1), jnp.float32).at[bidx, x, y, 0].add(1.0)
    dense = dense / jnp.maximum(cnt, 1.0)
    kernel_hwio = model.w_conv_ref.reshape(3, 3, c, -1)
    conv = jax.lax.conv_general_dilated(
        dense, kernel_hwio, window_strides=(1, 1), padding="SAME",
        dimension_numbers=("NHWC", "HWIO", "NHWC"))
    act = jnp.maximum(conv + model.b_conv_ref.reshape(1, 1, 1, -1), 0.0)
    pooled = jnp.mean(act, axis=(1, 2))
    return pooled @ model.w_cls_ref + model.b_cls_ref


if __name__ == "__main__":
    key = jax.random.PRNGKey(0)
    k_model, k_emb, k_loc = jax.random.split(key, 3)

    B_WSI, N_TILES, LATENT = 2, 8, 32
    SPARSE_CNN_CH, N_CLASSES = 16, 4
    DOWNSAMPLE, MAX_COORD = 4, 64

    model = SparseConvMILPallas(
        latent_size=LATENT,
        sparse_cnn_channels=SPARSE_CNN_CH,
        n_classes=N_CLASSES,
        sparse_map_downsample=DOWNSAMPLE,
        max_coordinate=MAX_COORD,
        key=k_model,
        strip_h=8,        # 16-row map -> 2 strips: exercises halo + accumulate
    )

    # tile_embeddings: (1, B*T, latent)  (forward squeezes the leading dim)
    tile_embeddings = jax.random.normal(
        k_emb, (1, B_WSI * N_TILES, LATENT), dtype=jnp.float32)
    # tiles_original_locations: (B, T, 2), coordinates in [0, MAX_COORD)
    tiles_original_locations = jax.random.randint(
        k_loc, (B_WSI, N_TILES, 2), 0, MAX_COORD).astype(jnp.float32)

    logits = model.forward(tile_embeddings, tiles_original_locations)
    jax.block_until_ready(logits)

    assert logits.shape == (B_WSI, N_CLASSES)
    assert bool(jnp.all(jnp.isfinite(logits)))

    ref_logits = _reference_forward(model, tile_embeddings,
                                    tiles_original_locations)
    assert bool(jnp.allclose(logits, ref_logits, rtol=1e-1, atol=5e-2)), (
        logits, ref_logits)

    print("KERNEL_OK")
</pallas_src>

<mosaic_0001>
module attributes {stable_mosaic.version = 11 : i64} {
  func.func @kernel(%arg0: i32, %arg1: i32, %arg2: memref<2x2xi32, #tpu.memory_space<smem>>, %arg3: memref<1x1x8xi32, #tpu.memory_space<vmem>>, %arg4: memref<1x8x128xbf16, #tpu.memory_space<vmem>>, %arg5: memref<9x128x128xbf16, #tpu.memory_space<vmem>>, %arg6: memref<1x128xf32, #tpu.memory_space<vmem>>, %arg7: memref<128x4xf32, #tpu.memory_space<vmem>>, %arg8: memref<1x4xf32, #tpu.memory_space<vmem>>, %arg9: memref<1x1x4xf32, #tpu.memory_space<vmem>>, %arg10: memref<1x128xf32, #tpu.memory_space<vmem>>) attributes {dimension_semantics = [#tpu.dimension_semantics<parallel>, #tpu.dimension_semantics<arbitrary>], iteration_bounds = array<i64: 2, 2>, scalar_prefetch = 1 : i64, scratch_operands = 1 : i64, tpu.core_type = #tpu.core_type<tc>, window_params = [{transform_indices = @transform_0, window_bounds = array<i64: 1, 1, 8>}, {transform_indices = @transform_1, window_bounds = array<i64: 1, 8, 128>}, {pipeline_mode = #tpu.pipeline_mode<synchronous>, transform_indices = @transform_2, window_bounds = array<i64: 9, 128, 128>}, {pipeline_mode = #tpu.pipeline_mode<synchronous>, transform_indices = @transform_3, window_bounds = array<i64: 1, 128>}, {pipeline_mode = #tpu.pipeline_mode<synchronous>, transform_indices = @transform_4, window_bounds = array<i64: 128, 4>}, {pipeline_mode = #tpu.pipeline_mode<synchronous>, transform_indices = @transform_5, window_bounds = array<i64: 1, 4>}, {transform_indices = @transform_6, window_bounds = array<i64: 1, 1, 4>}]} {
    %c0_i32 = arith.constant 0 : i32
    %0 = arith.cmpi eq, %arg1, %c0_i32 : i32
    %1 = arith.extui %0 : i1 to i32
    %c0_i32_0 = arith.constant 0 : i32
    %2 = arith.cmpi ne, %1, %c0_i32_0 : i32
    scf.if %2 {
      %cst = arith.constant 0.000000e+00 : f32
      %18 = vector.broadcast %cst : f32 to vector<1x128xf32>
      %c0 = arith.constant 0 : index
      %c0_7 = arith.constant 0 : index
      %19 = vector.load %arg10[%c0, %c0_7] : memref<1x128xf32, #tpu.memory_space<vmem>>, vector<1x128xf32>
      tpu.vector_store %arg10[%c0, %c0_7], %18 {strides = array<i32>} : memref<1x128xf32, #tpu.memory_space<vmem>>, vector<1x128xf32>,
    } else {
    }
    %3 = arith.index_cast %arg0 : i32 to index
    %4 = arith.index_cast %arg1 : i32 to index
    %5 = memref.load %arg2[%3, %4] : memref<2x2xi32, #tpu.memory_space<smem>>
    %c8_i32 = arith.constant 8 : i32
    %6 = arith.muli %arg1, %c8_i32 : i32
    %c16_i32 = arith.constant 16 : i32
    %7 = arith.subi %c16_i32, %6 : i32
    %c8_i32_1 = arith.constant 8 : i32
    %8 = arith.minsi %c8_i32_1, %7 : i32
    %c0_i32_2 = arith.constant 0 : i32
    %9 = arith.cmpi sgt, %5, %c0_i32_2 : i32
    %10 = arith.extui %9 : i1 to i32
    %c0_i32_3 = arith.constant 0 : i32
    %11 = arith.cmpi ne, %10, %c0_i32_3 : i32
    scf.if %11 {
      %c144_i32 = arith.constant 144 : i32
      %18 = arith.muli %arg1, %c144_i32 : i32
      %c0 = arith.constant 0 : index
      %c0_7 = arith.constant 0 : index
      %c0_8 = arith.constant 0 : index
      %19 = vector.load %arg3[%c0, %c0_7, %c0_8] : memref<1x1x8xi32, #tpu.memory_space<vmem>>, vector<1x1x8xi32>
      %20 = vector.shape_cast %19 : vector<1x1x8xi32> to vector<1x8xi32>
      %21 = vector.broadcast %18 : i32 to vector<1x8xi32>
      %22 = arith.subi %20, %21 : vector<1x8xi32>
      %23 = tpu.iota {dimensions = array<i32: 0>} : vector<180x8xi32>
      %24 = vector.broadcast %22 : vector<1x8xi32> to vector<180x8xi32>
      %25 = arith.cmpi eq, %23, %24 : vector<180x8xi32>
      %26 = arith.extui %25 : vector<180x8xi1> to vector<180x8xi32>
      %27 = arith.sitofp %26 : vector<180x8xi32> to vector<180x8xf32>
      %28 = arith.truncf %27 : vector<180x8xf32> to vector<180x8xbf16>
      %c0_9 = arith.constant 0 : index
      %c0_10 = arith.constant 0 : index
      %c0_11 = arith.constant 0 : index
      %29 = vector.load %arg4[%c0_9, %c0_10, %c0_11] : memref<1x8x128xbf16, #tpu.memory_space<vmem>>, vector<1x8x128xbf16>
      %30 = vector.shape_cast %29 : vector<1x8x128xbf16> to vector<8x128xbf16>
      %cst = arith.constant dense<0.000000e+00> : vector<180x128xf32>
      %31 = tpu.matmul %28, %30, %cst {dimension_numbers = #tpu.dot_dimension_numbers<[1], [0], [0], [1], [0, 0, 1, 1], [], []>} : vector<180x8xbf16>, vector<8x128xbf16>, vector<180x128xf32> -> vector<180x128xf32>
      %32 = vector.extract_strided_slice %31 {offsets = [0, 32], sizes = [180, 1], strides = [1, 1]} : vector<180x128xf32> to vector<180x1xf32>
      %cst_12 = arith.constant 1.000000e+00 : f32
      %33 = vector.broadcast %cst_12 : f32 to vector<180x1xf32>
      %34 = arith.maximumf %32, %33 : vector<180x1xf32>
      %cst_13 = arith.constant 1.000000e+00 : f32
      %35 = vector.broadcast %cst_13 : f32 to vector<180x1xf32>
      %36 = arith.divf %35, %34 : vector<180x1xf32>
      %37 = vector.broadcast %36 : vector<180x1xf32> to vector<180x128xf32>
      %38 = arith.mulf %31, %37 : vector<180x128xf32>
      %39 = arith.truncf %38 : vector<180x128xf32> to vector<180x128xbf16>
      %40 = vector.shape_cast %39 : vector<180x128xbf16> to vector<10x18x128xbf16>
      %41 = vector.extract_strided_slice %40 {offsets = [0, 0, 0], sizes = [8, 16, 128], strides = [1, 1, 1]} : vector<10x18x128xbf16> to vector<8x16x128xbf16>
      %42 = vector.shape_cast %41 : vector<8x16x128xbf16> to vector<128x128xbf16>
      %c0_14 = arith.constant 0 : index
      %c0_15 = arith.constant 0 : index
      %c0_16 = arith.constant 0 : index
      %43 = vector.load %arg5[%c0_14, %c0_15, %c0_16] : memref<9x128x128xbf16, #tpu.memory_space<vmem>>, vector<1x128x128xbf16>
      %44 = vector.shape_cast %43 : vector<1x128x128xbf16> to vector<128x128xbf16>
      %cst_17 = arith.constant dense<0.000000e+00> : vector<128x128xf32>
      %45 = tpu.matmul %42, %44, %cst_17 {dimension_numbers = #tpu.dot_dimension_numbers<[1], [0], [0], [1], [0, 0, 1, 1], [], []>} : vector<128x128xbf16>, vector<128x128xbf16>, vector<128x128xf32> -> vector<128x128xf32>
      %46 = vector.extract_strided_slice %40 {offsets = [0, 1, 0], sizes = [8, 16, 128], strides = [1, 1, 1]} : vector<10x18x128xbf16> to vector<8x16x128xbf16>
      %47 = vector.shape_cast %46 : vector<8x16x128xbf16> to vector<128x128xbf16>
      %c1 = arith.constant 1 : index
      %c0_18 = arith.constant 0 : index
      %c0_19 = arith.constant 0 : index
      %48 = vector.load %arg5[%c1, %c0_18, %c0_19] : memref<9x128x128xbf16, #tpu.memory_space<vmem>>, vector<1x128x128xbf16>
      %49 = vector.shape_cast %48 : vector<1x128x128xbf16> to vector<128x128xbf16>
      %cst_20 = arith.constant dense<0.000000e+00> : vector<128x128xf32>
      %50 = tpu.matmul %47, %49, %cst_20 {dimension_numbers = #tpu.dot_dimension_numbers<[1], [0], [0], [1], [0, 0, 1, 1], [], []>} : vector<128x128xbf16>, vector<128x128xbf16>, vector<128x128xf32> -> vector<128x128xf32>
      %51 = arith.addf %45, %50 : vector<128x128xf32>
      %52 = vector.extract_strided_slice %40 {offsets = [0, 2, 0], sizes = [8, 16, 128], strides = [1, 1, 1]} : vector<10x18x128xbf16> to vector<8x16x128xbf16>
      %53 = vector.shape_cast %52 : vector<8x16x128xbf16> to vector<128x128xbf16>
      %c2 = arith.constant 2 : index
      %c0_21 = arith.constant 0 : index
      %c0_22 = arith.constant 0 : index
      %54 = vector.load %arg5[%c2, %c0_21, %c0_22] : memref<9x128x128xbf16, #tpu.memory_space<vmem>>, vector<1x128x128xbf16>
      %55 = vector.shape_cast %54 : vector<1x128x128xbf16> to vector<128x128xbf16>
      %cst_23 = arith.constant dense<0.000000e+00> : vector<128x128xf32>
      %56 = tpu.matmul %53, %55, %cst_23 {dimension_numbers = #tpu.dot_dimension_numbers<[1], [0], [0], [1], [0, 0, 1, 1], [], []>} : vector<128x128xbf16>, vector<128x128xbf16>, vector<128x128xf32> -> vector<128x128xf32>
      %57 = arith.addf %51, %56 : vector<128x128xf32>
      %58 = vector.extract_strided_slice %40 {offsets = [1, 0, 0], sizes = [8, 16, 128], strides = [1, 1, 1]} : vector<10x18x128xbf16> to vector<8x16x128xbf16>
      %59 = vector.shape_cast %58 : vector<8x16x128xbf16> to vector<128x128xbf16>
      %c3 = arith.constant 3 : index
      %c0_24 = arith.constant 0 : index
      %c0_25 = arith.constant 0 : index
      %60 = vector.load %arg5[%c3, %c0_24, %c0_25] : memref<9x128x128xbf16, #tpu.memory_space<vmem>>, vector<1x128x128xbf16>
      %61 = vector.shape_cast %60 : vector<1x128x128xbf16> to vector<128x128xbf16>
      %cst_26 = arith.constant dense<0.000000e+00> : vector<128x128xf32>
      %62 = tpu.matmul %59, %61, %cst_26 {dimension_numbers = #tpu.dot_dimension_numbers<[1], [0], [0], [1], [0, 0, 1, 1], [], []>} : vector<128x128xbf16>, vector<128x128xbf16>, vector<128x128xf32> -> vector<128x128xf32>
      %63 = arith.addf %57, %62 : vector<128x128xf32>
      %64 = vector.extract_strided_slice %40 {offsets = [1, 1, 0], sizes = [8, 16, 128], strides = [1, 1, 1]} : vector<10x18x128xbf16> to vector<8x16x128xbf16>
      %65 = vector.shape_cast %64 : vector<8x16x128xbf16> to vector<128x128xbf16>
      %c4 = arith.constant 4 : index
      %c0_27 = arith.constant 0 : index
      %c0_28 = arith.constant 0 : index
      %66 = vector.load %arg5[%c4, %c0_27, %c0_28] : memref<9x128x128xbf16, #tpu.memory_space<vmem>>, vector<1x128x128xbf16>
      %67 = vector.shape_cast %66 : vector<1x128x128xbf16> to vector<128x128xbf16>
      %cst_29 = arith.constant dense<0.000000e+00> : vector<128x128xf32>
      %68 = tpu.matmul %65, %67, %cst_29 {dimension_numbers = #tpu.dot_dimension_numbers<[1], [0], [0], [1], [0, 0, 1, 1], [], []>} : vector<128x128xbf16>, vector<128x128xbf16>, vector<128x128xf32> -> vector<128x128xf32>
      %69 = arith.addf %63, %68 : vector<128x128xf32>
      %70 = vector.extract_strided_slice %40 {offsets = [1, 2, 0], sizes = [8, 16, 128], strides = [1, 1, 1]} : vector<10x18x128xbf16> to vector<8x16x128xbf16>
      %71 = vector.shape_cast %70 : vector<8x16x128xbf16> to vector<128x128xbf16>
      %c5 = arith.constant 5 : index
      %c0_30 = arith.constant 0 : index
      %c0_31 = arith.constant 0 : index
      %72 = vector.load %arg5[%c5, %c0_30, %c0_31] : memref<9x128x128xbf16, #tpu.memory_space<vmem>>, vector<1x128x128xbf16>
      %73 = vector.shape_cast %72 : vector<1x128x128xbf16> to vector<128x128xbf16>
      %cst_32 = arith.constant dense<0.000000e+00> : vector<128x128xf32>
      %74 = tpu.matmul %71, %73, %cst_32 {dimension_numbers = #tpu.dot_dimension_numbers<[1], [0], [0], [1], [0, 0, 1, 1], [], []>} : vector<128x128xbf16>, vector<128x128xbf16>, vector<128x128xf32> -> vector<128x128xf32>
      %75 = arith.addf %69, %74 : vector<128x128xf32>
      %76 = vector.extract_strided_slice %40 {offsets = [2, 0, 0], sizes = [8, 16, 128], strides = [1, 1, 1]} : vector<10x18x128xbf16> to vector<8x16x128xbf16>
      %77 = vector.shape_cast %76 : vector<8x16x128xbf16> to vector<128x128xbf16>
      %c6 = arith.constant 6 : index
      %c0_33 = arith.constant 0 : index
      %c0_34 = arith.constant 0 : index
      %78 = vector.load %arg5[%c6, %c0_33, %c0_34] : memref<9x128x128xbf16, #tpu.memory_space<vmem>>, vector<1x128x128xbf16>
      %79 = vector.shape_cast %78 : vector<1x128x128xbf16> to vector<128x128xbf16>
      %cst_35 = arith.constant dense<0.000000e+00> : vector<128x128xf32>
      %80 = tpu.matmul %77, %79, %cst_35 {dimension_numbers = #tpu.dot_dimension_numbers<[1], [0], [0], [1], [0, 0, 1, 1], [], []>} : vector<128x128xbf16>, vector<128x128xbf16>, vector<128x128xf32> -> vector<128x128xf32>
      %81 = arith.addf %75, %80 : vector<128x128xf32>
      %82 = vector.extract_strided_slice %40 {offsets = [2, 1, 0], sizes = [8, 16, 128], strides = [1, 1, 1]} : vector<10x18x128xbf16> to vector<8x16x128xbf16>
      %83 = vector.shape_cast %82 : vector<8x16x128xbf16> to vector<128x128xbf16>
      %c7 = arith.constant 7 : index
      %c0_36 = arith.constant 0 : index
      %c0_37 = arith.constant 0 : index
      %84 = vector.load %arg5[%c7, %c0_36, %c0_37] : memref<9x128x128xbf16, #tpu.memory_space<vmem>>, vector<1x128x128xbf16>
      %85 = vector.shape_cast %84 : vector<1x128x128xbf16> to vector<128x128xbf16>
      %cst_38 = arith.constant dense<0.000000e+00> : vector<128x128xf32>
      %86 = tpu.matmul %83, %85, %cst_38 {dimension_numbers = #tpu.dot_dimension_numbers<[1], [0], [0], [1], [0, 0, 1, 1], [], []>} : vector<128x128xbf16>, vector<128x128xbf16>, vector<128x128xf32> -> vector<128x128xf32>
      %87 = arith.addf %81, %86 : vector<128x128xf32>
      %88 = vector.extract_strided_slice %40 {offsets = [2, 2, 0], sizes = [8, 16, 128], strides = [1, 1, 1]} : vector<10x18x128xbf16> to vector<8x16x128xbf16>
      %89 = vector.shape_cast %88 : vector<8x16x128xbf16> to vector<128x128xbf16>
      %c8 = arith.constant 8 : index
      %c0_39 = arith.constant 0 : index
      %c0_40 = arith.constant 0 : index
      %90 = vector.load %arg5[%c8, %c0_39, %c0_40] : memref<9x128x128xbf16, #tpu.memory_space<vmem>>, vector<1x128x128xbf16>
      %91 = vector.shape_cast %90 : vector<1x128x128xbf16> to vector<128x128xbf16>
      %cst_41 = arith.constant dense<0.000000e+00> : vector<128x128xf32>
      %92 = tpu.matmul %89, %91, %cst_41 {dimension_numbers = #tpu.dot_dimension_numbers<[1], [0], [0], [1], [0, 0, 1, 1], [], []>} : vector<128x128xbf16>, vector<128x128xbf16>, vector<128x128xf32> -> vector<128x128xf32>
      %93 = arith.addf %87, %92 : vector<128x128xf32>
      %c0_42 = arith.constant 0 : index
      %c0_43 = arith.constant 0 : index
      %94 = vector.load %arg6[%c0_42, %c0_43] : memref<1x128xf32, #tpu.memory_space<vmem>>, vector<1x128xf32>
      %95 = vector.broadcast %94 : vector<1x128xf32> to vector<128x128xf32>
      %96 = arith.addf %93, %95 : vector<128x128xf32>
      %cst_44 = arith.constant 0.000000e+00 : f32
      %97 = vector.broadcast %cst_44 : f32 to vector<128x128xf32>
      %98 = arith.maximumf %96, %97 : vector<128x128xf32>
      %c0_45 = arith.constant 0 : index
      %c0_46 = arith.constant 0 : index
      %99 = vector.load %arg10[%c0_45, %c0_46] : memref<1x128xf32, #tpu.memory_space<vmem>>, vector<1x128xf32>
      %cst_47 = arith.constant dense<0.000000e+00> : vector<128xf32>
      %100 = vector.multi_reduction <add>, %98, %cst_47 [0] : vector<128x128xf32> to vector<128xf32>
      %101 = vector.shape_cast %100 : vector<128xf32> to vector<1x128xf32>
      %102 = arith.addf %99, %101 : vector<1x128xf32>
      %c0_48 = arith.constant 0 : index
      %c0_49 = arith.constant 0 : index
      %103 = vector.load %arg10[%c0_48, %c0_49] : memref<1x128xf32, #tpu.memory_space<vmem>>, vector<1x128xf32>
      tpu.vector_store %arg10[%c0_48, %c0_49], %102 {strides = array<i32>} : memref<1x128xf32, #tpu.memory_space<vmem>>, vector<1x128xf32>,
    } else {
    }
    %c0_i32_4 = arith.constant 0 : i32
    %12 = arith.cmpi eq, %5, %c0_i32_4 : i32
    %13 = arith.extui %12 : i1 to i32
    %c0_i32_5 = arith.constant 0 : i32
    %14 = arith.cmpi ne, %13, %c0_i32_5 : i32
    scf.if %14 {
      %c16_i32_7 = arith.constant 16 : i32
      %18 = arith.muli %8, %c16_i32_7 : i32
      %19 = arith.sitofp %18 : i32 to f32
      %c0 = arith.constant 0 : index
      %c0_8 = arith.constant 0 : index
      %20 = vector.load %arg10[%c0, %c0_8] : memref<1x128xf32, #tpu.memory_space<vmem>>, vector<1x128xf32>
      %c0_9 = arith.constant 0 : index
      %c0_10 = arith.constant 0 : index
      %21 = vector.load %arg6[%c0_9, %c0_10] : memref<1x128xf32, #tpu.memory_space<vmem>>, vector<1x128xf32>
      %cst = arith.constant 0.000000e+00 : f32
      %22 = vector.broadcast %cst : f32 to vector<1x128xf32>
      %23 = arith.maximumf %21, %22 : vector<1x128xf32>
      %24 = vector.broadcast %19 : f32 to vector<1x128xf32>
      %25 = arith.mulf %24, %23 : vector<1x128xf32>
      %26 = arith.addf %20, %25 : vector<1x128xf32>
      %c0_11 = arith.constant 0 : index
      %c0_12 = arith.constant 0 : index
      %27 = vector.load %arg10[%c0_11, %c0_12] : memref<1x128xf32, #tpu.memory_space<vmem>>, vector<1x128xf32>
      tpu.vector_store %arg10[%c0_11, %c0_12], %26 {strides = array<i32>} : memref<1x128xf32, #tpu.memory_space<vmem>>, vector<1x128xf32>,
    } else {
    }
    %c1_i32 = arith.constant 1 : i32
    %15 = arith.cmpi eq, %arg1, %c1_i32 : i32
    %16 = arith.extui %15 : i1 to i32
    %c0_i32_6 = arith.constant 0 : i32
    %17 = arith.cmpi ne, %16, %c0_i32_6 : i32
    scf.if %17 {
      %c0 = arith.constant 0 : index
      %c0_7 = arith.constant 0 : index
      %18 = vector.load %arg10[%c0, %c0_7] : memref<1x128xf32, #tpu.memory_space<vmem>>, vector<1x128xf32>
      %cst = arith.constant 3.906250e-03 : f32
      %19 = vector.broadcast %cst : f32 to vector<1x128xf32>
      %20 = arith.mulf %18, %19 : vector<1x128xf32>
      %c0_8 = arith.constant 0 : index
      %c0_9 = arith.constant 0 : index
      %21 = vector.load %arg7[%c0_8, %c0_9] : memref<128x4xf32, #tpu.memory_space<vmem>>, vector<128x4xf32>
      %cst_10 = arith.constant dense<0.000000e+00> : vector<1x4xf32>
      %22 = tpu.matmul %20, %21, %cst_10 {dimension_numbers = #tpu.dot_dimension_numbers<[1], [0], [0], [1], [0, 0, 1, 1], [], []>} : vector<1x128xf32>, vector<128x4xf32>, vector<1x4xf32> -> vector<1x4xf32>
      %c0_11 = arith.constant 0 : index
      %c0_12 = arith.constant 0 : index
      %23 = vector.load %arg8[%c0_11, %c0_12] : memref<1x4xf32, #tpu.memory_space<vmem>>, vector<1x4xf32>
      %24 = arith.addf %22, %23 : vector<1x4xf32>
      %c0_13 = arith.constant 0 : index
      %c0_14 = arith.constant 0 : index
      %c0_15 = arith.constant 0 : index
      %25 = vector.load %arg9[%c0_13, %c0_14, %c0_15] : memref<1x1x4xf32, #tpu.memory_space<vmem>>, vector<1x1x4xf32>
      %26 = vector.shape_cast %25 : vector<1x1x4xf32> to vector<1x4xf32>
      %27 = vector.shape_cast %24 : vector<1x4xf32> to vector<1x1x4xf32>
      tpu.vector_store %arg9[%c0_13, %c0_14, %c0_15], %27 {strides = array<i32>} : memref<1x1x4xf32, #tpu.memory_space<vmem>>, vector<1x1x4xf32>,
    } else {
    }
    return
  }
  func.func @transform_0(%arg0: i32, %arg1: i32, %arg2: memref<2x2xi32, #tpu.memory_space<smem>>) -> (i32, i32, i32) {
    %c0_i32 = arith.constant 0 : i32
    %c0_i32_0 = arith.constant 0 : i32
    %c0_i32_1 = arith.constant 0 : i32
    return %arg0, %c0_i32, %c0_i32_0 : i32, i32, i32
  }
  func.func @transform_1(%arg0: i32, %arg1: i32, %arg2: memref<2x2xi32, #tpu.memory_space<smem>>) -> (i32, i32, i32) {
    %c0_i32 = arith.constant 0 : i32
    %c0_i32_0 = arith.constant 0 : i32
    %c0_i32_1 = arith.constant 0 : i32
    return %arg0, %c0_i32, %c0_i32_0 : i32, i32, i32
  }
  func.func @transform_2(%arg0: i32, %arg1: i32, %arg2: memref<2x2xi32, #tpu.memory_space<smem>>) -> (i32, i32, i32) {
    %c0_i32 = arith.constant 0 : i32
    %c0_i32_0 = arith.constant 0 : i32
    %c0_i32_1 = arith.constant 0 : i32
    %c0_i32_2 = arith.constant 0 : i32
    return %c0_i32, %c0_i32_0, %c0_i32_1 : i32, i32, i32
  }
  func.func @transform_3(%arg0: i32, %arg1: i32, %arg2: memref<2x2xi32, #tpu.memory_space<smem>>) -> (i32, i32) {
    %c0_i32 = arith.constant 0 : i32
    %c0_i32_0 = arith.constant 0 : i32
    %c0_i32_1 = arith.constant 0 : i32
    return %c0_i32, %c0_i32_0 : i32, i32
  }
  func.func @transform_4(%arg0: i32, %arg1: i32, %arg2: memref<2x2xi32, #tpu.memory_space<smem>>) -> (i32, i32) {
    %c0_i32 = arith.constant 0 : i32
    %c0_i32_0 = arith.constant 0 : i32
    %c0_i32_1 = arith.constant 0 : i32
    return %c0_i32, %c0_i32_0 : i32, i32
  }
  func.func @transform_5(%arg0: i32, %arg1: i32, %arg2: memref<2x2xi32, #tpu.memory_space<smem>>) -> (i32, i32) {
    %c0_i32 = arith.constant 0 : i32
    %c0_i32_0 = arith.constant 0 : i32
    %c0_i32_1 = arith.constant 0 : i32
    return %c0_i32, %c0_i32_0 : i32, i32
  }
  func.func @transform_6(%arg0: i32, %arg1: i32, %arg2: memref<2x2xi32, #tpu.memory_space<smem>>) -> (i32, i32, i32) {
    %c0_i32 = arith.constant 0 : i32
    %c0_i32_0 = arith.constant 0 : i32
    %c0_i32_1 = arith.constant 0 : i32
    return %arg0, %c0_i32, %c0_i32_0 : i32, i32, i32
  }
}

</mosaic_0001>

<llo_original>
// kernel: _forward_impl.1
$region0: #{_forward_impl.1}
  #allocation0 [shape = 'u32[]', space=smem, size = 0x4, offset = 0x4, fixed_abs, tag = 'smem constant byte address 0x4 - core index']
  #allocation1 [shape = 'u32[72,128]{1,0:T(1,128)}', space=vmem, size = 0x9000, scoped, tag = 'internal scratch']
  #allocation2 [shape = 'f32[1,128]{1,0:T(1,128)}', space=vmem, size = 0x200, scoped, tag = 'scratch operand']
  #allocation3 [shape = 's32[1]{0}', space=sflag, size = 0x4, scoped, tag = 'scoped memory for _forward_impl.1']
  #allocation4 [shape = 'u8[1024]{0}', space=smem, size = 0x400, scoped, tag = 'prefetched SMEM operand 0']
  %s0 = inlined_call_operand.vmem [shape: s32[2,2], index: 0, kind: input, shape index: {}]
  %s1 = inlined_call_operand.vmem [shape: s32[2,1,8], index: 1, kind: input, shape index: {}]
  %s2 = inlined_call_operand.vmem [shape: bf16[2,8,128], index: 2, kind: input, shape index: {}]
  %s3 = inlined_call_operand.hbm [shape: bf16[9,128,128], index: 3, kind: input, shape index: {}]
  %s4 = inlined_call_operand.vmem [shape: f32[1,128], index: 4, kind: input, shape index: {}]
  %s5 = inlined_call_operand.hbm [shape: f32[128,4], index: 5, kind: input, shape index: {}]
  %s6 = inlined_call_operand.vmem [shape: f32[1,4], index: 6, kind: input, shape index: {}]
  %s7 = inlined_call_operand.hbm [shape: f32[2,1,4], index: 7, kind: output, shape index: {}]
  %s8 = sld [smem:[#allocation0]]
  $region81: #{_forward_impl.1} parent=0
    _
  %s10 = ssub.s32 1, %s8
  %s11 = scalar_select 0, %s10, %s8
  %s13 = sshll.u32 %s0, 4
  %s14 = int_to_ptr.vmem [resolvable:$true] %s13
  %16 = dma.vmem_to_smem %s14, 32, [#allocation4], [#allocation3]
  %18 = dma.done [#allocation3], 32
  %19 = sfence
  $region1: #{_forward_impl.1} parent=0
    #allocation5 [shape = 'u8[294912]{0}', space=vmem, size = 0x48000, scoped, tag = 'input window, operand 3, single buffered']
    #allocation6 [shape = 's32[2]{0}', space=sflag, size = 0x8, scoped, tag = 'scoped memory for _forward_impl.1']
    #allocation7 [shape = 's32[2]{0}', space=sflag, size = 0x8, scoped, tag = 'scoped memory for _forward_impl.1']
    #allocation8 [shape = 'u8[65536]{0}', space=vmem, size = 0x10000, scoped, tag = 'input window, operand 5, single buffered']
    #allocation9 [shape = 's32[1]{0}', space=sflag, size = 0x4, scoped, tag = 'scoped memory for _forward_impl.1']
    #allocation10 [shape = 'u8[1024]{0}', space=vmem, size = 0x400, scoped, tag = 'output window, operand 0']
    %20 = vsyncpa [#allocation6], 0
    %21 = vsyncpa [#allocation9], 0
    %22 = vsyncpa [#allocation7], 0
    %s23 = scalar_lea.sflag [#allocation7], 1
    %24 = vsyncpa %s23, 0
    loop: start=0, step=1, limit=6
    $region2: #{_forward_impl.1} parent=1 // loop_pre_header
      _
    $region3: #{_forward_impl.1} parent=1 // loop_header
      %s26 = sphi 0, %s30
      %p27 = scmp.ge.s32.totalorder %s26, 6
      %s33 = sphi 0, %s45
      %s34 = sphi 0, %s41
      %s35 = sphi 0, %s33
      %s36 = sphi 0, %s34
      %s37 = sphi 0, %s35
      %s38 = sphi 0, %s36
      %s48 = sphi 0, %s50
      %s51 = sphi 0, %s48
      %s52 = sphi 0, %s51
      %s68 = sphi 0, %s52
      %s74 = sphi 0, %s76
      %s77 = sphi 0, %s74
      %s78 = sphi 0, %s77
      %s94 = sphi 0, %s78
      %s98 = sphi 0, %s98
      %s100 = sphi 0, %s98
      %s101 = sphi 0, %s100
      %s115 = sphi 0, %s101
      %s119 = sphi 0, %s119
      %s121 = sphi 0, %s119
      %s122 = sphi 0, %s121
      %s136 = sphi 0, %s122
      %s140 = sphi 0, %s140
      %s142 = sphi 0, %s140
      %s143 = sphi 0, %s142
      %s157 = sphi 0, %s143
      %s161 = sphi 0, %s161
      %s163 = sphi 0, %s161
      %s164 = sphi 0, %s163
      %s178 = sphi 0, %s164
      %s184 = sphi 0, %s186
      %s187 = sphi 0, %s184
      %s188 = sphi 0, %s187
      %s204 = sphi 0, %s188
    $region4: #{_forward_impl.1} parent=1 // loop_header_branch
      %29 = sbr.rel (%p27) target = $region8
    $region5: #{_forward_impl.1} parent=1 // loop_body
      %s31 = ssub.s32 %s26, 1
      %s32 = ssub.s32 %s26, 2
      %s39 = sadd.s32 1, %s34
      %p40 = scmp.ge.s32.totalorder %s39, 2
      %s41 = scalar_select %p40, 0, %s39
      %s42 = sadd.s32 1, %s33
      %s43 = scalar_select %p40, %s42, %s33
      %p44 = scmp.ge.s32.totalorder %s43, 2
      %s45 = scalar_select %p44, 0, %s43
      %s46 = ssub.s32 %s33, %s45
      %p47 = scmp.eq.s32.totalorder %s46, 0
      %s49 = sadd.s32 %s48, 1
      %s50 = scalar_select %p47, %s48, %s49
      %p53 = pneg %p47
      %p54 = scmp.eq.s32.totalorder %s26, 3
      %p55 = por %p53, %p54
      %p56 = scmp.ne.s32.totalorder %s48, %s51
      %p57 = scmp.eq.s32.totalorder %s26, 0
      %p58 = por %p56, %p57
      %p59 = scmp.ne.s32.totalorder %s48, %s51
      %p60 = scmp.eq.s32.totalorder %s31, 3
      %p61 = por %p59, %p60
      %p62 = scmp.ne.s32.totalorder %s51, %s52
      %p63 = scmp.eq.s32.totalorder %s31, 0
      %p64 = por %p62, %p63
      %p65 = scmp.ne.s32.totalorder %s51, %s52
      %p66 = scmp.eq.s32.totalorder %s32, 3
      %p67 = por %p65, %p66
      %p69 = scmp.ne.s32.totalorder %s52, %s68
      %p70 = scmp.eq.s32.totalorder %s32, 0
      %p71 = por %p69, %p70
      %s72 = ssub.s32 %s33, %s45
      %p73 = scmp.eq.s32.totalorder %s72, 0
      %s75 = sadd.s32 %s74, 1
      %s76 = scalar_select %p73, %s74, %s75
      %p79 = pneg %p73
      %p80 = scmp.eq.s32.totalorder %s26, 3
      %p81 = por %p79, %p80
      %p82 = scmp.ne.s32.totalorder %s74, %s77
      %p83 = scmp.eq.s32.totalorder %s26, 0
      %p84 = por %p82, %p83
      %p85 = scmp.ne.s32.totalorder %s74, %s77
      %p86 = scmp.eq.s32.totalorder %s31, 3
      %p87 = por %p85, %p86
      %p88 = scmp.ne.s32.totalorder %s77, %s78
      %p89 = scmp.eq.s32.totalorder %s31, 0
      %p90 = por %p88, %p89
      %p91 = scmp.ne.s32.totalorder %s77, %s78
      %p92 = scmp.eq.s32.totalorder %s32, 3
      %p93 = por %p91, %p92
      %p95 = scmp.ne.s32.totalorder %s78, %s94
      %p96 = scmp.eq.s32.totalorder %s32, 0
      %p97 = por %p95, %p96
      %s99 = sadd.s32 %s98, 1
      %p102 = scmp.eq.s32.totalorder %s26, 3
      %p103 = scmp.ne.s32.totalorder %s98, %s100
      %p104 = scmp.eq.s32.totalorder %s26, 0
      %p105 = por %p103, %p104
      %p106 = scmp.ne.s32.totalorder %s98, %s100
      %p107 = scmp.eq.s32.totalorder %s31, 3
      %p108 = por %p106, %p107
      %p109 = scmp.ne.s32.totalorder %s100, %s101
      %p110 = scmp.eq.s32.totalorder %s31, 0
      %p111 = por %p109, %p110
      %p112 = scmp.ne.s32.totalorder %s100, %s101
      %p113 = scmp.eq.s32.totalorder %s32, 3
      %p114 = por %p112, %p113
      %p116 = scmp.ne.s32.totalorder %s101, %s115
      %p117 = scmp.eq.s32.totalorder %s32, 0
      %p118 = por %p116, %p117
      %s120 = sadd.s32 %s119, 1
      %p123 = scmp.eq.s32.totalorder %s26, 3
      %p124 = scmp.ne.s32.totalorder %s119, %s121
      %p125 = scmp.eq.s32.totalorder %s26, 0
      %p126 = por %p124, %p125
      %p127 = scmp.ne.s32.totalorder %s119, %s121
      %p128 = scmp.eq.s32.totalorder %s31, 3
      %p129 = por %p127, %p128
      %p130 = scmp.ne.s32.totalorder %s121, %s122
      %p131 = scmp.eq.s32.totalorder %s31, 0
      %p132 = por %p130, %p131
      %p133 = scmp.ne.s32.totalorder %s121, %s122
      %p134 = scmp.eq.s32.totalorder %s32, 3
      %p135 = por %p133, %p134
      %p137 = scmp.ne.s32.totalorder %s122, %s136
      %p138 = scmp.eq.s32.totalorder %s32, 0
      %p139 = por %p137, %p138
      %s141 = sadd.s32 %s140, 1
      %p144 = scmp.eq.s32.totalorder %s26, 3
      %p145 = scmp.ne.s32.totalorder %s140, %s142
      %p146 = scmp.eq.s32.totalorder %s26, 0
      %p147 = por %p145, %p146
      %p148 = scmp.ne.s32.totalorder %s140, %s142
      %p149 = scmp.eq.s32.totalorder %s31, 3
      %p150 = por %p148, %p149
      %p151 = scmp.ne.s32.totalorder %s142, %s143
      %p152 = scmp.eq.s32.totalorder %s31, 0
      %p153 = por %p151, %p152
      %p154 = scmp.ne.s32.totalorder %s142, %s143
      %p155 = scmp.eq.s32.totalorder %s32, 3
      %p156 = por %p154, %p155
      %p158 = scmp.ne.s32.totalorder %s143, %s157
      %p159 = scmp.eq.s32.totalorder %s32, 0
      %p160 = por %p158, %p159
      %s162 = sadd.s32 %s161, 1
      %p165 = scmp.eq.s32.totalorder %s26, 3
      %p166 = scmp.ne.s32.totalorder %s161, %s163
      %p167 = scmp.eq.s32.totalorder %s26, 0
      %p168 = por %p166, %p167
      %p169 = scmp.ne.s32.totalorder %s161, %s163
      %p170 = scmp.eq.s32.totalorder %s31, 3
      %p171 = por %p169, %p170
      %p172 = scmp.ne.s32.totalorder %s163, %s164
      %p173 = scmp.eq.s32.totalorder %s31, 0
      %p174 = por %p172, %p173
      %p175 = scmp.ne.s32.totalorder %s163, %s164
      %p176 = scmp.eq.s32.totalorder %s32, 3
      %p177 = por %p175, %p176
      %p179 = scmp.ne.s32.totalorder %s164, %s178
      %p180 = scmp.eq.s32.totalorder %s32, 0
      %p181 = por %p179, %p180
      %s182 = ssub.s32 %s33, %s45
      %p183 = scmp.eq.s32.totalorder %s182, 0
      %s185 = sadd.s32 %s184, 1
      %s186 = scalar_select %p183, %s184, %s185
      %p189 = pneg %p183
      %p190 = scmp.eq.s32.totalorder %s26, 3
      %p191 = por %p189, %p190
      %p192 = scmp.ne.s32.totalorder %s184, %s187
      %p193 = scmp.eq.s32.totalorder %s26, 0
      %p194 = por %p192, %p193
      %p195 = scmp.ne.s32.totalorder %s184, %s187
      %p196 = scmp.eq.s32.totalorder %s31, 3
      %p197 = por %p195, %p196
      %p198 = scmp.ne.s32.totalorder %s187, %s188
      %p199 = scmp.eq.s32.totalorder %s31, 0
      %p200 = por %p198, %p199
      %p201 = scmp.ne.s32.totalorder %s187, %s188
      %p202 = scmp.eq.s32.totalorder %s32, 3
      %p203 = por %p201, %p202
      %p205 = scmp.ne.s32.totalorder %s188, %s204
      %p206 = scmp.eq.s32.totalorder %s32, 0
      %p207 = por %p205, %p206
      %p208 = scmp.le.s32.totalorder 1, %s26
      %p209 = scmp.lt.s32.totalorder %s26, 5
      %p210 = pnand %p208, %p209
      %p211 = pneg %p210
      // Predicated region
      $region9: #{_forward_impl.1} parent=5 // pred_check
        _
      $region10: #{_forward_impl.1} parent=5 // pred_check_branch
        %213 = sbr.rel (%p210) target = $region12
      $region11: #{_forward_impl.1} parent=5 // pred_region
        %s214 = ssub.s32 %s26, 1
        // Predicated region
        $region13: #{_forward_impl.1} parent=11 // pred_check
          %p215 = pneg %p111
        $region14: #{_forward_impl.1} parent=11 // pred_check_branch
          %217 = sbr.rel (%p215) target = $region16
        $region15: #{_forward_impl.1} parent=11 // pred_region
          %219 = vsyncadd [#allocation6], 0
          %s220 = sshll.u32 %s3, 4
          %s221 = int_to_ptr.hbm [resolvable:$true] %s220
          %s222 = sshll.u32 [#allocation5], 4
          %s223 = int_to_ptr.vmem [resolvable:$true] %s222
          %228 = dma.hbm_to_vmem [thread:$0]  %s221, 9216, %s223, [#allocation6], 64, 64, 4
        $region16: #{_forward_impl.1} parent=11 // pred_fallthru
          _
        // Predicated region
        $region17: #{_forward_impl.1} parent=11 // pred_check
          %p229 = pneg %p132
        $region18: #{_forward_impl.1} parent=11 // pred_check_branch
          %231 = sbr.rel (%p229) target = $region20
        $region19: #{_forward_impl.1} parent=11 // pred_region
          _
        $region20: #{_forward_impl.1} parent=11 // pred_fallthru
          _
        // Predicated region
        $region21: #{_forward_impl.1} parent=11 // pred_check
          %p232 = pneg %p153
        $region22: #{_forward_impl.1} parent=11 // pred_check_branch
          %234 = sbr.rel (%p232) target = $region24
        $region23: #{_forward_impl.1} parent=11 // pred_region
          %236 = vsyncadd [#allocation9], 0
          %s237 = sshll.u32 %s5, 4
          %s238 = int_to_ptr.hbm [resolvable:$true] %s237
          %s239 = sshll.u32 [#allocation8], 4
          %s240 = int_to_ptr.vmem [resolvable:$true] %s239
          %245 = dma.hbm_to_vmem [thread:$0]  %s238, 2048, %s240, [#allocation9], 128, 128, 8
        $region24: #{_forward_impl.1} parent=11 // pred_fallthru
          _
        // Predicated region
        $region25: #{_forward_impl.1} parent=11 // pred_check
          %p246 = pneg %p174
        $region26: #{_forward_impl.1} parent=11 // pred_check_branch
          %248 = sbr.rel (%p246) target = $region28
        $region27: #{_forward_impl.1} parent=11 // pred_region
          _
        $region28: #{_forward_impl.1} parent=11 // pred_fallthru
          _
      $region12: #{_forward_impl.1} parent=5 // pred_fallthru
        _
      %p249 = scmp.lt.s32.totalorder %s26, 4
      // Predicated region
      $region29: #{_forward_impl.1} parent=5 // pred_check
        %p250 = pneg %p249
      $region30: #{_forward_impl.1} parent=5 // pred_check_branch
        %252 = sbr.rel (%p250) target = $region32
      $region31: #{_forward_impl.1} parent=5 // pred_region
        // Predicated region
        $region33: #{_forward_impl.1} parent=31 // pred_check
          %p253 = pneg %p58
        $region34: #{_forward_impl.1} parent=31 // pred_check_branch
          %255 = sbr.rel (%p253) target = $region36
        $region35: #{_forward_impl.1} parent=31 // pred_region
          %p256 = scmp.lt.s32.totalorder %s33, 1
          %s257 = scalar_select %p256, %s33, 1
          %s258 = scalar_lea.vmem %s1, %s257
        $region36: #{_forward_impl.1} parent=31 // pred_fallthru
          _
        // Predicated region
        $region37: #{_forward_impl.1} parent=31 // pred_check
          %p259 = pneg %p84
        $region38: #{_forward_impl.1} parent=31 // pred_check_branch
          %261 = sbr.rel (%p259) target = $region40
        $region39: #{_forward_impl.1} parent=31 // pred_region
          %p262 = scmp.lt.s32.totalorder %s33, 1
          %s263 = scalar_select %p262, %s33, 1
          %s264 = smul.addr %s263, 4
          %s265 = scalar_lea.vmem %s2, %s264
        $region40: #{_forward_impl.1} parent=31 // pred_fallthru
          _
      $region32: #{_forward_impl.1} parent=5 // pred_fallthru
        _
      %p266 = scmp.le.s32.totalorder 1, %s26
      %p267 = scmp.lt.s32.totalorder %s26, 5
      %p268 = pnand %p266, %p267
      %p269 = pneg %p268
      // Predicated region
      $region41: #{_forward_impl.1} parent=5 // pred_check
        _
      $region42: #{_forward_impl.1} parent=5 // pred_check_branch
        %271 = sbr.rel (%p268) target = $region44
      $region43: #{_forward_impl.1} parent=5 // pred_region
        %s272 = ssub.s32 %s26, 1
        // Predicated region
        $region45: #{_forward_impl.1} parent=43 // pred_check
          %p273 = pneg %p111
        $region46: #{_forward_impl.1} parent=43 // pred_check_branch
          %275 = sbr.rel (%p273) target = $region48
        $region47: #{_forward_impl.1} parent=43 // pred_region
          %277 = dma.done [#allocation6], 9216
        $region48: #{_forward_impl.1} parent=43 // pred_fallthru
          _
        // Predicated region
        $region49: #{_forward_impl.1} parent=43 // pred_check
          %p278 = pneg %p153
        $region50: #{_forward_impl.1} parent=43 // pred_check_branch
          %280 = sbr.rel (%p278) target = $region52
        $region51: #{_forward_impl.1} parent=43 // pred_region
          %282 = dma.done [#allocation9], 2048
        $region52: #{_forward_impl.1} parent=43 // pred_fallthru
          _
        %p283 = scmp.lt.s32.totalorder %s35, 1
        %s284 = scalar_select %p283, %s35, 1
        %s285 = scalar_lea.vmem %s1, %s284
        %p286 = pneg %p64
        %p287 = pneg %p61
        %p288 = scmp.lt.s32.totalorder %s35, 1
        %s289 = scalar_select %p288, %s35, 1
        %s290 = smul.addr %s289, 4
        %s291 = scalar_lea.vmem %s2, %s290
        %p292 = pneg %p90
        %p293 = pneg %p87
        %p294 = pneg %p111
        %p295 = pneg %p108
        %p296 = pneg %p132
        %p297 = pneg %p129
        %p298 = pneg %p153
        %p299 = pneg %p150
        %p300 = pneg %p174
        %p301 = pneg %p171
        %p302 = pneg %p200
        %p303 = pneg %p197
        %s304 = sand.u32 %s187, 1
        %s305 = scalar_lea.sflag [#allocation7], %s304
        %s306 = sand.u32 %s187, 1
        %s307 = scalar_lea.vmem [#allocation10], %s306
        %p308 = scmp.lt.s32.totalorder %s35, 1
        %s309 = scalar_select %p308, %s35, 1
        %s310 = scalar_lea.vmem %s1, %s309
        %p311 = scmp.lt.s32.totalorder %s35, 1
        %s312 = scalar_select %p311, %s35, 1
        %s313 = smul.addr %s312, 4
        %s314 = scalar_lea.vmem %s2, %s313
        %p316 = scmp.eq.s32.totalorder %s36, 0
        // Predicated region
        $region53: #{_forward_impl.1} parent=43 // pred_check
          %p317 = pneg %p316
        $region54: #{_forward_impl.1} parent=43 // pred_check_branch
          %319 = sbr.rel (%p317) target = $region56
        $region55: #{_forward_impl.1} parent=43 // pred_region
          %320 = vst [vmem:[#allocation2] sm:$0x1] 0.0
        $region56: #{_forward_impl.1} parent=43 // pred_fallthru
          _
        %s321 = sshra.s32 %s36, 7
        %s322 = sand.u32 %s36, 127
        %s323 = sadd.s32 %s321, %s35
        %s324 = smul.u32 %s323, 128
        %s325 = sshra.s32 %s36, 7
        %s326 = sand.u32 %s36, 127
        %s327 = sadd.s32 %s324, %s326
        %s328 = sld [smem:[#allocation4 + %s327]]
        %s329 = smul.u32 %s36, 8
        %s330 = ssub.s32 16, %s329
        %p331 = scmp.lt.s32.totalorder %s330, 8
        %s332 = scalar_select %p331, %s330, 8
        %p333 = scmp.gt.s32.totalorder %s328, 0
        // Predicated region
        $region57: #{_forward_impl.1} parent=43 // pred_check
          %p334 = pneg %p333
        $region58: #{_forward_impl.1} parent=43 // pred_check_branch
          %336 = sbr.rel (%p334) target = $region60
        $region59: #{_forward_impl.1} parent=43 // pred_region
          %s337 = smul.u32 %s36, 144
          %v338 = vld [vmem:[%s310] sm:$0x1]
          %v339 = vstv %s337
          %v340 = vsub.s32 %v338, %v339
          %v341 = vlaneseq
          %v342 = vshrl.u32 %v341, 7
          %v343 = vadd.s32 %v342, 8
          %v344 = vadd.s32 %v342, 16
          %v345 = vadd.s32 %v342, 24
          %v346 = vadd.s32 %v342, 32
          %v347 = vadd.s32 %v342, 40
          %v348 = vadd.s32 %v342, 48
          %v349 = vadd.s32 %v342, 56
          %v350 = vadd.s32 %v342, 64
          %v351 = vadd.s32 %v342, 72
          %v352 = vadd.s32 %v342, 80
          %v353 = vadd.s32 %v342, 88
          %v354 = vadd.s32 %v342, 96
          %v355 = vadd.s32 %v342, 104
          %v356 = vadd.s32 %v342, 112
          %v357 = vadd.s32 %v342, 120
          %v358 = vadd.s32 %v342, 128
          %v359 = vadd.s32 %v342, 136
          %v360 = vadd.s32 %v342, 144
          %v361 = vadd.s32 %v342, 152
          %v362 = vadd.s32 %v342, 160
          %v363 = vadd.s32 %v342, 168
          %v364 = vadd.s32 %v342, 176
          %v365 = vperm.slane %v340, 0
          %vm366 = vcmp.eq.s32.totalorder %v342, %v365
          %vm367 = vcmp.eq.s32.totalorder %v343, %v365
          %vm368 = vcmp.eq.s32.totalorder %v344, %v365
          %vm369 = vcmp.eq.s32.totalorder %v345, %v365
          %vm370 = vcmp.eq.s32.totalorder %v346, %v365
          %vm371 = vcmp.eq.s32.totalorder %v347, %v365
          %vm372 = vcmp.eq.s32.totalorder %v348, %v365
          %vm373 = vcmp.eq.s32.totalorder %v349, %v365
          %vm374 = vcmp.eq.s32.totalorder %v350, %v365
          %vm375 = vcmp.eq.s32.totalorder %v351, %v365
          %vm376 = vcmp.eq.s32.totalorder %v352, %v365
          %vm377 = vcmp.eq.s32.totalorder %v353, %v365
          %vm378 = vcmp.eq.s32.totalorder %v354, %v365
          %vm379 = vcmp.eq.s32.totalorder %v355, %v365
          %vm380 = vcmp.eq.s32.totalorder %v356, %v365
          %vm381 = vcmp.eq.s32.totalorder %v357, %v365
          %vm382 = vcmp.eq.s32.totalorder %v358, %v365
          %vm383 = vcmp.eq.s32.totalorder %v359, %v365
          %vm384 = vcmp.eq.s32.totalorder %v360, %v365
          %vm385 = vcmp.eq.s32.totalorder %v361, %v365
          %vm386 = vcmp.eq.s32.totalorder %v362, %v365
          %vm387 = vcmp.eq.s32.totalorder %v363, %v365
          %vm388 = vcmp.eq.s32.totalorder %v364, %v365
          %v389 = vsel %vm366, 1, 0
          %v390 = vsel %vm367, 1, 0
          %v391 = vsel %vm368, 1, 0
          %v392 = vsel %vm369, 1, 0
          %v393 = vsel %vm370, 1, 0
          %v394 = vsel %vm371, 1, 0
          %v395 = vsel %vm372, 1, 0
          %v396 = vsel %vm373, 1, 0
          %v397 = vsel %vm374, 1, 0
          %v398 = vsel %vm375, 1, 0
          %v399 = vsel %vm376, 1, 0
          %v400 = vsel %vm377, 1, 0
          %v401 = vsel %vm378, 1, 0
          %v402 = vsel %vm379, 1, 0
          %v403 = vsel %vm380, 1, 0
          %v404 = vsel %vm381, 1, 0
          %v405 = vsel %vm382, 1, 0
          %v406 = vsel %vm383, 1, 0
          %v407 = vsel %vm384, 1, 0
          %v408 = vsel %vm385, 1, 0
          %v409 = vsel %vm386, 1, 0
          %v410 = vsel %vm387, 1, 0
          %v411 = vsel %vm388, 1, 0
          %v412 = vcvt.s32.f32 %v389
          %v413 = vcvt.s32.f32 %v390
          %v414 = vcvt.s32.f32 %v391
          %v415 = vcvt.s32.f32 %v392
          %v416 = vcvt.s32.f32 %v393
          %v417 = vcvt.s32.f32 %v394
          %v418 = vcvt.s32.f32 %v395
          %v419 = vcvt.s32.f32 %v396
          %v420 = vcvt.s32.f32 %v397
          %v421 = vcvt.s32.f32 %v398
          %v422 = vcvt.s32.f32 %v399
          %v423 = vcvt.s32.f32 %v400
          %v424 = vcvt.s32.f32 %v401
          %v425 = vcvt.s32.f32 %v402
          %v426 = vcvt.s32.f32 %v403
          %v427 = vcvt.s32.f32 %v404
          %v428 = vcvt.s32.f32 %v405
          %v429 = vcvt.s32.f32 %v406
          %v430 = vcvt.s32.f32 %v407
          %v431 = vcvt.s32.f32 %v408
          %v432 = vcvt.s32.f32 %v409
          %v433 = vcvt.s32.f32 %v410
          %v434 = vcvt.s32.f32 %v411
          %v435 = vpack.c.bf16 %v413, %v412
          %v436 = vpack.c.bf16 %v415, %v414
          %v437 = vpack.c.bf16 %v417, %v416
          %v438 = vpack.c.bf16 %v419, %v418
          %v439 = vpack.c.bf16 %v421, %v420
          %v440 = vpack.c.bf16 %v423, %v422
          %v441 = vpack.c.bf16 %v425, %v424
          %v442 = vpack.c.bf16 %v427, %v426
          %v443 = vpack.c.bf16 %v429, %v428
          %v444 = vpack.c.bf16 %v431, %v430
          %v445 = vpack.c.bf16 %v433, %v432
          %v446 = vpack.c.bf16 %v434, %v434
          %v447 = vld [vmem:[%s314] sm:$0xf]
          %vm448 = vcmask 64512
          %v450 = vsel %vm448, %v435, 0
          %v453 = vsel %vm448, %v436, 0
          %v456 = vsel %vm448, %v437, 0
          %v459 = vsel %vm448, %v438, 0
          %v462 = vsel %vm448, %v439, 0
          %v465 = vsel %vm448, %v440, 0
          %v468 = vsel %vm448, %v441, 0
          %v471 = vsel %vm448, %v442, 0
          %v474 = vsel %vm448, %v443, 0
          %v477 = vsel %vm448, %v444, 0
          %v480 = vsel %vm448, %v445, 0
          %v483 = vsel %vm448, %v446, 0
          %vm485 = vcmask 1043456
          %v487 = vsel %vm485, %v447, 0
          %489 = vmatpush.bf16.msra.mxu0 0
          %490 = vmatpush.bf16.msra.mxu0 0
          %491 = vmatpush.bf16.msra.mxu0 0
          %492 = vmatpush.bf16.msra.mxu0 0
          %493 = vmatpush.bf16.msra.mxu0 0
          %494 = vmatpush.bf16.msra.mxu0 0
          %495 = vmatpush.bf16.msra.mxu0 0
          %496 = vmatpush.bf16.msra.mxu0 %v487
          %497 = vmatmul.bf16.gmra.mxu0 %v450
          %v498 = vpop.f32.mrf.mxu0
          %v499 = vadd.f32 0.0, %v498
          %v500 = vpop.f32.mrf.mxu0
          %v501 = vadd.f32 0.0, %v500
          %502 = vmatmul.bf16.gmra.mxu0 %v453
          %v503 = vpop.f32.mrf.mxu0
          %v504 = vadd.f32 0.0, %v503
          %v505 = vpop.f32.mrf.mxu0
          %v506 = vadd.f32 0.0, %v505
          %507 = vmatmul.bf16.gmra.mxu0 %v456
          %v508 = vpop.f32.mrf.mxu0
          %v509 = vadd.f32 0.0, %v508
          %v510 = vpop.f32.mrf.mxu0
          %v511 = vadd.f32 0.0, %v510
          %512 = vmatmul.bf16.gmra.mxu0 %v459
          %v513 = vpop.f32.mrf.mxu0
          %v514 = vadd.f32 0.0, %v513
          %v515 = vpop.f32.mrf.mxu0
          %v516 = vadd.f32 0.0, %v515
          %517 = vmatmul.bf16.gmra.mxu0 %v462
          %v518 = vpop.f32.mrf.mxu0
          %v519 = vadd.f32 0.0, %v518
          %v520 = vpop.f32.mrf.mxu0
          %v521 = vadd.f32 0.0, %v520
          %522 = vmatmul.bf16.gmra.mxu0 %v465
          %v523 = vpop.f32.mrf.mxu0
          %v524 = vadd.f32 0.0, %v523
          %v525 = vpop.f32.mrf.mxu0
          %v526 = vadd.f32 0.0, %v525
          %527 = vmatmul.bf16.gmra.mxu0 %v468
          %v528 = vpop.f32.mrf.mxu0
          %v529 = vadd.f32 0.0, %v528
          %v530 = vpop.f32.mrf.mxu0
          %v531 = vadd.f32 0.0, %v530
          %532 = vmatmul.bf16.gmra.mxu0 %v471
          %v533 = vpop.f32.mrf.mxu0
          %v534 = vadd.f32 0.0, %v533
          %v535 = vpop.f32.mrf.mxu0
          %v536 = vadd.f32 0.0, %v535
          %537 = vmatmul.bf16.gmra.mxu0 %v474
          %v538 = vpop.f32.mrf.mxu0
          %v539 = vadd.f32 0.0, %v538
          %v540 = vpop.f32.mrf.mxu0
          %v541 = vadd.f32 0.0, %v540
          %542 = vmatmul.bf16.gmra.mxu0 %v477
          %v543 = vpop.f32.mrf.mxu0
          %v544 = vadd.f32 0.0, %v543
          %v545 = vpop.f32.mrf.mxu0
          %v546 = vadd.f32 0.0, %v545
          %547 = vmatmul.bf16.gmra.mxu0 %v480
          %v548 = vpop.f32.mrf.mxu0
          %v549 = vadd.f32 0.0, %v548
          %v550 = vpop.f32.mrf.mxu0
          %v551 = vadd.f32 0.0, %v550
          %552 = vmatmul.bf16.gmra.mxu0 %v483
          %v553 = vpop.f32.mrf.mxu0
          %v554 = vadd.f32 0.0, %v553
          %v555 = vpop.f32.mrf.mxu0
          %556 = vdwg.mxu0
          %v557 = vmax.f32 %v499, 1.0
          %v558 = vmax.f32 %v501, 1.0
          %v559 = vmax.f32 %v504, 1.0
          %v560 = vmax.f32 %v506, 1.0
          %v561 = vmax.f32 %v509, 1.0
          %v562 = vmax.f32 %v511, 1.0
          %v563 = vmax.f32 %v514, 1.0
          %v564 = vmax.f32 %v516, 1.0
          %v565 = vmax.f32 %v519, 1.0
          %v566 = vmax.f32 %v521, 1.0
          %v567 = vmax.f32 %v524, 1.0
          %v568 = vmax.f32 %v526, 1.0
          %v569 = vmax.f32 %v529, 1.0
          %v570 = vmax.f32 %v531, 1.0
          %v571 = vmax.f32 %v534, 1.0
          %v572 = vmax.f32 %v536, 1.0
          %v573 = vmax.f32 %v539, 1.0
          %v574 = vmax.f32 %v541, 1.0
          %v575 = vmax.f32 %v544, 1.0
          %v576 = vmax.f32 %v546, 1.0
          %v577 = vmax.f32 %v549, 1.0
          %v578 = vmax.f32 %v551, 1.0
          %v579 = vmax.f32 %v554, 1.0
          %v580 = vrcp.pop %v557
          %v581 = vmul.f32 %v557, %v580
          %v582 = vsub.f32 1.0, %v581
          %v583 = vmul.f32 %v580, %v582
          %v584 = vadd.f32 %v580, %v583
          %vm585 = vweird.f32 %v557
          %vm586 = vweird.f32 %v580
          %vm587 = vmor %vm585, %vm586
          %v588 = vsel %vm587, %v580, %v584
          %v589 = vand.u32 2147483647, %v557
          %vm590 = vcmp.eq.f32.partialorder %v589, 8.507059e+37
          %v591 = vand.u32 %v557, 2147483648
          %v592 = vor.u32 1.1754944e-38, %v591
          %v593 = vsel %vm590, %v592, %v588
          %v594 = vmul.f32 1.0, %v593
          %v595 = vrcp.pop %v558
          %v596 = vmul.f32 %v558, %v595
          %v597 = vsub.f32 1.0, %v596
          %v598 = vmul.f32 %v595, %v597
          %v599 = vadd.f32 %v595, %v598
          %vm600 = vweird.f32 %v558
          %vm601 = vweird.f32 %v595
          %vm602 = vmor %vm600, %vm601
          %v603 = vsel %vm602, %v595, %v599
          %v604 = vand.u32 2147483647, %v558
          %vm605 = vcmp.eq.f32.partialorder %v604, 8.507059e+37
          %v606 = vand.u32 %v558, 2147483648
          %v607 = vor.u32 1.1754944e-38, %v606
          %v608 = vsel %vm605, %v607, %v603
          %v609 = vmul.f32 1.0, %v608
          %v610 = vrcp.pop %v559
          %v611 = vmul.f32 %v559, %v610
          %v612 = vsub.f32 1.0, %v611
          %v613 = vmul.f32 %v610, %v612
          %v614 = vadd.f32 %v610, %v613
          %vm615 = vweird.f32 %v559
          %vm616 = vweird.f32 %v610
          %vm617 = vmor %vm615, %vm616
          %v618 = vsel %vm617, %v610, %v614
          %v619 = vand.u32 2147483647, %v559
          %vm620 = vcmp.eq.f32.partialorder %v619, 8.507059e+37
          %v621 = vand.u32 %v559, 2147483648
          %v622 = vor.u32 1.1754944e-38, %v621
          %v623 = vsel %vm620, %v622, %v618
          %v624 = vmul.f32 1.0, %v623
          %v625 = vrcp.pop %v560
          %v626 = vmul.f32 %v560, %v625
          %v627 = vsub.f32 1.0, %v626
          %v628 = vmul.f32 %v625, %v627
          %v629 = vadd.f32 %v625, %v628
          %vm630 = vweird.f32 %v560
          %vm631 = vweird.f32 %v625
          %vm632 = vmor %vm630, %vm631
          %v633 = vsel %vm632, %v625, %v629
          %v634 = vand.u32 2147483647, %v560
          %vm635 = vcmp.eq.f32.partialorder %v634, 8.507059e+37
          %v636 = vand.u32 %v560, 2147483648
          %v637 = vor.u32 1.1754944e-38, %v636
          %v638 = vsel %vm635, %v637, %v633
          %v639 = vmul.f32 1.0, %v638
          %v640 = vrcp.pop %v561
          %v641 = vmul.f32 %v561, %v640
          %v642 = vsub.f32 1.0, %v641
          %v643 = vmul.f32 %v640, %v642
          %v644 = vadd.f32 %v640, %v643
          %vm645 = vweird.f32 %v561
          %vm646 = vweird.f32 %v640
          %vm647 = vmor %vm645, %vm646
          %v648 = vsel %vm647, %v640, %v644
          %v649 = vand.u32 2147483647, %v561
          %vm650 = vcmp.eq.f32.partialorder %v649, 8.507059e+37
          %v651 = vand.u32 %v561, 2147483648
          %v652 = vor.u32 1.1754944e-38, %v651
          %v653 = vsel %vm650, %v652, %v648
          %v654 = vmul.f32 1.0, %v653
          %v655 = vrcp.pop %v562
          %v656 = vmul.f32 %v562, %v655
          %v657 = vsub.f32 1.0, %v656
          %v658 = vmul.f32 %v655, %v657
          %v659 = vadd.f32 %v655, %v658
          %vm660 = vweird.f32 %v562
          %vm661 = vweird.f32 %v655
          %vm662 = vmor %vm660, %vm661
          %v663 = vsel %vm662, %v655, %v659
          %v664 = vand.u32 2147483647, %v562
          %vm665 = vcmp.eq.f32.partialorder %v664, 8.507059e+37
          %v666 = vand.u32 %v562, 2147483648
          %v667 = vor.u32 1.1754944e-38, %v666
          %v668 = vsel %vm665, %v667, %v663
          %v669 = vmul.f32 1.0, %v668
          %v670 = vrcp.pop %v563
          %v671 = vmul.f32 %v563, %v670
          %v672 = vsub.f32 1.0, %v671
          %v673 = vmul.f32 %v670, %v672
          %v674 = vadd.f32 %v670, %v673
          %vm675 = vweird.f32 %v563
          %vm676 = vweird.f32 %v670
          %vm677 = vmor %vm675, %vm676
          %v678 = vsel %vm677, %v670, %v674
          %v679 = vand.u32 2147483647, %v563
          %vm680 = vcmp.eq.f32.partialorder %v679, 8.507059e+37
          %v681 = vand.u32 %v563, 2147483648
          %v682 = vor.u32 1.1754944e-38, %v681
          %v683 = vsel %vm680, %v682, %v678
          %v684 = vmul.f32 1.0, %v683
          %v685 = vrcp.pop %v564
          %v686 = vmul.f32 %v564, %v685
          %v687 = vsub.f32 1.0, %v686
          %v688 = vmul.f32 %v685, %v687
          %v689 = vadd.f32 %v685, %v688
          %vm690 = vweird.f32 %v564
          %vm691 = vweird.f32 %v685
          %vm692 = vmor %vm690, %vm691
          %v693 = vsel %vm692, %v685, %v689
          %v694 = vand.u32 2147483647, %v564
          %vm695 = vcmp.eq.f32.partialorder %v694, 8.507059e+37
          %v696 = vand.u32 %v564, 2147483648
          %v697 = vor.u32 1.1754944e-38, %v696
          %v698 = vsel %vm695, %v697, %v693
          %v699 = vmul.f32 1.0, %v698
          %v700 = vrcp.pop %v565
          %v701 = vmul.f32 %v565, %v700
          %v702 = vsub.f32 1.0, %v701
          %v703 = vmul.f32 %v700, %v702
          %v704 = vadd.f32 %v700, %v703
          %vm705 = vweird.f32 %v565
          %vm706 = vweird.f32 %v700
          %vm707 = vmor %vm705, %vm706
          %v708 = vsel %vm707, %v700, %v704
          %v709 = vand.u32 2147483647, %v565
          %vm710 = vcmp.eq.f32.partialorder %v709, 8.507059e+37
          %v711 = vand.u32 %v565, 2147483648
          %v712 = vor.u32 1.1754944e-38, %v711
          %v713 = vsel %vm710, %v712, %v708
          %v714 = vmul.f32 1.0, %v713
          %v715 = vrcp.pop %v566
          %v716 = vmul.f32 %v566, %v715
          %v717 = vsub.f32 1.0, %v716
          %v718 = vmul.f32 %v715, %v717
          %v719 = vadd.f32 %v715, %v718
          %vm720 = vweird.f32 %v566
          %vm721 = vweird.f32 %v715
          %vm722 = vmor %vm720, %vm721
          %v723 = vsel %vm722, %v715, %v719
          %v724 = vand.u32 2147483647, %v566
          %vm725 = vcmp.eq.f32.partialorder %v724, 8.507059e+37
          %v726 = vand.u32 %v566, 2147483648
          %v727 = vor.u32 1.1754944e-38, %v726
          %v728 = vsel %vm725, %v727, %v723
          %v729 = vmul.f32 1.0, %v728
          %v730 = vrcp.pop %v567
          %v731 = vmul.f32 %v567, %v730
          %v732 = vsub.f32 1.0, %v731
          %v733 = vmul.f32 %v730, %v732
          %v734 = vadd.f32 %v730, %v733
          %vm735 = vweird.f32 %v567
          %vm736 = vweird.f32 %v730
          %vm737 = vmor %vm735, %vm736
          %v738 = vsel %vm737, %v730, %v734
          %v739 = vand.u32 2147483647, %v567
          %vm740 = vcmp.eq.f32.partialorder %v739, 8.507059e+37
          %v741 = vand.u32 %v567, 2147483648
          %v742 = vor.u32 1.1754944e-38, %v741
          %v743 = vsel %vm740, %v742, %v738
          %v744 = vmul.f32 1.0, %v743
          %v745 = vrcp.pop %v568
          %v746 = vmul.f32 %v568, %v745
          %v747 = vsub.f32 1.0, %v746
          %v748 = vmul.f32 %v745, %v747
          %v749 = vadd.f32 %v745, %v748
          %vm750 = vweird.f32 %v568
          %vm751 = vweird.f32 %v745
          %vm752 = vmor %vm750, %vm751
          %v753 = vsel %vm752, %v745, %v749
          %v754 = vand.u32 2147483647, %v568
          %vm755 = vcmp.eq.f32.partialorder %v754, 8.507059e+37
          %v756 = vand.u32 %v568, 2147483648
          %v757 = vor.u32 1.1754944e-38, %v756
          %v758 = vsel %vm755, %v757, %v753
          %v759 = vmul.f32 1.0, %v758
          %v760 = vrcp.pop %v569
          %v761 = vmul.f32 %v569, %v760
          %v762 = vsub.f32 1.0, %v761
          %v763 = vmul.f32 %v760, %v762
          %v764 = vadd.f32 %v760, %v763
          %vm765 = vweird.f32 %v569
          %vm766 = vweird.f32 %v760
          %vm767 = vmor %vm765, %vm766
          %v768 = vsel %vm767, %v760, %v764
          %v769 = vand.u32 2147483647, %v569
          %vm770 = vcmp.eq.f32.partialorder %v769, 8.507059e+37
          %v771 = vand.u32 %v569, 2147483648
          %v772 = vor.u32 1.1754944e-38, %v771
          %v773 = vsel %vm770, %v772, %v768
          %v774 = vmul.f32 1.0, %v773
          %v775 = vrcp.pop %v570
          %v776 = vmul.f32 %v570, %v775
          %v777 = vsub.f32 1.0, %v776
          %v778 = vmul.f32 %v775, %v777
          %v779 = vadd.f32 %v775, %v778
          %vm780 = vweird.f32 %v570
          %vm781 = vweird.f32 %v775
          %vm782 = vmor %vm780, %vm781
          %v783 = vsel %vm782, %v775, %v779
          %v784 = vand.u32 2147483647, %v570
          %vm785 = vcmp.eq.f32.partialorder %v784, 8.507059e+37
          %v786 = vand.u32 %v570, 2147483648
          %v787 = vor.u32 1.1754944e-38, %v786
          %v788 = vsel %vm785, %v787, %v783
          %v789 = vmul.f32 1.0, %v788
          %v790 = vrcp.pop %v571
          %v791 = vmul.f32 %v571, %v790
          %v792 = vsub.f32 1.0, %v791
          %v793 = vmul.f32 %v790, %v792
          %v794 = vadd.f32 %v790, %v793
          %vm795 = vweird.f32 %v571
          %vm796 = vweird.f32 %v790
          %vm797 = vmor %vm795, %vm796
          %v798 = vsel %vm797, %v790, %v794
          %v799 = vand.u32 2147483647, %v571
          %vm800 = vcmp.eq.f32.partialorder %v799, 8.507059e+37
          %v801 = vand.u32 %v571, 2147483648
          %v802 = vor.u32 1.1754944e-38, %v801
          %v803 = vsel %vm800, %v802, %v798
          %v804 = vmul.f32 1.0, %v803
          %v805 = vrcp.pop %v572
          %v806 = vmul.f32 %v572, %v805
          %v807 = vsub.f32 1.0, %v806
          %v808 = vmul.f32 %v805, %v807
          %v809 = vadd.f32 %v805, %v808
          %vm810 = vweird.f32 %v572
          %vm811 = vweird.f32 %v805
          %vm812 = vmor %vm810, %vm811
          %v813 = vsel %vm812, %v805, %v809
          %v814 = vand.u32 2147483647, %v572
          %vm815 = vcmp.eq.f32.partialorder %v814, 8.507059e+37
          %v816 = vand.u32 %v572, 2147483648
          %v817 = vor.u32 1.1754944e-38, %v816
          %v818 = vsel %vm815, %v817, %v813
          %v819 = vmul.f32 1.0, %v818
          %v820 = vrcp.pop %v573
          %v821 = vmul.f32 %v573, %v820
          %v822 = vsub.f32 1.0, %v821
          %v823 = vmul.f32 %v820, %v822
          %v824 = vadd.f32 %v820, %v823
          %vm825 = vweird.f32 %v573
          %vm826 = vweird.f32 %v820
          %vm827 = vmor %vm825, %vm826
          %v828 = vsel %vm827, %v820, %v824
          %v829 = vand.u32 2147483647, %v573
          %vm830 = vcmp.eq.f32.partialorder %v829, 8.507059e+37
          %v831 = vand.u32 %v573, 2147483648
          %v832 = vor.u32 1.1754944e-38, %v831
          %v833 = vsel %vm830, %v832, %v828
          %v834 = vmul.f32 1.0, %v833
          %v835 = vrcp.pop %v574
          %v836 = vmul.f32 %v574, %v835
          %v837 = vsub.f32 1.0, %v836
          %v838 = vmul.f32 %v835, %v837
          %v839 = vadd.f32 %v835, %v838
          %vm840 = vweird.f32 %v574
          %vm841 = vweird.f32 %v835
          %vm842 = vmor %vm840, %vm841
          %v843 = vsel %vm842, %v835, %v839
          %v844 = vand.u32 2147483647, %v574
          %vm845 = vcmp.eq.f32.partialorder %v844, 8.507059e+37
          %v846 = vand.u32 %v574, 2147483648
          %v847 = vor.u32 1.1754944e-38, %v846
          %v848 = vsel %vm845, %v847, %v843
          %v849 = vmul.f32 1.0, %v848
          %v850 = vrcp.pop %v575
          %v851 = vmul.f32 %v575, %v850
          %v852 = vsub.f32 1.0, %v851
          %v853 = vmul.f32 %v850, %v852
          %v854 = vadd.f32 %v850, %v853
          %vm855 = vweird.f32 %v575
          %vm856 = vweird.f32 %v850
          %vm857 = vmor %vm855, %vm856
          %v858 = vsel %vm857, %v850, %v854
          %v859 = vand.u32 2147483647, %v575
          %vm860 = vcmp.eq.f32.partialorder %v859, 8.507059e+37
          %v861 = vand.u32 %v575, 2147483648
          %v862 = vor.u32 1.1754944e-38, %v861
          %v863 = vsel %vm860, %v862, %v858
          %v864 = vmul.f32 1.0, %v863
          %v865 = vrcp.pop %v576
          %v866 = vmul.f32 %v576, %v865
          %v867 = vsub.f32 1.0, %v866
          %v868 = vmul.f32 %v865, %v867
          %v869 = vadd.f32 %v865, %v868
          %vm870 = vweird.f32 %v576
          %vm871 = vweird.f32 %v865
          %vm872 = vmor %vm870, %vm871
          %v873 = vsel %vm872, %v865, %v869
          %v874 = vand.u32 2147483647, %v576
          %vm875 = vcmp.eq.f32.partialorder %v874, 8.507059e+37
          %v876 = vand.u32 %v576, 2147483648
          %v877 = vor.u32 1.1754944e-38, %v876
          %v878 = vsel %vm875, %v877, %v873
          %v879 = vmul.f32 1.0, %v878
          %v880 = vrcp.pop %v577
          %v881 = vmul.f32 %v577, %v880
          %v882 = vsub.f32 1.0, %v881
          %v883 = vmul.f32 %v880, %v882
          %v884 = vadd.f32 %v880, %v883
          %vm885 = vweird.f32 %v577
          %vm886 = vweird.f32 %v880
          %vm887 = vmor %vm885, %vm886
          %v888 = vsel %vm887, %v880, %v884
          %v889 = vand.u32 2147483647, %v577
          %vm890 = vcmp.eq.f32.partialorder %v889, 8.507059e+37
          %v891 = vand.u32 %v577, 2147483648
          %v892 = vor.u32 1.1754944e-38, %v891
          %v893 = vsel %vm890, %v892, %v888
          %v894 = vmul.f32 1.0, %v893
          %v895 = vrcp.pop %v578
          %v896 = vmul.f32 %v578, %v895
          %v897 = vsub.f32 1.0, %v896
          %v898 = vmul.f32 %v895, %v897
          %v899 = vadd.f32 %v895, %v898
          %vm900 = vweird.f32 %v578
          %vm901 = vweird.f32 %v895
          %vm902 = vmor %vm900, %vm901
          %v903 = vsel %vm902, %v895, %v899
          %v904 = vand.u32 2147483647, %v578
          %vm905 = vcmp.eq.f32.partialorder %v904, 8.507059e+37
          %v906 = vand.u32 %v578, 2147483648
          %v907 = vor.u32 1.1754944e-38, %v906
          %v908 = vsel %vm905, %v907, %v903
          %v909 = vmul.f32 1.0, %v908
          %v910 = vrcp.pop %v579
          %v911 = vmul.f32 %v579, %v910
          %v912 = vsub.f32 1.0, %v911
          %v913 = vmul.f32 %v910, %v912
          %v914 = vadd.f32 %v910, %v913
          %vm915 = vweird.f32 %v579
          %vm916 = vweird.f32 %v910
          %vm917 = vmor %vm915, %vm916
          %v918 = vsel %vm917, %v910, %v914
          %v919 = vand.u32 2147483647, %v579
          %vm920 = vcmp.eq.f32.partialorder %v919, 8.507059e+37
          %v921 = vand.u32 %v579, 2147483648
          %v922 = vor.u32 1.1754944e-38, %v921
          %v923 = vsel %vm920, %v922, %v918
          %v924 = vmul.f32 1.0, %v923
          %926 = vset.pattern.permute.xlu0 32
          %927 = vperm.xlu0 %926, %v594
          %v928 = vpop.permute.xlu0 %927
          %931 = vset.pattern.permute.xlu0 32
          %932 = vperm.xlu0 %931, %v609
          %v933 = vpop.permute.xlu0 %932
          %936 = vset.pattern.permute.xlu0 32
          %937 = vperm.xlu0 %936, %v624
          %v938 = vpop.permute.xlu0 %937
          %941 = vset.pattern.permute.xlu0 32
          %942 = vperm.xlu0 %941, %v639
          %v943 = vpop.permute.xlu0 %942
          %946 = vset.pattern.permute.xlu0 32
          %947 = vperm.xlu0 %946, %v654
          %v948 = vpop.permute.xlu0 %947
          %951 = vset.pattern.permute.xlu0 32
          %952 = vperm.xlu0 %951, %v669
          %v953 = vpop.permute.xlu0 %952
          %956 = vset.pattern.permute.xlu0 32
          %957 = vperm.xlu0 %956, %v684
          %v958 = vpop.permute.xlu0 %957
          %961 = vset.pattern.permute.xlu0 32
          %962 = vperm.xlu0 %961, %v699
          %v963 = vpop.permute.xlu0 %962
          %966 = vset.pattern.permute.xlu0 32
          %967 = vperm.xlu0 %966, %v714
          %v968 = vpop.permute.xlu0 %967
          %971 = vset.pattern.permute.xlu0 32
          %972 = vperm.xlu0 %971, %v729
          %v973 = vpop.permute.xlu0 %972
          %976 = vset.pattern.permute.xlu0 32
          %977 = vperm.xlu0 %976, %v744
          %v978 = vpop.permute.xlu0 %977
          %981 = vset.pattern.permute.xlu0 32
          %982 = vperm.xlu0 %981, %v759
          %v983 = vpop.permute.xlu0 %982
          %986 = vset.pattern.permute.xlu0 32
          %987 = vperm.xlu0 %986, %v774
          %v988 = vpop.permute.xlu0 %987
          %991 = vset.pattern.permute.xlu0 32
          %992 = vperm.xlu0 %991, %v789
          %v993 = vpop.permute.xlu0 %992
          %996 = vset.pattern.permute.xlu0 32
          %997 = vperm.xlu0 %996, %v804
          %v998 = vpop.permute.xlu0 %997
          %1001 = vset.pattern.permute.xlu0 32
          %1002 = vperm.xlu0 %1001, %v819
          %v1003 = vpop.permute.xlu0 %1002
          %1006 = vset.pattern.permute.xlu0 32
          %1007 = vperm.xlu0 %1006, %v834
          %v1008 = vpop.permute.xlu0 %1007
          %1011 = vset.pattern.permute.xlu0 32
          %1012 = vperm.xlu0 %1011, %v849
          %v1013 = vpop.permute.xlu0 %1012
          %1016 = vset.pattern.permute.xlu0 32
          %1017 = vperm.xlu0 %1016, %v864
          %v1018 = vpop.permute.xlu0 %1017
          %1021 = vset.pattern.permute.xlu0 32
          %1022 = vperm.xlu0 %1021, %v879
          %v1023 = vpop.permute.xlu0 %1022
          %1026 = vset.pattern.permute.xlu0 32
          %1027 = vperm.xlu0 %1026, %v894
          %v1028 = vpop.permute.xlu0 %1027
          %1031 = vset.pattern.permute.xlu0 32
          %1032 = vperm.xlu0 %1031, %v909
          %v1033 = vpop.permute.xlu0 %1032
          %1036 = vset.pattern.permute.xlu0 32
          %1037 = vperm.xlu0 %1036, %v924
          %v1038 = vpop.permute.xlu0 %1037
          %v1040 = vmul.f32 %v499, %v928
          %v1041 = vmul.f32 %v501, %v933
          %v1042 = vmul.f32 %v504, %v938
          %v1043 = vmul.f32 %v506, %v943
          %v1044 = vmul.f32 %v509, %v948
          %v1045 = vmul.f32 %v511, %v953
          %v1046 = vmul.f32 %v514, %v958
          %v1047 = vmul.f32 %v516, %v963
          %v1048 = vmul.f32 %v519, %v968
          %v1049 = vmul.f32 %v521, %v973
          %v1050 = vmul.f32 %v524, %v978
          %v1051 = vmul.f32 %v526, %v983
          %v1052 = vmul.f32 %v529, %v988
          %v1053 = vmul.f32 %v531, %v993
          %v1054 = vmul.f32 %v534, %v998
          %v1055 = vmul.f32 %v536, %v1003
          %v1056 = vmul.f32 %v539, %v1008
          %v1057 = vmul.f32 %v541, %v1013
          %v1058 = vmul.f32 %v544, %v1018
          %v1059 = vmul.f32 %v546, %v1023
          %v1060 = vmul.f32 %v549, %v1028
          %v1061 = vmul.f32 %v551, %v1033
          %v1062 = vmul.f32 %v554, %v1038
          %v1063 = vpack.c.bf16 %v1040, %v1040
          %v1064 = vpack.c.bf16 %v1041, %v1041
          %v1065 = vpack.c.bf16 %v1042, %v1042
          %v1066 = vpack.c.bf16 %v1043, %v1043
          %v1067 = vpack.c.bf16 %v1044, %v1044
          %v1068 = vpack.c.bf16 %v1045, %v1045
          %v1069 = vpack.c.bf16 %v1046, %v1046
          %v1070 = vpack.c.bf16 %v1047, %v1047
          %v1071 = vpack.c.bf16 %v1048, %v1048
          %v1072 = vpack.c.bf16 %v1049, %v1049
          %v1073 = vpack.c.bf16 %v1050, %v1050
          %v1074 = vpack.c.bf16 %v1051, %v1051
          %v1075 = vpack.c.bf16 %v1052, %v1052
          %v1076 = vpack.c.bf16 %v1053, %v1053
          %v1077 = vpack.c.bf16 %v1054, %v1054
          %v1078 = vpack.c.bf16 %v1055, %v1055
          %v1079 = vpack.c.bf16 %v1056, %v1056
          %v1080 = vpack.c.bf16 %v1057, %v1057
          %v1081 = vpack.c.bf16 %v1058, %v1058
          %v1082 = vpack.c.bf16 %v1059, %v1059
          %v1083 = vpack.c.bf16 %v1060, %v1060
          %v1084 = vpack.c.bf16 %v1061, %v1061
          %v1085 = vpack.c.bf16 %v1062, %v1062
          %v1109 = vrot.slane %v1063, 3
          %v1110 = vrot.slane %v1064, 3
          %v1111 = vrot.slane %v1065, 3
          %v1112 = vrot.slane %v1066, 3
          %v1113 = vrot.slane %v1067, 3
          %v1114 = vrot.slane %v1068, 3
          %v1115 = vrot.slane %v1069, 3
          %v1116 = vrot.slane %v1070, 3
          %v1117 = vrot.slane %v1071, 3
          %v1118 = vrot.slane %v1072, 3
          %v1119 = vrot.slane %v1073, 3
          %v1120 = vrot.slane %v1074, 3
          %v1121 = vrot.slane %v1075, 3
          %v1122 = vrot.slane %v1076, 3
          %v1123 = vrot.slane %v1077, 3
          %v1124 = vrot.slane %v1078, 3
          %v1125 = vrot.slane %v1079, 3
          %v1126 = vrot.slane %v1080, 3
          %v1127 = vrot.slane %v1081, 3
          %v1128 = vrot.slane %v1082, 3
          %v1129 = vrot.slane %v1083, 3
          %v1130 = vrot.slane %v1084, 3
          %v1131 = vrot.slane %v1085, 3
          %vm1132 = vcmask 1040384
          %v1135 = vsel %vm1132, %v1063, %v1109
          %vm1136 = vcmask 1041409
          %v1137 = vsel %vm1136, %v1063, %v1109
          %v1139 = vrot.slane %v1137, 1
          %vm1140 = vcmask 1042434
          %v1141 = vsel %vm1140, %v1063, %v1109
          %v1143 = vrot.slane %v1141, 2
          %vm1144 = vcmask 1043459
          %v1145 = vsel %vm1144, %v1063, %v1109
          %v1147 = vrot.slane %v1145, 3
          %v1150 = vsel %vm1132, %v1064, %v1110
          %v1151 = vsel %vm1136, %v1064, %v1110
          %v1153 = vrot.slane %v1151, 1
          %v1154 = vsel %vm1140, %v1064, %v1110
          %v1156 = vrot.slane %v1154, 2
          %v1157 = vsel %vm1144, %v1064, %v1110
          %v1159 = vrot.slane %v1157, 3
          %v1162 = vsel %vm1132, %v1065, %v1111
          %v1163 = vsel %vm1136, %v1065, %v1111
          %v1165 = vrot.slane %v1163, 1
          %v1166 = vsel %vm1140, %v1065, %v1111
          %v1168 = vrot.slane %v1166, 2
          %v1169 = vsel %vm1144, %v1065, %v1111
          %v1171 = vrot.slane %v1169, 3
          %v1174 = vsel %vm1132, %v1066, %v1112
          %v1175 = vsel %vm1136, %v1066, %v1112
          %v1177 = vrot.slane %v1175, 1
          %v1178 = vsel %vm1140, %v1066, %v1112
          %v1180 = vrot.slane %v1178, 2
          %v1181 = vsel %vm1144, %v1066, %v1112
          %v1183 = vrot.slane %v1181, 3
          %v1186 = vsel %vm1132, %v1067, %v1113
          %v1187 = vsel %vm1136, %v1067, %v1113
          %v1189 = vrot.slane %v1187, 1
          %v1190 = vsel %vm1140, %v1067, %v1113
          %v1192 = vrot.slane %v1190, 2
          %v1193 = vsel %vm1144, %v1067, %v1113
          %v1195 = vrot.slane %v1193, 3
          %v1198 = vsel %vm1132, %v1068, %v1114
          %v1199 = vsel %vm1136, %v1068, %v1114
          %v1201 = vrot.slane %v1199, 1
          %v1202 = vsel %vm1140, %v1068, %v1114
          %v1204 = vrot.slane %v1202, 2
          %v1205 = vsel %vm1144, %v1068, %v1114
          %v1207 = vrot.slane %v1205, 3
          %v1210 = vsel %vm1132, %v1069, %v1115
          %v1211 = vsel %vm1136, %v1069, %v1115
          %v1213 = vrot.slane %v1211, 1
          %v1214 = vsel %vm1140, %v1069, %v1115
          %v1216 = vrot.slane %v1214, 2
          %v1217 = vsel %vm1144, %v1069, %v1115
          %v1219 = vrot.slane %v1217, 3
          %v1222 = vsel %vm1132, %v1070, %v1116
          %v1223 = vsel %vm1136, %v1070, %v1116
          %v1225 = vrot.slane %v1223, 1
          %v1226 = vsel %vm1140, %v1070, %v1116
          %v1228 = vrot.slane %v1226, 2
          %v1229 = vsel %vm1144, %v1070, %v1116
          %v1231 = vrot.slane %v1229, 3
          %v1234 = vsel %vm1132, %v1071, %v1117
          %v1235 = vsel %vm1136, %v1071, %v1117
          %v1237 = vrot.slane %v1235, 1
          %v1238 = vsel %vm1140, %v1071, %v1117
          %v1240 = vrot.slane %v1238, 2
          %v1241 = vsel %vm1144, %v1071, %v1117
          %v1243 = vrot.slane %v1241, 3
          %v1246 = vsel %vm1132, %v1072, %v1118
          %v1247 = vsel %vm1136, %v1072, %v1118
          %v1249 = vrot.slane %v1247, 1
          %v1250 = vsel %vm1140, %v1072, %v1118
          %v1252 = vrot.slane %v1250, 2
          %v1253 = vsel %vm1144, %v1072, %v1118
          %v1255 = vrot.slane %v1253, 3
          %v1258 = vsel %vm1132, %v1073, %v1119
          %v1259 = vsel %vm1136, %v1073, %v1119
          %v1261 = vrot.slane %v1259, 1
          %v1262 = vsel %vm1140, %v1073, %v1119
          %v1264 = vrot.slane %v1262, 2
          %v1265 = vsel %vm1144, %v1073, %v1119
          %v1267 = vrot.slane %v1265, 3
          %v1270 = vsel %vm1132, %v1074, %v1120
          %v1271 = vsel %vm1136, %v1074, %v1120
          %v1273 = vrot.slane %v1271, 1
          %v1274 = vsel %vm1140, %v1074, %v1120
          %v1276 = vrot.slane %v1274, 2
          %v1277 = vsel %vm1144, %v1074, %v1120
          %v1279 = vrot.slane %v1277, 3
          %v1282 = vsel %vm1132, %v1075, %v1121
          %v1283 = vsel %vm1136, %v1075, %v1121
          %v1285 = vrot.slane %v1283, 1
          %v1286 = vsel %vm1140, %v1075, %v1121
          %v1288 = vrot.slane %v1286, 2
          %v1289 = vsel %vm1144, %v1075, %v1121
          %v1291 = vrot.slane %v1289, 3
          %v1294 = vsel %vm1132, %v1076, %v1122
          %v1295 = vsel %vm1136, %v1076, %v1122
          %v1297 = vrot.slane %v1295, 1
          %v1298 = vsel %vm1140, %v1076, %v1122
          %v1300 = vrot.slane %v1298, 2
          %v1301 = vsel %vm1144, %v1076, %v1122
          %v1303 = vrot.slane %v1301, 3
          %v1306 = vsel %vm1132, %v1077, %v1123
          %v1307 = vsel %vm1136, %v1077, %v1123
          %v1309 = vrot.slane %v1307, 1
          %v1310 = vsel %vm1140, %v1077, %v1123
          %v1312 = vrot.slane %v1310, 2
          %v1313 = vsel %vm1144, %v1077, %v1123
          %v1315 = vrot.slane %v1313, 3
          %v1318 = vsel %vm1132, %v1078, %v1124
          %v1319 = vsel %vm1136, %v1078, %v1124
          %v1321 = vrot.slane %v1319, 1
          %v1322 = vsel %vm1140, %v1078, %v1124
          %v1324 = vrot.slane %v1322, 2
          %v1325 = vsel %vm1144, %v1078, %v1124
          %v1327 = vrot.slane %v1325, 3
          %v1330 = vsel %vm1132, %v1079, %v1125
          %v1331 = vsel %vm1136, %v1079, %v1125
          %v1333 = vrot.slane %v1331, 1
          %v1334 = vsel %vm1140, %v1079, %v1125
          %v1336 = vrot.slane %v1334, 2
          %v1337 = vsel %vm1144, %v1079, %v1125
          %v1339 = vrot.slane %v1337, 3
          %v1342 = vsel %vm1132, %v1080, %v1126
          %v1343 = vsel %vm1136, %v1080, %v1126
          %v1345 = vrot.slane %v1343, 1
          %v1346 = vsel %vm1140, %v1080, %v1126
          %v1348 = vrot.slane %v1346, 2
          %v1349 = vsel %vm1144, %v1080, %v1126
          %v1351 = vrot.slane %v1349, 3
          %v1354 = vsel %vm1132, %v1081, %v1127
          %v1355 = vsel %vm1136, %v1081, %v1127
          %v1357 = vrot.slane %v1355, 1
          %v1358 = vsel %vm1140, %v1081, %v1127
          %v1360 = vrot.slane %v1358, 2
          %v1361 = vsel %vm1144, %v1081, %v1127
          %v1363 = vrot.slane %v1361, 3
          %v1366 = vsel %vm1132, %v1082, %v1128
          %v1367 = vsel %vm1136, %v1082, %v1128
          %v1369 = vrot.slane %v1367, 1
          %v1370 = vsel %vm1140, %v1082, %v1128
          %v1372 = vrot.slane %v1370, 2
          %v1373 = vsel %vm1144, %v1082, %v1128
          %v1375 = vrot.slane %v1373, 3
          %v1378 = vsel %vm1132, %v1083, %v1129
          %v1379 = vsel %vm1136, %v1083, %v1129
          %v1381 = vrot.slane %v1379, 1
          %v1382 = vsel %vm1140, %v1083, %v1129
          %v1384 = vrot.slane %v1382, 2
          %v1385 = vsel %vm1144, %v1083, %v1129
          %v1387 = vrot.slane %v1385, 3
          %v1390 = vsel %vm1132, %v1084, %v1130
          %v1391 = vsel %vm1136, %v1084, %v1130
          %v1393 = vrot.slane %v1391, 1
          %v1394 = vsel %vm1140, %v1084, %v1130
          %v1396 = vrot.slane %v1394, 2
          %v1397 = vsel %vm1144, %v1084, %v1130
          %v1399 = vrot.slane %v1397, 3
          %v1402 = vsel %vm1132, %v1085, %v1131
          %v1403 = vsel %vm1136, %v1085, %v1131
          %v1405 = vrot.slane %v1403, 1
          %v1406 = vld [vmem:[#allocation5] sm:$0xf]
          %v1407 = vld [vmem:[#allocation5 + $0x4] sm:$0xf]
          %v1408 = vld [vmem:[#allocation5 + $0x8] sm:$0xf]
          %v1409 = vld [vmem:[#allocation5 + $0xc] sm:$0xf]
          %v1410 = vld [vmem:[#allocation5 + $0x10] sm:$0xf]
          %v1411 = vld [vmem:[#allocation5 + $0x14] sm:$0xf]
          %v1412 = vld [vmem:[#allocation5 + $0x18] sm:$0xf]
          %v1413 = vld [vmem:[#allocation5 + $0x1c] sm:$0xf]
          %v1414 = vld [vmem:[#allocation5 + $0x20] sm:$0xf]
          %v1415 = vld [vmem:[#allocation5 + $0x24] sm:$0xf]
          %v1416 = vld [vmem:[#allocation5 + $0x28] sm:$0xf]
          %v1417 = vld [vmem:[#allocation5 + $0x2c] sm:$0xf]
          %v1418 = vld [vmem:[#allocation5 + $0x30] sm:$0xf]
          %v1419 = vld [vmem:[#allocation5 + $0x34] sm:$0xf]
          %v1420 = vld [vmem:[#allocation5 + $0x38] sm:$0xf]
          %v1421 = vld [vmem:[#allocation5 + $0x3c] sm:$0xf]
          %vm1422 = vsmask.f32 256
          %vm1423 = vsmask.f32 1284
          %vm1424 = vmor %vm1422, %vm1423
          %vm1425 = vsmask.f32 2312
          %vm1426 = vmor %vm1424, %vm1425
          %vm1427 = vsmask.f32 3340
          %vm1428 = vmor %vm1426, %vm1427
          %vm1429 = vsmask.f32 4368
          %vm1430 = vmor %vm1428, %vm1429
          %vm1431 = vsmask.f32 5396
          %vm1432 = vmor %vm1430, %vm1431
          %vm1433 = vsmask.f32 6424
          %vm1434 = vmor %vm1432, %vm1433
          %vm1435 = vsmask.f32 7452
          %vm1436 = vmor %vm1434, %vm1435
          %v1437 = vshrl.u32 %v1135, 16
          %v1439 = vrot.slane %v1437, 7
          %v1440 = vrot.slane %v1439, 1
          %v1442 = vshll.u32 %v1139, 16
          %v1444 = vsel %vm1436, %v1440, %v1442
          %v1445 = vshrl.u32 %v1139, 16
          %v1447 = vrot.slane %v1445, 7
          %v1448 = vrot.slane %v1447, 1
          %v1450 = vshll.u32 %v1143, 16
          %v1452 = vsel %vm1436, %v1448, %v1450
          %v1453 = vshrl.u32 %v1143, 16
          %v1455 = vrot.slane %v1453, 7
          %v1456 = vrot.slane %v1455, 1
          %v1458 = vshll.u32 %v1147, 16
          %v1460 = vsel %vm1436, %v1456, %v1458
          %v1461 = vshrl.u32 %v1147, 16
          %v1463 = vrot.slane %v1461, 7
          %v1464 = vrot.slane %v1463, 1
          %v1465 = vshll.u32 %v1150, 16
          %v1467 = vsel %vm1436, %v1464, %v1465
          %v1468 = vshrl.u32 %v1150, 16
          %v1470 = vrot.slane %v1468, 7
          %v1471 = vrot.slane %v1470, 1
          %v1473 = vshll.u32 %v1153, 16
          %v1475 = vsel %vm1436, %v1471, %v1473
          %v1476 = vshrl.u32 %v1153, 16
          %v1478 = vrot.slane %v1476, 7
          %v1479 = vrot.slane %v1478, 1
          %v1481 = vshll.u32 %v1156, 16
          %v1483 = vsel %vm1436, %v1479, %v1481
          %v1484 = vshrl.u32 %v1156, 16
          %v1486 = vrot.slane %v1484, 7
          %v1487 = vrot.slane %v1486, 1
          %v1489 = vshll.u32 %v1159, 16
          %v1491 = vsel %vm1436, %v1487, %v1489
          %v1492 = vshrl.u32 %v1159, 16
          %v1494 = vrot.slane %v1492, 7
          %v1495 = vrot.slane %v1494, 1
          %v1496 = vshll.u32 %v1162, 16
          %v1498 = vsel %vm1436, %v1495, %v1496
          %v1500 = vshrl.u32 %v1165, 16
          %v1502 = vrot.slane %v1500, 7
          %v1503 = vrot.slane %v1502, 1
          %v1505 = vshll.u32 %v1168, 16
          %v1507 = vsel %vm1436, %v1503, %v1505
          %v1508 = vshrl.u32 %v1168, 16
          %v1510 = vrot.slane %v1508, 7
          %v1511 = vrot.slane %v1510, 1
          %v1513 = vshll.u32 %v1171, 16
          %v1515 = vsel %vm1436, %v1511, %v1513
          %v1516 = vshrl.u32 %v1171, 16
          %v1518 = vrot.slane %v1516, 7
          %v1519 = vrot.slane %v1518, 1
          %v1520 = vshll.u32 %v1174, 16
          %v1522 = vsel %vm1436, %v1519, %v1520
          %v1523 = vshrl.u32 %v1174, 16
          %v1525 = vrot.slane %v1523, 7
          %v1526 = vrot.slane %v1525, 1
          %v1528 = vshll.u32 %v1177, 16
          %v1530 = vsel %vm1436, %v1526, %v1528
          %v1531 = vshrl.u32 %v1177, 16
          %v1533 = vrot.slane %v1531, 7
          %v1534 = vrot.slane %v1533, 1
          %v1536 = vshll.u32 %v1180, 16
          %v1538 = vsel %vm1436, %v1534, %v1536
          %v1539 = vshrl.u32 %v1180, 16
          %v1541 = vrot.slane %v1539, 7
          %v1542 = vrot.slane %v1541, 1
          %v1544 = vshll.u32 %v1183, 16
          %v1546 = vsel %vm1436, %v1542, %v1544
          %v1547 = vshrl.u32 %v1183, 16
          %v1549 = vrot.slane %v1547, 7
          %v1550 = vrot.slane %v1549, 1
          %v1551 = vshll.u32 %v1186, 16
          %v1553 = vsel %vm1436, %v1550, %v1551
          %v1554 = vshrl.u32 %v1186, 16
          %v1556 = vrot.slane %v1554, 7
          %v1557 = vrot.slane %v1556, 1
          %v1559 = vshll.u32 %v1189, 16
          %v1561 = vsel %vm1436, %v1557, %v1559
          %v1563 = vshrl.u32 %v1192, 16
          %v1565 = vrot.slane %v1563, 7
          %v1566 = vrot.slane %v1565, 1
          %v1568 = vshll.u32 %v1195, 16
          %v1570 = vsel %vm1436, %v1566, %v1568
          %v1571 = vshrl.u32 %v1195, 16
          %v1573 = vrot.slane %v1571, 7
          %v1574 = vrot.slane %v1573, 1
          %v1575 = vshll.u32 %v1198, 16
          %v1577 = vsel %vm1436, %v1574, %v1575
          %v1578 = vshrl.u32 %v1198, 16
          %v1580 = vrot.slane %v1578, 7
          %v1581 = vrot.slane %v1580, 1
          %v1583 = vshll.u32 %v1201, 16
          %v1585 = vsel %vm1436, %v1581, %v1583
          %v1586 = vshrl.u32 %v1201, 16
          %v1588 = vrot.slane %v1586, 7
          %v1589 = vrot.slane %v1588, 1
          %v1591 = vshll.u32 %v1204, 16
          %v1593 = vsel %vm1436, %v1589, %v1591
          %v1594 = vshrl.u32 %v1204, 16
          %v1596 = vrot.slane %v1594, 7
          %v1597 = vrot.slane %v1596, 1
          %v1599 = vshll.u32 %v1207, 16
          %v1601 = vsel %vm1436, %v1597, %v1599
          %v1602 = vshrl.u32 %v1207, 16
          %v1604 = vrot.slane %v1602, 7
          %v1605 = vrot.slane %v1604, 1
          %v1606 = vshll.u32 %v1210, 16
          %v1608 = vsel %vm1436, %v1605, %v1606
          %v1609 = vshrl.u32 %v1210, 16
          %v1611 = vrot.slane %v1609, 7
          %v1612 = vrot.slane %v1611, 1
          %v1614 = vshll.u32 %v1213, 16
          %v1616 = vsel %vm1436, %v1612, %v1614
          %v1617 = vshrl.u32 %v1213, 16
          %v1619 = vrot.slane %v1617, 7
          %v1620 = vrot.slane %v1619, 1
          %v1622 = vshll.u32 %v1216, 16
          %v1624 = vsel %vm1436, %v1620, %v1622
          %v1626 = vshrl.u32 %v1219, 16
          %v1628 = vrot.slane %v1626, 7
          %v1629 = vrot.slane %v1628, 1
          %v1630 = vshll.u32 %v1222, 16
          %v1632 = vsel %vm1436, %v1629, %v1630
          %v1633 = vshrl.u32 %v1222, 16
          %v1635 = vrot.slane %v1633, 7
          %v1636 = vrot.slane %v1635, 1
          %v1638 = vshll.u32 %v1225, 16
          %v1640 = vsel %vm1436, %v1636, %v1638
          %v1641 = vshrl.u32 %v1225, 16
          %v1643 = vrot.slane %v1641, 7
          %v1644 = vrot.slane %v1643, 1
          %v1646 = vshll.u32 %v1228, 16
          %v1648 = vsel %vm1436, %v1644, %v1646
          %v1649 = vshrl.u32 %v1228, 16
          %v1651 = vrot.slane %v1649, 7
          %v1652 = vrot.slane %v1651, 1
          %v1654 = vshll.u32 %v1231, 16
          %v1656 = vsel %vm1436, %v1652, %v1654
          %v1657 = vshrl.u32 %v1231, 16
          %v1659 = vrot.slane %v1657, 7
          %v1660 = vrot.slane %v1659, 1
          %v1661 = vshll.u32 %v1234, 16
          %v1663 = vsel %vm1436, %v1660, %v1661
          %v1664 = vshrl.u32 %v1234, 16
          %v1666 = vrot.slane %v1664, 7
          %v1667 = vrot.slane %v1666, 1
          %v1669 = vshll.u32 %v1237, 16
          %v1671 = vsel %vm1436, %v1667, %v1669
          %v1672 = vshrl.u32 %v1237, 16
          %v1674 = vrot.slane %v1672, 7
          %v1675 = vrot.slane %v1674, 1
          %v1677 = vshll.u32 %v1240, 16
          %v1679 = vsel %vm1436, %v1675, %v1677
          %v1680 = vshrl.u32 %v1240, 16
          %v1682 = vrot.slane %v1680, 7
          %v1683 = vrot.slane %v1682, 1
          %v1685 = vshll.u32 %v1243, 16
          %v1687 = vsel %vm1436, %v1683, %v1685
          %v1688 = vshrl.u32 %v1246, 16
          %v1690 = vrot.slane %v1688, 7
          %v1691 = vrot.slane %v1690, 1
          %v1693 = vshll.u32 %v1249, 16
          %v1695 = vsel %vm1436, %v1691, %v1693
          %v1696 = vshrl.u32 %v1249, 16
          %v1698 = vrot.slane %v1696, 7
          %v1699 = vrot.slane %v1698, 1
          %v1701 = vshll.u32 %v1252, 16
          %v1703 = vsel %vm1436, %v1699, %v1701
          %v1704 = vshrl.u32 %v1252, 16
          %v1706 = vrot.slane %v1704, 7
          %v1707 = vrot.slane %v1706, 1
          %v1709 = vshll.u32 %v1255, 16
          %v1711 = vsel %vm1436, %v1707, %v1709
          %v1712 = vshrl.u32 %v1255, 16
          %v1714 = vrot.slane %v1712, 7
          %v1715 = vrot.slane %v1714, 1
          %v1716 = vshll.u32 %v1258, 16
          %v1718 = vsel %vm1436, %v1715, %v1716
          %v1719 = vshrl.u32 %v1258, 16
          %v1721 = vrot.slane %v1719, 7
          %v1722 = vrot.slane %v1721, 1
          %v1724 = vshll.u32 %v1261, 16
          %v1726 = vsel %vm1436, %v1722, %v1724
          %v1727 = vshrl.u32 %v1261, 16
          %v1729 = vrot.slane %v1727, 7
          %v1730 = vrot.slane %v1729, 1
          %v1732 = vshll.u32 %v1264, 16
          %v1734 = vsel %vm1436, %v1730, %v1732
          %v1735 = vshrl.u32 %v1264, 16
          %v1737 = vrot.slane %v1735, 7
          %v1738 = vrot.slane %v1737, 1
          %v1740 = vshll.u32 %v1267, 16
          %v1742 = vsel %vm1436, %v1738, %v1740
          %v1743 = vshrl.u32 %v1267, 16
          %v1745 = vrot.slane %v1743, 7
          %v1746 = vrot.slane %v1745, 1
          %v1747 = vshll.u32 %v1270, 16
          %v1749 = vsel %vm1436, %v1746, %v1747
          %v1751 = vshrl.u32 %v1273, 16
          %v1753 = vrot.slane %v1751, 7
          %v1754 = vrot.slane %v1753, 1
          %v1756 = vshll.u32 %v1276, 16
          %v1758 = vsel %vm1436, %v1754, %v1756
          %v1759 = vshrl.u32 %v1276, 16
          %v1761 = vrot.slane %v1759, 7
          %v1762 = vrot.slane %v1761, 1
          %v1764 = vshll.u32 %v1279, 16
          %v1766 = vsel %vm1436, %v1762, %v1764
          %v1767 = vshrl.u32 %v1279, 16
          %v1769 = vrot.slane %v1767, 7
          %v1770 = vrot.slane %v1769, 1
          %v1771 = vshll.u32 %v1282, 16
          %v1773 = vsel %vm1436, %v1770, %v1771
          %v1774 = vshrl.u32 %v1282, 16
          %v1776 = vrot.slane %v1774, 7
          %v1777 = vrot.slane %v1776, 1
          %v1779 = vshll.u32 %v1285, 16
          %v1781 = vsel %vm1436, %v1777, %v1779
          %v1782 = vshrl.u32 %v1285, 16
          %v1784 = vrot.slane %v1782, 7
          %v1785 = vrot.slane %v1784, 1
          %v1787 = vshll.u32 %v1288, 16
          %v1789 = vsel %vm1436, %v1785, %v1787
          %v1790 = vshrl.u32 %v1288, 16
          %v1792 = vrot.slane %v1790, 7
          %v1793 = vrot.slane %v1792, 1
          %v1795 = vshll.u32 %v1291, 16
          %v1797 = vsel %vm1436, %v1793, %v1795
          %v1798 = vshrl.u32 %v1291, 16
          %v1800 = vrot.slane %v1798, 7
          %v1801 = vrot.slane %v1800, 1
          %v1802 = vshll.u32 %v1294, 16
          %v1804 = vsel %vm1436, %v1801, %v1802
          %v1805 = vshrl.u32 %v1294, 16
          %v1807 = vrot.slane %v1805, 7
          %v1808 = vrot.slane %v1807, 1
          %v1810 = vshll.u32 %v1297, 16
          %v1812 = vsel %vm1436, %v1808, %v1810
          %v1814 = vshrl.u32 %v1300, 16
          %v1816 = vrot.slane %v1814, 7
          %v1817 = vrot.slane %v1816, 1
          %v1819 = vshll.u32 %v1303, 16
          %v1821 = vsel %vm1436, %v1817, %v1819
          %v1822 = vshrl.u32 %v1303, 16
          %v1824 = vrot.slane %v1822, 7
          %v1825 = vrot.slane %v1824, 1
          %v1826 = vshll.u32 %v1306, 16
          %v1828 = vsel %vm1436, %v1825, %v1826
          %v1829 = vshrl.u32 %v1306, 16
          %v1831 = vrot.slane %v1829, 7
          %v1832 = vrot.slane %v1831, 1
          %v1834 = vshll.u32 %v1309, 16
          %v1836 = vsel %vm1436, %v1832, %v1834
          %v1837 = vshrl.u32 %v1309, 16
          %v1839 = vrot.slane %v1837, 7
          %v1840 = vrot.slane %v1839, 1
          %v1842 = vshll.u32 %v1312, 16
          %v1844 = vsel %vm1436, %v1840, %v1842
          %v1845 = vshrl.u32 %v1312, 16
          %v1847 = vrot.slane %v1845, 7
          %v1848 = vrot.slane %v1847, 1
          %v1850 = vshll.u32 %v1315, 16
          %v1852 = vsel %vm1436, %v1848, %v1850
          %v1853 = vshrl.u32 %v1315, 16
          %v1855 = vrot.slane %v1853, 7
          %v1856 = vrot.slane %v1855, 1
          %v1857 = vshll.u32 %v1318, 16
          %v1859 = vsel %vm1436, %v1856, %v1857
          %v1860 = vshrl.u32 %v1318, 16
          %v1862 = vrot.slane %v1860, 7
          %v1863 = vrot.slane %v1862, 1
          %v1865 = vshll.u32 %v1321, 16
          %v1867 = vsel %vm1436, %v1863, %v1865
          %v1868 = vshrl.u32 %v1321, 16
          %v1870 = vrot.slane %v1868, 7
          %v1871 = vrot.slane %v1870, 1
          %v1873 = vshll.u32 %v1324, 16
          %v1875 = vsel %vm1436, %v1871, %v1873
          %v1877 = vshrl.u32 %v1327, 16
          %v1879 = vrot.slane %v1877, 7
          %v1880 = vrot.slane %v1879, 1
          %v1881 = vshll.u32 %v1330, 16
          %v1883 = vsel %vm1436, %v1880, %v1881
          %v1884 = vshrl.u32 %v1330, 16
          %v1886 = vrot.slane %v1884, 7
          %v1887 = vrot.slane %v1886, 1
          %v1889 = vshll.u32 %v1333, 16
          %v1891 = vsel %vm1436, %v1887, %v1889
          %v1892 = vshrl.u32 %v1333, 16
          %v1894 = vrot.slane %v1892, 7
          %v1895 = vrot.slane %v1894, 1
          %v1897 = vshll.u32 %v1336, 16
          %v1899 = vsel %vm1436, %v1895, %v1897
          %v1900 = vshrl.u32 %v1336, 16
          %v1902 = vrot.slane %v1900, 7
          %v1903 = vrot.slane %v1902, 1
          %v1905 = vshll.u32 %v1339, 16
          %v1907 = vsel %vm1436, %v1903, %v1905
          %v1908 = vshrl.u32 %v1339, 16
          %v1910 = vrot.slane %v1908, 7
          %v1911 = vrot.slane %v1910, 1
          %v1912 = vshll.u32 %v1342, 16
          %v1914 = vsel %vm1436, %v1911, %v1912
          %v1915 = vshrl.u32 %v1342, 16
          %v1917 = vrot.slane %v1915, 7
          %v1918 = vrot.slane %v1917, 1
          %v1920 = vshll.u32 %v1345, 16
          %v1922 = vsel %vm1436, %v1918, %v1920
          %v1923 = vshrl.u32 %v1345, 16
          %v1925 = vrot.slane %v1923, 7
          %v1926 = vrot.slane %v1925, 1
          %v1928 = vshll.u32 %v1348, 16
          %v1930 = vsel %vm1436, %v1926, %v1928
          %v1931 = vshrl.u32 %v1348, 16
          %v1933 = vrot.slane %v1931, 7
          %v1934 = vrot.slane %v1933, 1
          %v1936 = vshll.u32 %v1351, 16
          %v1938 = vsel %vm1436, %v1934, %v1936
          %s1939 = scalar_lea.vmem [#allocation5], 64
          %v1940 = vld [vmem:[%s1939] sm:$0xf]
          %v1941 = vld [vmem:[%s1939 + $0x4] sm:$0xf]
          %v1942 = vld [vmem:[%s1939 + $0x8] sm:$0xf]
          %v1943 = vld [vmem:[%s1939 + $0xc] sm:$0xf]
          %v1944 = vld [vmem:[%s1939 + $0x10] sm:$0xf]
          %v1945 = vld [vmem:[%s1939 + $0x14] sm:$0xf]
          %v1946 = vld [vmem:[%s1939 + $0x18] sm:$0xf]
          %v1947 = vld [vmem:[%s1939 + $0x1c] sm:$0xf]
          %v1948 = vld [vmem:[%s1939 + $0x20] sm:$0xf]
          %v1949 = vld [vmem:[%s1939 + $0x24] sm:$0xf]
          %v1950 = vld [vmem:[%s1939 + $0x28] sm:$0xf]
          %v1951 = vld [vmem:[%s1939 + $0x2c] sm:$0xf]
          %v1952 = vld [vmem:[%s1939 + $0x30] sm:$0xf]
          %v1953 = vld [vmem:[%s1939 + $0x34] sm:$0xf]
          %v1954 = vld [vmem:[%s1939 + $0x38] sm:$0xf]
          %v1955 = vld [vmem:[%s1939 + $0x3c] sm:$0xf]
          %1957 = vst [vmem:[#allocation1] ss:$9 sm:$0xff] %v1444
          %s1959 = scalar_lea.vmem [#allocation1], 1
          %1960 = vst [vmem:[%s1959] ss:$9 sm:$0xff] %v1452
          %s1962 = scalar_lea.vmem [#allocation1], 2
          %1963 = vst [vmem:[%s1962] ss:$9 sm:$0xff] %v1460
          %s1965 = scalar_lea.vmem [#allocation1], 3
          %1966 = vst [vmem:[%s1965] ss:$9 sm:$0xff] %v1467
          %s1968 = scalar_lea.vmem [#allocation1], 4
          %1969 = vst [vmem:[%s1968] ss:$9 sm:$0xff] %v1475
          %s1971 = scalar_lea.vmem [#allocation1], 5
          %1972 = vst [vmem:[%s1971] ss:$9 sm:$0xff] %v1483
          %s1974 = scalar_lea.vmem [#allocation1], 6
          %1975 = vst [vmem:[%s1974] ss:$9 sm:$0xff] %v1491
          %s1977 = scalar_lea.vmem [#allocation1], 7
          %1978 = vst [vmem:[%s1977] ss:$9 sm:$0xff] %v1498
          %v1979 = vld [vmem:[#allocation1] sm:$0xff]
          %1981 = vst [vmem:[#allocation1] ss:$9 sm:$0xff] %v1507
          %1983 = vst [vmem:[%s1959] ss:$9 sm:$0xff] %v1515
          %1985 = vst [vmem:[%s1962] ss:$9 sm:$0xff] %v1522
          %1987 = vst [vmem:[%s1965] ss:$9 sm:$0xff] %v1530
          %1989 = vst [vmem:[%s1968] ss:$9 sm:$0xff] %v1538
          %1991 = vst [vmem:[%s1971] ss:$9 sm:$0xff] %v1546
          %1993 = vst [vmem:[%s1974] ss:$9 sm:$0xff] %v1553
          %1995 = vst [vmem:[%s1977] ss:$9 sm:$0xff] %v1561
          %v1996 = vld [vmem:[#allocation1] sm:$0xff]
          %1998 = vst [vmem:[#allocation1] ss:$9 sm:$0xff] %v1570
          %2000 = vst [vmem:[%s1959] ss:$9 sm:$0xff] %v1577
          %2002 = vst [vmem:[%s1962] ss:$9 sm:$0xff] %v1585
          %2004 = vst [vmem:[%s1965] ss:$9 sm:$0xff] %v1593
          %2006 = vst [vmem:[%s1968] ss:$9 sm:$0xff] %v1601
          %2008 = vst [vmem:[%s1971] ss:$9 sm:$0xff] %v1608
          %2010 = vst [vmem:[%s1974] ss:$9 sm:$0xff] %v1616
          %2012 = vst [vmem:[%s1977] ss:$9 sm:$0xff] %v1624
          %v2013 = vld [vmem:[#allocation1] sm:$0xff]
          %2015 = vst [vmem:[#allocation1] ss:$9 sm:$0xff] %v1632
          %2017 = vst [vmem:[%s1959] ss:$9 sm:$0xff] %v1640
          %2019 = vst [vmem:[%s1962] ss:$9 sm:$0xff] %v1648
          %2021 = vst [vmem:[%s1965] ss:$9 sm:$0xff] %v1656
          %2023 = vst [vmem:[%s1968] ss:$9 sm:$0xff] %v1663
          %2025 = vst [vmem:[%s1971] ss:$9 sm:$0xff] %v1671
          %2027 = vst [vmem:[%s1974] ss:$9 sm:$0xff] %v1679
          %2029 = vst [vmem:[%s1977] ss:$9 sm:$0xff] %v1687
          %v2030 = vld [vmem:[#allocation1] sm:$0xff]
          %2032 = vst [vmem:[#allocation1] ss:$9 sm:$0xff] %v1695
          %2034 = vst [vmem:[%s1959] ss:$9 sm:$0xff] %v1703
          %2036 = vst [vmem:[%s1962] ss:$9 sm:$0xff] %v1711
          %2038 = vst [vmem:[%s1965] ss:$9 sm:$0xff] %v1718
          %2040 = vst [vmem:[%s1968] ss:$9 sm:$0xff] %v1726
          %2042 = vst [vmem:[%s1971] ss:$9 sm:$0xff] %v1734
          %2044 = vst [vmem:[%s1974] ss:$9 sm:$0xff] %v1742
          %2046 = vst [vmem:[%s1977] ss:$9 sm:$0xff] %v1749
          %v2047 = vld [vmem:[#allocation1] sm:$0xff]
          %2049 = vst [vmem:[#allocation1] ss:$9 sm:$0xff] %v1758
          %2051 = vst [vmem:[%s1959] ss:$9 sm:$0xff] %v1766
          %2053 = vst [vmem:[%s1962] ss:$9 sm:$0xff] %v1773
          %2055 = vst [vmem:[%s1965] ss:$9 sm:$0xff] %v1781
          %2057 = vst [vmem:[%s1968] ss:$9 sm:$0xff] %v1789
          %2059 = vst [vmem:[%s1971] ss:$9 sm:$0xff] %v1797
          %2061 = vst [vmem:[%s1974] ss:$9 sm:$0xff] %v1804
          %2063 = vst [vmem:[%s1977] ss:$9 sm:$0xff] %v1812
          %v2064 = vld [vmem:[#allocation1] sm:$0xff]
          %2066 = vst [vmem:[#allocation1] ss:$9 sm:$0xff] %v1821
          %2068 = vst [vmem:[%s1959] ss:$9 sm:$0xff] %v1828
          %2070 = vst [vmem:[%s1962] ss:$9 sm:$0xff] %v1836
          %2072 = vst [vmem:[%s1965] ss:$9 sm:$0xff] %v1844
          %2074 = vst [vmem:[%s1968] ss:$9 sm:$0xff] %v1852
          %2076 = vst [vmem:[%s1971] ss:$9 sm:$0xff] %v1859
          %2078 = vst [vmem:[%s1974] ss:$9 sm:$0xff] %v1867
          %2080 = vst [vmem:[%s1977] ss:$9 sm:$0xff] %v1875
          %v2081 = vld [vmem:[#allocation1] sm:$0xff]
          %2083 = vst [vmem:[#allocation1] ss:$9 sm:$0xff] %v1883
          %2085 = vst [vmem:[%s1959] ss:$9 sm:$0xff] %v1891
          %2087 = vst [vmem:[%s1962] ss:$9 sm:$0xff] %v1899
          %2089 = vst [vmem:[%s1965] ss:$9 sm:$0xff] %v1907
          %2091 = vst [vmem:[%s1968] ss:$9 sm:$0xff] %v1914
          %2093 = vst [vmem:[%s1971] ss:$9 sm:$0xff] %v1922
          %2095 = vst [vmem:[%s1974] ss:$9 sm:$0xff] %v1930
          %2097 = vst [vmem:[%s1977] ss:$9 sm:$0xff] %v1938
          %v2098 = vld [vmem:[#allocation1] sm:$0xff]
          %v2123 = vunpack.c.l.b16 %v1940
          %v2124 = vunpack.c.l.b16 %v1941
          %v2125 = vunpack.c.l.b16 %v1942
          %v2126 = vunpack.c.l.b16 %v1943
          %v2127 = vunpack.c.l.b16 %v1944
          %v2128 = vunpack.c.l.b16 %v1945
          %v2129 = vunpack.c.l.b16 %v1946
          %v2130 = vunpack.c.l.b16 %v1947
          %v2131 = vunpack.c.l.b16 %v1948
          %v2132 = vunpack.c.l.b16 %v1949
          %v2133 = vunpack.c.l.b16 %v1950
          %v2134 = vunpack.c.l.b16 %v1951
          %v2135 = vunpack.c.l.b16 %v1952
          %v2136 = vunpack.c.l.b16 %v1953
          %v2137 = vunpack.c.l.b16 %v1954
          %v2138 = vunpack.c.l.b16 %v1955
          %v2139 = vpack.c.b16 %v2124, %v2123
          %v2140 = vpack.c.b16 %v2126, %v2125
          %v2141 = vpack.c.b16 %v2128, %v2127
          %v2142 = vpack.c.b16 %v2130, %v2129
          %v2143 = vpack.c.b16 %v2132, %v2131
          %v2144 = vpack.c.b16 %v2134, %v2133
          %v2145 = vpack.c.b16 %v2136, %v2135
          %v2146 = vpack.c.b16 %v2138, %v2137
          %2155 = vmatpush.bf16.msra.mxu0 %v2146
          %2156 = vmatpush.bf16.msra.mxu0 %v2145
          %2157 = vmatpush.bf16.msra.mxu0 %v2144
          %2158 = vmatpush.bf16.msra.mxu0 %v2143
          %2159 = vmatpush.bf16.msra.mxu0 %v2142
          %2160 = vmatpush.bf16.msra.mxu0 %v2141
          %2161 = vmatpush.bf16.msra.mxu0 %v2140
          %2162 = vmatpush.bf16.msra.mxu0 %v2139
          %2163 = vmatmul.bf16.gmra.mxu0 %v1979
          %v2164 = vpop.f32.mrf.mxu0
          %v2165 = vadd.f32 0.0, %v2164
          %v2166 = vpop.f32.mrf.mxu0
          %v2167 = vadd.f32 0.0, %v2166
          %2168 = vmatmul.bf16.gmra.mxu0 %v1996
          %v2169 = vpop.f32.mrf.mxu0
          %v2170 = vadd.f32 0.0, %v2169
          %v2171 = vpop.f32.mrf.mxu0
          %v2172 = vadd.f32 0.0, %v2171
          %2173 = vmatmul.bf16.gmra.mxu0 %v2013
          %v2174 = vpop.f32.mrf.mxu0
          %v2175 = vadd.f32 0.0, %v2174
          %v2176 = vpop.f32.mrf.mxu0
          %v2177 = vadd.f32 0.0, %v2176
          %2178 = vmatmul.bf16.gmra.mxu0 %v2030
          %v2179 = vpop.f32.mrf.mxu0
          %v2180 = vadd.f32 0.0, %v2179
          %v2181 = vpop.f32.mrf.mxu0
          %v2182 = vadd.f32 0.0, %v2181
          %2183 = vmatmul.bf16.gmra.mxu0 %v2047
          %v2184 = vpop.f32.mrf.mxu0
          %v2185 = vadd.f32 0.0, %v2184
          %v2186 = vpop.f32.mrf.mxu0
          %v2187 = vadd.f32 0.0, %v2186
          %2188 = vmatmul.bf16.gmra.mxu0 %v2064
          %v2189 = vpop.f32.mrf.mxu0
          %v2190 = vadd.f32 0.0, %v2189
          %v2191 = vpop.f32.mrf.mxu0
          %v2192 = vadd.f32 0.0, %v2191
          %2193 = vmatmul.bf16.gmra.mxu0 %v2081
          %v2194 = vpop.f32.mrf.mxu0
          %v2195 = vadd.f32 0.0, %v2194
          %v2196 = vpop.f32.mrf.mxu0
          %v2197 = vadd.f32 0.0, %v2196
          %2198 = vmatmul.bf16.gmra.mxu0 %v2098
          %v2199 = vpop.f32.mrf.mxu0
          %v2200 = vadd.f32 0.0, %v2199
          %v2201 = vpop.f32.mrf.mxu0
          %v2202 = vadd.f32 0.0, %v2201
          %2203 = vdwg.mxu0
          %2204 = vst [vmem:[#allocation1] ss:$9 sm:$0xff] %v1135
          %s2205 = scalar_lea.vmem [#allocation1], 1
          %2206 = vst [vmem:[%s2205] ss:$9 sm:$0xff] %v1139
          %s2207 = scalar_lea.vmem [#allocation1], 2
          %2208 = vst [vmem:[%s2207] ss:$9 sm:$0xff] %v1143
          %s2209 = scalar_lea.vmem [#allocation1], 3
          %2210 = vst [vmem:[%s2209] ss:$9 sm:$0xff] %v1147
          %s2211 = scalar_lea.vmem [#allocation1], 4
          %2212 = vst [vmem:[%s2211] ss:$9 sm:$0xff] %v1150
          %s2213 = scalar_lea.vmem [#allocation1], 5
          %2214 = vst [vmem:[%s2213] ss:$9 sm:$0xff] %v1153
          %s2215 = scalar_lea.vmem [#allocation1], 6
          %2216 = vst [vmem:[%s2215] ss:$9 sm:$0xff] %v1156
          %s2217 = scalar_lea.vmem [#allocation1], 7
          %2218 = vst [vmem:[%s2217] ss:$9 sm:$0xff] %v1159
          %v2219 = vld [vmem:[#allocation1] sm:$0xff]
          %2220 = vst [vmem:[#allocation1] ss:$9 sm:$0xff] %v1165
          %2221 = vst [vmem:[%s2205] ss:$9 sm:$0xff] %v1168
          %2222 = vst [vmem:[%s2207] ss:$9 sm:$0xff] %v1171
          %2223 = vst [vmem:[%s2209] ss:$9 sm:$0xff] %v1174
          %2224 = vst [vmem:[%s2211] ss:$9 sm:$0xff] %v1177
          %2225 = vst [vmem:[%s2213] ss:$9 sm:$0xff] %v1180
          %2226 = vst [vmem:[%s2215] ss:$9 sm:$0xff] %v1183
          %2227 = vst [vmem:[%s2217] ss:$9 sm:$0xff] %v1186
          %v2228 = vld [vmem:[#allocation1] sm:$0xff]
          %2229 = vst [vmem:[#allocation1] ss:$9 sm:$0xff] %v1192
          %2230 = vst [vmem:[%s2205] ss:$9 sm:$0xff] %v1195
          %2231 = vst [vmem:[%s2207] ss:$9 sm:$0xff] %v1198
          %2232 = vst [vmem:[%s2209] ss:$9 sm:$0xff] %v1201
          %2233 = vst [vmem:[%s2211] ss:$9 sm:$0xff] %v1204
          %2234 = vst [vmem:[%s2213] ss:$9 sm:$0xff] %v1207
          %2235 = vst [vmem:[%s2215] ss:$9 sm:$0xff] %v1210
          %2236 = vst [vmem:[%s2217] ss:$9 sm:$0xff] %v1213
          %v2237 = vld [vmem:[#allocation1] sm:$0xff]
          %2238 = vst [vmem:[#allocation1] ss:$9 sm:$0xff] %v1219
          %2239 = vst [vmem:[%s2205] ss:$9 sm:$0xff] %v1222
          %2240 = vst [vmem:[%s2207] ss:$9 sm:$0xff] %v1225
          %2241 = vst [vmem:[%s2209] ss:$9 sm:$0xff] %v1228
          %2242 = vst [vmem:[%s2211] ss:$9 sm:$0xff] %v1231
          %2243 = vst [vmem:[%s2213] ss:$9 sm:$0xff] %v1234
          %2244 = vst [vmem:[%s2215] ss:$9 sm:$0xff] %v1237
          %2245 = vst [vmem:[%s2217] ss:$9 sm:$0xff] %v1240
          %v2246 = vld [vmem:[#allocation1] sm:$0xff]
          %2247 = vst [vmem:[#allocation1] ss:$9 sm:$0xff] %v1246
          %2248 = vst [vmem:[%s2205] ss:$9 sm:$0xff] %v1249
          %2249 = vst [vmem:[%s2207] ss:$9 sm:$0xff] %v1252
          %2250 = vst [vmem:[%s2209] ss:$9 sm:$0xff] %v1255
          %2251 = vst [vmem:[%s2211] ss:$9 sm:$0xff] %v1258
          %2252 = vst [vmem:[%s2213] ss:$9 sm:$0xff] %v1261
          %2253 = vst [vmem:[%s2215] ss:$9 sm:$0xff] %v1264
          %2254 = vst [vmem:[%s2217] ss:$9 sm:$0xff] %v1267
          %v2255 = vld [vmem:[#allocation1] sm:$0xff]
          %2256 = vst [vmem:[#allocation1] ss:$9 sm:$0xff] %v1273
          %2257 = vst [vmem:[%s2205] ss:$9 sm:$0xff] %v1276
          %2258 = vst [vmem:[%s2207] ss:$9 sm:$0xff] %v1279
          %2259 = vst [vmem:[%s2209] ss:$9 sm:$0xff] %v1282
          %2260 = vst [vmem:[%s2211] ss:$9 sm:$0xff] %v1285
          %2261 = vst [vmem:[%s2213] ss:$9 sm:$0xff] %v1288
          %2262 = vst [vmem:[%s2215] ss:$9 sm:$0xff] %v1291
          %2263 = vst [vmem:[%s2217] ss:$9 sm:$0xff] %v1294
          %v2264 = vld [vmem:[#allocation1] sm:$0xff]
          %2265 = vst [vmem:[#allocation1] ss:$9 sm:$0xff] %v1300
          %2266 = vst [vmem:[%s2205] ss:$9 sm:$0xff] %v1303
          %2267 = vst [vmem:[%s2207] ss:$9 sm:$0xff] %v1306
          %2268 = vst [vmem:[%s2209] ss:$9 sm:$0xff] %v1309
          %2269 = vst [vmem:[%s2211] ss:$9 sm:$0xff] %v1312
          %2270 = vst [vmem:[%s2213] ss:$9 sm:$0xff] %v1315
          %2271 = vst [vmem:[%s2215] ss:$9 sm:$0xff] %v1318
          %2272 = vst [vmem:[%s2217] ss:$9 sm:$0xff] %v1321
          %v2273 = vld [vmem:[#allocation1] sm:$0xff]
          %2274 = vst [vmem:[#allocation1] ss:$9 sm:$0xff] %v1327
          %2275 = vst [vmem:[%s2205] ss:$9 sm:$0xff] %v1330
          %2276 = vst [vmem:[%s2207] ss:$9 sm:$0xff] %v1333
          %2277 = vst [vmem:[%s2209] ss:$9 sm:$0xff] %v1336
          %2278 = vst [vmem:[%s2211] ss:$9 sm:$0xff] %v1339
          %2279 = vst [vmem:[%s2213] ss:$9 sm:$0xff] %v1342
          %2280 = vst [vmem:[%s2215] ss:$9 sm:$0xff] %v1345
          %2281 = vst [vmem:[%s2217] ss:$9 sm:$0xff] %v1348
          %v2282 = vld [vmem:[#allocation1] sm:$0xff]
          %v2307 = vunpack.c.l.b16 %v1406
          %v2308 = vunpack.c.l.b16 %v1407
          %v2309 = vunpack.c.l.b16 %v1408
          %v2310 = vunpack.c.l.b16 %v1409
          %v2311 = vunpack.c.l.b16 %v1410
          %v2312 = vunpack.c.l.b16 %v1411
          %v2313 = vunpack.c.l.b16 %v1412
          %v2314 = vunpack.c.l.b16 %v1413
          %v2315 = vunpack.c.l.b16 %v1414
          %v2316 = vunpack.c.l.b16 %v1415
          %v2317 = vunpack.c.l.b16 %v1416
          %v2318 = vunpack.c.l.b16 %v1417
          %v2319 = vunpack.c.l.b16 %v1418
          %v2320 = vunpack.c.l.b16 %v1419
          %v2321 = vunpack.c.l.b16 %v1420
          %v2322 = vunpack.c.l.b16 %v1421
          %v2323 = vpack.c.b16 %v2308, %v2307
          %v2324 = vpack.c.b16 %v2310, %v2309
          %v2325 = vpack.c.b16 %v2312, %v2311
          %v2326 = vpack.c.b16 %v2314, %v2313
          %v2327 = vpack.c.b16 %v2316, %v2315
          %v2328 = vpack.c.b16 %v2318, %v2317
          %v2329 = vpack.c.b16 %v2320, %v2319
          %v2330 = vpack.c.b16 %v2322, %v2321
          %2339 = vmatpush.bf16.msra.mxu0 %v2330
          %2340 = vmatpush.bf16.msra.mxu0 %v2329
          %2341 = vmatpush.bf16.msra.mxu0 %v2328
          %2342 = vmatpush.bf16.msra.mxu0 %v2327
          %2343 = vmatpush.bf16.msra.mxu0 %v2326
          %2344 = vmatpush.bf16.msra.mxu0 %v2325
          %2345 = vmatpush.bf16.msra.mxu0 %v2324
          %2346 = vmatpush.bf16.msra.mxu0 %v2323
          %2347 = vmatmul.bf16.gmra.mxu0 %v2219
          %v2348 = vpop.f32.mrf.mxu0
          %v2349 = vadd.f32 %v2165, %v2348
          %v2350 = vpop.f32.mrf.mxu0
          %v2351 = vadd.f32 %v2167, %v2350
          %2352 = vmatmul.bf16.gmra.mxu0 %v2228
          %v2353 = vpop.f32.mrf.mxu0
          %v2354 = vadd.f32 %v2170, %v2353
          %v2355 = vpop.f32.mrf.mxu0
          %v2356 = vadd.f32 %v2172, %v2355
          %2357 = vmatmul.bf16.gmra.mxu0 %v2237
          %v2358 = vpop.f32.mrf.mxu0
          %v2359 = vadd.f32 %v2175, %v2358
          %v2360 = vpop.f32.mrf.mxu0
          %v2361 = vadd.f32 %v2177, %v2360
          %2362 = vmatmul.bf16.gmra.mxu0 %v2246
          %v2363 = vpop.f32.mrf.mxu0
          %v2364 = vadd.f32 %v2180, %v2363
          %v2365 = vpop.f32.mrf.mxu0
          %v2366 = vadd.f32 %v2182, %v2365
          %2367 = vmatmul.bf16.gmra.mxu0 %v2255
          %v2368 = vpop.f32.mrf.mxu0
          %v2369 = vadd.f32 %v2185, %v2368
          %v2370 = vpop.f32.mrf.mxu0
          %v2371 = vadd.f32 %v2187, %v2370
          %2372 = vmatmul.bf16.gmra.mxu0 %v2264
          %v2373 = vpop.f32.mrf.mxu0
          %v2374 = vadd.f32 %v2190, %v2373
          %v2375 = vpop.f32.mrf.mxu0
          %v2376 = vadd.f32 %v2192, %v2375
          %2377 = vmatmul.bf16.gmra.mxu0 %v2273
          %v2378 = vpop.f32.mrf.mxu0
          %v2379 = vadd.f32 %v2195, %v2378
          %v2380 = vpop.f32.mrf.mxu0
          %v2381 = vadd.f32 %v2197, %v2380
          %2382 = vmatmul.bf16.gmra.mxu0 %v2282
          %v2383 = vpop.f32.mrf.mxu0
          %v2384 = vadd.f32 %v2200, %v2383
          %v2385 = vpop.f32.mrf.mxu0
          %v2386 = vadd.f32 %v2202, %v2385
          %2387 = vdwg.mxu0
          %s2388 = scalar_lea.vmem [#allocation5], 128
          %v2389 = vld [vmem:[%s2388] sm:$0xf]
          %v2390 = vld [vmem:[%s2388 + $0x4] sm:$0xf]
          %v2391 = vld [vmem:[%s2388 + $0x8] sm:$0xf]
          %v2392 = vld [vmem:[%s2388 + $0xc] sm:$0xf]
          %v2393 = vld [vmem:[%s2388 + $0x10] sm:$0xf]
          %v2394 = vld [vmem:[%s2388 + $0x14] sm:$0xf]
          %v2395 = vld [vmem:[%s2388 + $0x18] sm:$0xf]
          %v2396 = vld [vmem:[%s2388 + $0x1c] sm:$0xf]
          %v2397 = vld [vmem:[%s2388 + $0x20] sm:$0xf]
          %v2398 = vld [vmem:[%s2388 + $0x24] sm:$0xf]
          %v2399 = vld [vmem:[%s2388 + $0x28] sm:$0xf]
          %v2400 = vld [vmem:[%s2388 + $0x2c] sm:$0xf]
          %v2401 = vld [vmem:[%s2388 + $0x30] sm:$0xf]
          %v2402 = vld [vmem:[%s2388 + $0x34] sm:$0xf]
          %v2403 = vld [vmem:[%s2388 + $0x38] sm:$0xf]
          %v2404 = vld [vmem:[%s2388 + $0x3c] sm:$0xf]
          %2405 = vst [vmem:[#allocation1] ss:$9 sm:$0xff] %v1139
          %s2406 = scalar_lea.vmem [#allocation1], 1
          %2407 = vst [vmem:[%s2406] ss:$9 sm:$0xff] %v1143
          %s2408 = scalar_lea.vmem [#allocation1], 2
          %2409 = vst [vmem:[%s2408] ss:$9 sm:$0xff] %v1147
          %s2410 = scalar_lea.vmem [#allocation1], 3
          %2411 = vst [vmem:[%s2410] ss:$9 sm:$0xff] %v1150
          %s2412 = scalar_lea.vmem [#allocation1], 4
          %2413 = vst [vmem:[%s2412] ss:$9 sm:$0xff] %v1153
          %s2414 = scalar_lea.vmem [#allocation1], 5
          %2415 = vst [vmem:[%s2414] ss:$9 sm:$0xff] %v1156
          %s2416 = scalar_lea.vmem [#allocation1], 6
          %2417 = vst [vmem:[%s2416] ss:$9 sm:$0xff] %v1159
          %s2418 = scalar_lea.vmem [#allocation1], 7
          %2419 = vst [vmem:[%s2418] ss:$9 sm:$0xff] %v1162
          %v2420 = vld [vmem:[#allocation1] sm:$0xff]
          %2421 = vst [vmem:[#allocation1] ss:$9 sm:$0xff] %v1168
          %2422 = vst [vmem:[%s2406] ss:$9 sm:$0xff] %v1171
          %2423 = vst [vmem:[%s2408] ss:$9 sm:$0xff] %v1174
          %2424 = vst [vmem:[%s2410] ss:$9 sm:$0xff] %v1177
          %2425 = vst [vmem:[%s2412] ss:$9 sm:$0xff] %v1180
          %2426 = vst [vmem:[%s2414] ss:$9 sm:$0xff] %v1183
          %2427 = vst [vmem:[%s2416] ss:$9 sm:$0xff] %v1186
          %2428 = vst [vmem:[%s2418] ss:$9 sm:$0xff] %v1189
          %v2429 = vld [vmem:[#allocation1] sm:$0xff]
          %2430 = vst [vmem:[#allocation1] ss:$9 sm:$0xff] %v1195
          %2431 = vst [vmem:[%s2406] ss:$9 sm:$0xff] %v1198
          %2432 = vst [vmem:[%s2408] ss:$9 sm:$0xff] %v1201
          %2433 = vst [vmem:[%s2410] ss:$9 sm:$0xff] %v1204
          %2434 = vst [vmem:[%s2412] ss:$9 sm:$0xff] %v1207
          %2435 = vst [vmem:[%s2414] ss:$9 sm:$0xff] %v1210
          %2436 = vst [vmem:[%s2416] ss:$9 sm:$0xff] %v1213
          %2437 = vst [vmem:[%s2418] ss:$9 sm:$0xff] %v1216
          %v2438 = vld [vmem:[#allocation1] sm:$0xff]
          %2439 = vst [vmem:[#allocation1] ss:$9 sm:$0xff] %v1222
          %2440 = vst [vmem:[%s2406] ss:$9 sm:$0xff] %v1225
          %2441 = vst [vmem:[%s2408] ss:$9 sm:$0xff] %v1228
          %2442 = vst [vmem:[%s2410] ss:$9 sm:$0xff] %v1231
          %2443 = vst [vmem:[%s2412] ss:$9 sm:$0xff] %v1234
          %2444 = vst [vmem:[%s2414] ss:$9 sm:$0xff] %v1237
          %2445 = vst [vmem:[%s2416] ss:$9 sm:$0xff] %v1240
          %2446 = vst [vmem:[%s2418] ss:$9 sm:$0xff] %v1243
          %v2447 = vld [vmem:[#allocation1] sm:$0xff]
          %2448 = vst [vmem:[#allocation1] ss:$9 sm:$0xff] %v1249
          %2449 = vst [vmem:[%s2406] ss:$9 sm:$0xff] %v1252
          %2450 = vst [vmem:[%s2408] ss:$9 sm:$0xff] %v1255
          %2451 = vst [vmem:[%s2410] ss:$9 sm:$0xff] %v1258
          %2452 = vst [vmem:[%s2412] ss:$9 sm:$0xff] %v1261
          %2453 = vst [vmem:[%s2414] ss:$9 sm:$0xff] %v1264
          %2454 = vst [vmem:[%s2416] ss:$9 sm:$0xff] %v1267
          %2455 = vst [vmem:[%s2418] ss:$9 sm:$0xff] %v1270
          %v2456 = vld [vmem:[#allocation1] sm:$0xff]
          %2457 = vst [vmem:[#allocation1] ss:$9 sm:$0xff] %v1276
          %2458 = vst [vmem:[%s2406] ss:$9 sm:$0xff] %v1279
          %2459 = vst [vmem:[%s2408] ss:$9 sm:$0xff] %v1282
          %2460 = vst [vmem:[%s2410] ss:$9 sm:$0xff] %v1285
          %2461 = vst [vmem:[%s2412] ss:$9 sm:$0xff] %v1288
          %2462 = vst [vmem:[%s2414] ss:$9 sm:$0xff] %v1291
          %2463 = vst [vmem:[%s2416] ss:$9 sm:$0xff] %v1294
          %2464 = vst [vmem:[%s2418] ss:$9 sm:$0xff] %v1297
          %v2465 = vld [vmem:[#allocation1] sm:$0xff]
          %2466 = vst [vmem:[#allocation1] ss:$9 sm:$0xff] %v1303
          %2467 = vst [vmem:[%s2406] ss:$9 sm:$0xff] %v1306
          %2468 = vst [vmem:[%s2408] ss:$9 sm:$0xff] %v1309
          %2469 = vst [vmem:[%s2410] ss:$9 sm:$0xff] %v1312
          %2470 = vst [vmem:[%s2412] ss:$9 sm:$0xff] %v1315
          %2471 = vst [vmem:[%s2414] ss:$9 sm:$0xff] %v1318
          %2472 = vst [vmem:[%s2416] ss:$9 sm:$0xff] %v1321
          %2473 = vst [vmem:[%s2418] ss:$9 sm:$0xff] %v1324
          %v2474 = vld [vmem:[#allocation1] sm:$0xff]
          %2475 = vst [vmem:[#allocation1] ss:$9 sm:$0xff] %v1330
          %2476 = vst [vmem:[%s2406] ss:$9 sm:$0xff] %v1333
          %2477 = vst [vmem:[%s2408] ss:$9 sm:$0xff] %v1336
          %2478 = vst [vmem:[%s2410] ss:$9 sm:$0xff] %v1339
          %2479 = vst [vmem:[%s2412] ss:$9 sm:$0xff] %v1342
          %2480 = vst [vmem:[%s2414] ss:$9 sm:$0xff] %v1345
          %2481 = vst [vmem:[%s2416] ss:$9 sm:$0xff] %v1348
          %2482 = vst [vmem:[%s2418] ss:$9 sm:$0xff] %v1351
          %v2483 = vld [vmem:[#allocation1] sm:$0xff]
          %v2508 = vunpack.c.l.b16 %v2389
          %v2509 = vunpack.c.l.b16 %v2390
          %v2510 = vunpack.c.l.b16 %v2391
          %v2511 = vunpack.c.l.b16 %v2392
          %v2512 = vunpack.c.l.b16 %v2393
          %v2513 = vunpack.c.l.b16 %v2394
          %v2514 = vunpack.c.l.b16 %v2395
          %v2515 = vunpack.c.l.b16 %v2396
          %v2516 = vunpack.c.l.b16 %v2397
          %v2517 = vunpack.c.l.b16 %v2398
          %v2518 = vunpack.c.l.b16 %v2399
          %v2519 = vunpack.c.l.b16 %v2400
          %v2520 = vunpack.c.l.b16 %v2401
          %v2521 = vunpack.c.l.b16 %v2402
          %v2522 = vunpack.c.l.b16 %v2403
          %v2523 = vunpack.c.l.b16 %v2404
          %v2524 = vpack.c.b16 %v2509, %v2508
          %v2525 = vpack.c.b16 %v2511, %v2510
          %v2526 = vpack.c.b16 %v2513, %v2512
          %v2527 = vpack.c.b16 %v2515, %v2514
          %v2528 = vpack.c.b16 %v2517, %v2516
          %v2529 = vpack.c.b16 %v2519, %v2518
          %v2530 = vpack.c.b16 %v2521, %v2520
          %v2531 = vpack.c.b16 %v2523, %v2522
          %2540 = vmatpush.bf16.msra.mxu0 %v2531
          %2541 = vmatpush.bf16.msra.mxu0 %v2530
          %2542 = vmatpush.bf16.msra.mxu0 %v2529
          %2543 = vmatpush.bf16.msra.mxu0 %v2528
          %2544 = vmatpush.bf16.msra.mxu0 %v2527
          %2545 = vmatpush.bf16.msra.mxu0 %v2526
          %2546 = vmatpush.bf16.msra.mxu0 %v2525
          %2547 = vmatpush.bf16.msra.mxu0 %v2524
          %2548 = vmatmul.bf16.gmra.mxu0 %v2420
          %v2549 = vpop.f32.mrf.mxu0
          %v2550 = vadd.f32 0.0, %v2549
          %v2551 = vpop.f32.mrf.mxu0
          %v2552 = vadd.f32 0.0, %v2551
          %2553 = vmatmul.bf16.gmra.mxu0 %v2429
          %v2554 = vpop.f32.mrf.mxu0
          %v2555 = vadd.f32 0.0, %v2554
          %v2556 = vpop.f32.mrf.mxu0
          %v2557 = vadd.f32 0.0, %v2556
          %2558 = vmatmul.bf16.gmra.mxu0 %v2438
          %v2559 = vpop.f32.mrf.mxu0
          %v2560 = vadd.f32 0.0, %v2559
          %v2561 = vpop.f32.mrf.mxu0
          %v2562 = vadd.f32 0.0, %v2561
          %2563 = vmatmul.bf16.gmra.mxu0 %v2447
          %v2564 = vpop.f32.mrf.mxu0
          %v2565 = vadd.f32 0.0, %v2564
          %v2566 = vpop.f32.mrf.mxu0
          %v2567 = vadd.f32 0.0, %v2566
          %2568 = vmatmul.bf16.gmra.mxu0 %v2456
          %v2569 = vpop.f32.mrf.mxu0
          %v2570 = vadd.f32 0.0, %v2569
          %v2571 = vpop.f32.mrf.mxu0
          %v2572 = vadd.f32 0.0, %v2571
          %2573 = vmatmul.bf16.gmra.mxu0 %v2465
          %v2574 = vpop.f32.mrf.mxu0
          %v2575 = vadd.f32 0.0, %v2574
          %v2576 = vpop.f32.mrf.mxu0
          %v2577 = vadd.f32 0.0, %v2576
          %2578 = vmatmul.bf16.gmra.mxu0 %v2474
          %v2579 = vpop.f32.mrf.mxu0
          %v2580 = vadd.f32 0.0, %v2579
          %v2581 = vpop.f32.mrf.mxu0
          %v2582 = vadd.f32 0.0, %v2581
          %2583 = vmatmul.bf16.gmra.mxu0 %v2483
          %v2584 = vpop.f32.mrf.mxu0
          %v2585 = vadd.f32 0.0, %v2584
          %v2586 = vpop.f32.mrf.mxu0
          %v2587 = vadd.f32 0.0, %v2586
          %2588 = vdwg.mxu0
          %v2589 = vadd.f32 %v2349, %v2550
          %v2590 = vadd.f32 %v2351, %v2552
          %v2591 = vadd.f32 %v2354, %v2555
          %v2592 = vadd.f32 %v2356, %v2557
          %v2593 = vadd.f32 %v2359, %v2560
          %v2594 = vadd.f32 %v2361, %v2562
          %v2595 = vadd.f32 %v2364, %v2565
          %v2596 = vadd.f32 %v2366, %v2567
          %v2597 = vadd.f32 %v2369, %v2570
          %v2598 = vadd.f32 %v2371, %v2572
          %v2599 = vadd.f32 %v2374, %v2575
          %v2600 = vadd.f32 %v2376, %v2577
          %v2601 = vadd.f32 %v2379, %v2580
          %v2602 = vadd.f32 %v2381, %v2582
          %v2603 = vadd.f32 %v2384, %v2585
          %v2604 = vadd.f32 %v2386, %v2587
          %s2605 = scalar_lea.vmem [#allocation5], 192
          %v2606 = vld [vmem:[%s2605] sm:$0xf]
          %v2607 = vld [vmem:[%s2605 + $0x4] sm:$0xf]
          %v2608 = vld [vmem:[%s2605 + $0x8] sm:$0xf]
          %v2609 = vld [vmem:[%s2605 + $0xc] sm:$0xf]
          %v2610 = vld [vmem:[%s2605 + $0x10] sm:$0xf]
          %v2611 = vld [vmem:[%s2605 + $0x14] sm:$0xf]
          %v2612 = vld [vmem:[%s2605 + $0x18] sm:$0xf]
          %v2613 = vld [vmem:[%s2605 + $0x1c] sm:$0xf]
          %v2614 = vld [vmem:[%s2605 + $0x20] sm:$0xf]
          %v2615 = vld [vmem:[%s2605 + $0x24] sm:$0xf]
          %v2616 = vld [vmem:[%s2605 + $0x28] sm:$0xf]
          %v2617 = vld [vmem:[%s2605 + $0x2c] sm:$0xf]
          %v2618 = vld [vmem:[%s2605 + $0x30] sm:$0xf]
          %v2619 = vld [vmem:[%s2605 + $0x34] sm:$0xf]
          %v2620 = vld [vmem:[%s2605 + $0x38] sm:$0xf]
          %v2621 = vld [vmem:[%s2605 + $0x3c] sm:$0xf]
          %2622 = vst [vmem:[#allocation1] ss:$9 sm:$0xff] %v1165
          %s2623 = scalar_lea.vmem [#allocation1], 1
          %2624 = vst [vmem:[%s2623] ss:$9 sm:$0xff] %v1168
          %s2625 = scalar_lea.vmem [#allocation1], 2
          %2626 = vst [vmem:[%s2625] ss:$9 sm:$0xff] %v1171
          %s2627 = scalar_lea.vmem [#allocation1], 3
          %2628 = vst [vmem:[%s2627] ss:$9 sm:$0xff] %v1174
          %s2629 = scalar_lea.vmem [#allocation1], 4
          %2630 = vst [vmem:[%s2629] ss:$9 sm:$0xff] %v1177
          %s2631 = scalar_lea.vmem [#allocation1], 5
          %2632 = vst [vmem:[%s2631] ss:$9 sm:$0xff] %v1180
          %s2633 = scalar_lea.vmem [#allocation1], 6
          %2634 = vst [vmem:[%s2633] ss:$9 sm:$0xff] %v1183
          %s2635 = scalar_lea.vmem [#allocation1], 7
          %2636 = vst [vmem:[%s2635] ss:$9 sm:$0xff] %v1186
          %v2637 = vld [vmem:[#allocation1] sm:$0xff]
          %2638 = vst [vmem:[#allocation1] ss:$9 sm:$0xff] %v1192
          %2639 = vst [vmem:[%s2623] ss:$9 sm:$0xff] %v1195
          %2640 = vst [vmem:[%s2625] ss:$9 sm:$0xff] %v1198
          %2641 = vst [vmem:[%s2627] ss:$9 sm:$0xff] %v1201
          %2642 = vst [vmem:[%s2629] ss:$9 sm:$0xff] %v1204
          %2643 = vst [vmem:[%s2631] ss:$9 sm:$0xff] %v1207
          %2644 = vst [vmem:[%s2633] ss:$9 sm:$0xff] %v1210
          %2645 = vst [vmem:[%s2635] ss:$9 sm:$0xff] %v1213
          %v2646 = vld [vmem:[#allocation1] sm:$0xff]
          %2647 = vst [vmem:[#allocation1] ss:$9 sm:$0xff] %v1219
          %2648 = vst [vmem:[%s2623] ss:$9 sm:$0xff] %v1222
          %2649 = vst [vmem:[%s2625] ss:$9 sm:$0xff] %v1225
          %2650 = vst [vmem:[%s2627] ss:$9 sm:$0xff] %v1228
          %2651 = vst [vmem:[%s2629] ss:$9 sm:$0xff] %v1231
          %2652 = vst [vmem:[%s2631] ss:$9 sm:$0xff] %v1234
          %2653 = vst [vmem:[%s2633] ss:$9 sm:$0xff] %v1237
          %2654 = vst [vmem:[%s2635] ss:$9 sm:$0xff] %v1240
          %v2655 = vld [vmem:[#allocation1] sm:$0xff]
          %2656 = vst [vmem:[#allocation1] ss:$9 sm:$0xff] %v1246
          %2657 = vst [vmem:[%s2623] ss:$9 sm:$0xff] %v1249
          %2658 = vst [vmem:[%s2625] ss:$9 sm:$0xff] %v1252
          %2659 = vst [vmem:[%s2627] ss:$9 sm:$0xff] %v1255
          %2660 = vst [vmem:[%s2629] ss:$9 sm:$0xff] %v1258
          %2661 = vst [vmem:[%s2631] ss:$9 sm:$0xff] %v1261
          %2662 = vst [vmem:[%s2633] ss:$9 sm:$0xff] %v1264
          %2663 = vst [vmem:[%s2635] ss:$9 sm:$0xff] %v1267
          %v2664 = vld [vmem:[#allocation1] sm:$0xff]
          %2665 = vst [vmem:[#allocation1] ss:$9 sm:$0xff] %v1273
          %2666 = vst [vmem:[%s2623] ss:$9 sm:$0xff] %v1276
          %2667 = vst [vmem:[%s2625] ss:$9 sm:$0xff] %v1279
          %2668 = vst [vmem:[%s2627] ss:$9 sm:$0xff] %v1282
          %2669 = vst [vmem:[%s2629] ss:$9 sm:$0xff] %v1285
          %2670 = vst [vmem:[%s2631] ss:$9 sm:$0xff] %v1288
          %2671 = vst [vmem:[%s2633] ss:$9 sm:$0xff] %v1291
          %2672 = vst [vmem:[%s2635] ss:$9 sm:$0xff] %v1294
          %v2673 = vld [vmem:[#allocation1] sm:$0xff]
          %2674 = vst [vmem:[#allocation1] ss:$9 sm:$0xff] %v1300
          %2675 = vst [vmem:[%s2623] ss:$9 sm:$0xff] %v1303
          %2676 = vst [vmem:[%s2625] ss:$9 sm:$0xff] %v1306
          %2677 = vst [vmem:[%s2627] ss:$9 sm:$0xff] %v1309
          %2678 = vst [vmem:[%s2629] ss:$9 sm:$0xff] %v1312
          %2679 = vst [vmem:[%s2631] ss:$9 sm:$0xff] %v1315
          %2680 = vst [vmem:[%s2633] ss:$9 sm:$0xff] %v1318
          %2681 = vst [vmem:[%s2635] ss:$9 sm:$0xff] %v1321
          %v2682 = vld [vmem:[#allocation1] sm:$0xff]
          %2683 = vst [vmem:[#allocation1] ss:$9 sm:$0xff] %v1327
          %2684 = vst [vmem:[%s2623] ss:$9 sm:$0xff] %v1330
          %2685 = vst [vmem:[%s2625] ss:$9 sm:$0xff] %v1333
          %2686 = vst [vmem:[%s2627] ss:$9 sm:$0xff] %v1336
          %2687 = vst [vmem:[%s2629] ss:$9 sm:$0xff] %v1339
          %2688 = vst [vmem:[%s2631] ss:$9 sm:$0xff] %v1342
          %2689 = vst [vmem:[%s2633] ss:$9 sm:$0xff] %v1345
          %2690 = vst [vmem:[%s2635] ss:$9 sm:$0xff] %v1348
          %v2691 = vld [vmem:[#allocation1] sm:$0xff]
          %2692 = vst [vmem:[#allocation1] ss:$9 sm:$0xff] %v1354
          %2694 = vst [vmem:[%s2623] ss:$9 sm:$0xff] %v1357
          %2696 = vst [vmem:[%s2625] ss:$9 sm:$0xff] %v1360
          %2698 = vst [vmem:[%s2627] ss:$9 sm:$0xff] %v1363
          %2699 = vst [vmem:[%s2629] ss:$9 sm:$0xff] %v1366
          %2701 = vst [vmem:[%s2631] ss:$9 sm:$0xff] %v1369
          %2703 = vst [vmem:[%s2633] ss:$9 sm:$0xff] %v1372
          %2705 = vst [vmem:[%s2635] ss:$9 sm:$0xff] %v1375
          %v2706 = vld [vmem:[#allocation1] sm:$0xff]
          %v2731 = vunpack.c.l.b16 %v2606
          %v2732 = vunpack.c.l.b16 %v2607
          %v2733 = vunpack.c.l.b16 %v2608
          %v2734 = vunpack.c.l.b16 %v2609
          %v2735 = vunpack.c.l.b16 %v2610
          %v2736 = vunpack.c.l.b16 %v2611
          %v2737 = vunpack.c.l.b16 %v2612
          %v2738 = vunpack.c.l.b16 %v2613
          %v2739 = vunpack.c.l.b16 %v2614
          %v2740 = vunpack.c.l.b16 %v2615
          %v2741 = vunpack.c.l.b16 %v2616
          %v2742 = vunpack.c.l.b16 %v2617
          %v2743 = vunpack.c.l.b16 %v2618
          %v2744 = vunpack.c.l.b16 %v2619
          %v2745 = vunpack.c.l.b16 %v2620
          %v2746 = vunpack.c.l.b16 %v2621
          %v2747 = vpack.c.b16 %v2732, %v2731
          %v2748 = vpack.c.b16 %v2734, %v2733
          %v2749 = vpack.c.b16 %v2736, %v2735
          %v2750 = vpack.c.b16 %v2738, %v2737
          %v2751 = vpack.c.b16 %v2740, %v2739
          %v2752 = vpack.c.b16 %v2742, %v2741
          %v2753 = vpack.c.b16 %v2744, %v2743
          %v2754 = vpack.c.b16 %v2746, %v2745
          %2763 = vmatpush.bf16.msra.mxu0 %v2754
          %2764 = vmatpush.bf16.msra.mxu0 %v2753
          %2765 = vmatpush.bf16.msra.mxu0 %v2752
          %2766 = vmatpush.bf16.msra.mxu0 %v2751
          %2767 = vmatpush.bf16.msra.mxu0 %v2750
          %2768 = vmatpush.bf16.msra.mxu0 %v2749
          %2769 = vmatpush.bf16.msra.mxu0 %v2748
          %2770 = vmatpush.bf16.msra.mxu0 %v2747
          %2771 = vmatmul.bf16.gmra.mxu0 %v2637
          %v2772 = vpop.f32.mrf.mxu0
          %v2773 = vadd.f32 0.0, %v2772
          %v2774 = vpop.f32.mrf.mxu0
          %v2775 = vadd.f32 0.0, %v2774
          %2776 = vmatmul.bf16.gmra.mxu0 %v2646
          %v2777 = vpop.f32.mrf.mxu0
          %v2778 = vadd.f32 0.0, %v2777
          %v2779 = vpop.f32.mrf.mxu0
          %v2780 = vadd.f32 0.0, %v2779
          %2781 = vmatmul.bf16.gmra.mxu0 %v2655
          %v2782 = vpop.f32.mrf.mxu0
          %v2783 = vadd.f32 0.0, %v2782
          %v2784 = vpop.f32.mrf.mxu0
          %v2785 = vadd.f32 0.0, %v2784
          %2786 = vmatmul.bf16.gmra.mxu0 %v2664
          %v2787 = vpop.f32.mrf.mxu0
          %v2788 = vadd.f32 0.0, %v2787
          %v2789 = vpop.f32.mrf.mxu0
          %v2790 = vadd.f32 0.0, %v2789
          %2791 = vmatmul.bf16.gmra.mxu0 %v2673
          %v2792 = vpop.f32.mrf.mxu0
          %v2793 = vadd.f32 0.0, %v2792
          %v2794 = vpop.f32.mrf.mxu0
          %v2795 = vadd.f32 0.0, %v2794
          %2796 = vmatmul.bf16.gmra.mxu0 %v2682
          %v2797 = vpop.f32.mrf.mxu0
          %v2798 = vadd.f32 0.0, %v2797
          %v2799 = vpop.f32.mrf.mxu0
          %v2800 = vadd.f32 0.0, %v2799
          %2801 = vmatmul.bf16.gmra.mxu0 %v2691
          %v2802 = vpop.f32.mrf.mxu0
          %v2803 = vadd.f32 0.0, %v2802
          %v2804 = vpop.f32.mrf.mxu0
          %v2805 = vadd.f32 0.0, %v2804
          %2806 = vmatmul.bf16.gmra.mxu0 %v2706
          %v2807 = vpop.f32.mrf.mxu0
          %v2808 = vadd.f32 0.0, %v2807
          %v2809 = vpop.f32.mrf.mxu0
          %v2810 = vadd.f32 0.0, %v2809
          %2811 = vdwg.mxu0
          %v2812 = vadd.f32 %v2589, %v2773
          %v2813 = vadd.f32 %v2590, %v2775
          %v2814 = vadd.f32 %v2591, %v2778
          %v2815 = vadd.f32 %v2592, %v2780
          %v2816 = vadd.f32 %v2593, %v2783
          %v2817 = vadd.f32 %v2594, %v2785
          %v2818 = vadd.f32 %v2595, %v2788
          %v2819 = vadd.f32 %v2596, %v2790
          %v2820 = vadd.f32 %v2597, %v2793
          %v2821 = vadd.f32 %v2598, %v2795
          %v2822 = vadd.f32 %v2599, %v2798
          %v2823 = vadd.f32 %v2600, %v2800
          %v2824 = vadd.f32 %v2601, %v2803
          %v2825 = vadd.f32 %v2602, %v2805
          %v2826 = vadd.f32 %v2603, %v2808
          %v2827 = vadd.f32 %v2604, %v2810
          %v2828 = vshrl.u32 %v1354, 16
          %v2830 = vrot.slane %v2828, 7
          %v2831 = vrot.slane %v2830, 1
          %v2832 = vshll.u32 %v1357, 16
          %v2834 = vsel %vm1436, %v2831, %v2832
          %v2835 = vshrl.u32 %v1357, 16
          %v2837 = vrot.slane %v2835, 7
          %v2838 = vrot.slane %v2837, 1
          %v2839 = vshll.u32 %v1360, 16
          %v2841 = vsel %vm1436, %v2838, %v2839
          %v2842 = vshrl.u32 %v1360, 16
          %v2844 = vrot.slane %v2842, 7
          %v2845 = vrot.slane %v2844, 1
          %v2846 = vshll.u32 %v1363, 16
          %v2848 = vsel %vm1436, %v2845, %v2846
          %v2849 = vshrl.u32 %v1363, 16
          %v2851 = vrot.slane %v2849, 7
          %v2852 = vrot.slane %v2851, 1
          %v2853 = vshll.u32 %v1366, 16
          %v2855 = vsel %vm1436, %v2852, %v2853
          %v2856 = vshrl.u32 %v1366, 16
          %v2858 = vrot.slane %v2856, 7
          %v2859 = vrot.slane %v2858, 1
          %v2860 = vshll.u32 %v1369, 16
          %v2862 = vsel %vm1436, %v2859, %v2860
          %v2863 = vshrl.u32 %v1369, 16
          %v2865 = vrot.slane %v2863, 7
          %v2866 = vrot.slane %v2865, 1
          %v2867 = vshll.u32 %v1372, 16
          %v2869 = vsel %vm1436, %v2866, %v2867
          %v2870 = vshrl.u32 %v1372, 16
          %v2872 = vrot.slane %v2870, 7
          %v2873 = vrot.slane %v2872, 1
          %v2874 = vshll.u32 %v1375, 16
          %v2876 = vsel %vm1436, %v2873, %v2874
          %v2877 = vshrl.u32 %v1375, 16
          %v2879 = vrot.slane %v2877, 7
          %v2880 = vrot.slane %v2879, 1
          %v2881 = vshll.u32 %v1378, 16
          %v2883 = vsel %vm1436, %v2880, %v2881
          %s2884 = scalar_lea.vmem [#allocation5], 256
          %v2885 = vld [vmem:[%s2884] sm:$0xf]
          %v2886 = vld [vmem:[%s2884 + $0x4] sm:$0xf]
          %v2887 = vld [vmem:[%s2884 + $0x8] sm:$0xf]
          %v2888 = vld [vmem:[%s2884 + $0xc] sm:$0xf]
          %v2889 = vld [vmem:[%s2884 + $0x10] sm:$0xf]
          %v2890 = vld [vmem:[%s2884 + $0x14] sm:$0xf]
          %v2891 = vld [vmem:[%s2884 + $0x18] sm:$0xf]
          %v2892 = vld [vmem:[%s2884 + $0x1c] sm:$0xf]
          %v2893 = vld [vmem:[%s2884 + $0x20] sm:$0xf]
          %v2894 = vld [vmem:[%s2884 + $0x24] sm:$0xf]
          %v2895 = vld [vmem:[%s2884 + $0x28] sm:$0xf]
          %v2896 = vld [vmem:[%s2884 + $0x2c] sm:$0xf]
          %v2897 = vld [vmem:[%s2884 + $0x30] sm:$0xf]
          %v2898 = vld [vmem:[%s2884 + $0x34] sm:$0xf]
          %v2899 = vld [vmem:[%s2884 + $0x38] sm:$0xf]
          %v2900 = vld [vmem:[%s2884 + $0x3c] sm:$0xf]
          %2901 = vst [vmem:[#allocation1] ss:$9 sm:$0xff] %v1507
          %s2902 = scalar_lea.vmem [#allocation1], 1
          %2903 = vst [vmem:[%s2902] ss:$9 sm:$0xff] %v1515
          %s2904 = scalar_lea.vmem [#allocation1], 2
          %2905 = vst [vmem:[%s2904] ss:$9 sm:$0xff] %v1522
          %s2906 = scalar_lea.vmem [#allocation1], 3
          %2907 = vst [vmem:[%s2906] ss:$9 sm:$0xff] %v1530
          %s2908 = scalar_lea.vmem [#allocation1], 4
          %2909 = vst [vmem:[%s2908] ss:$9 sm:$0xff] %v1538
          %s2910 = scalar_lea.vmem [#allocation1], 5
          %2911 = vst [vmem:[%s2910] ss:$9 sm:$0xff] %v1546
          %s2912 = scalar_lea.vmem [#allocation1], 6
          %2913 = vst [vmem:[%s2912] ss:$9 sm:$0xff] %v1553
          %s2914 = scalar_lea.vmem [#allocation1], 7
          %2915 = vst [vmem:[%s2914] ss:$9 sm:$0xff] %v1561
          %v2916 = vld [vmem:[#allocation1] sm:$0xff]
          %2917 = vst [vmem:[#allocation1] ss:$9 sm:$0xff] %v1570
          %2918 = vst [vmem:[%s2902] ss:$9 sm:$0xff] %v1577
          %2919 = vst [vmem:[%s2904] ss:$9 sm:$0xff] %v1585
          %2920 = vst [vmem:[%s2906] ss:$9 sm:$0xff] %v1593
          %2921 = vst [vmem:[%s2908] ss:$9 sm:$0xff] %v1601
          %2922 = vst [vmem:[%s2910] ss:$9 sm:$0xff] %v1608
          %2923 = vst [vmem:[%s2912] ss:$9 sm:$0xff] %v1616
          %2924 = vst [vmem:[%s2914] ss:$9 sm:$0xff] %v1624
          %v2925 = vld [vmem:[#allocation1] sm:$0xff]
          %2926 = vst [vmem:[#allocation1] ss:$9 sm:$0xff] %v1632
          %2927 = vst [vmem:[%s2902] ss:$9 sm:$0xff] %v1640
          %2928 = vst [vmem:[%s2904] ss:$9 sm:$0xff] %v1648
          %2929 = vst [vmem:[%s2906] ss:$9 sm:$0xff] %v1656
          %2930 = vst [vmem:[%s2908] ss:$9 sm:$0xff] %v1663
          %2931 = vst [vmem:[%s2910] ss:$9 sm:$0xff] %v1671
          %2932 = vst [vmem:[%s2912] ss:$9 sm:$0xff] %v1679
          %2933 = vst [vmem:[%s2914] ss:$9 sm:$0xff] %v1687
          %v2934 = vld [vmem:[#allocation1] sm:$0xff]
          %2935 = vst [vmem:[#allocation1] ss:$9 sm:$0xff] %v1695
          %2936 = vst [vmem:[%s2902] ss:$9 sm:$0xff] %v1703
          %2937 = vst [vmem:[%s2904] ss:$9 sm:$0xff] %v1711
          %2938 = vst [vmem:[%s2906] ss:$9 sm:$0xff] %v1718
          %2939 = vst [vmem:[%s2908] ss:$9 sm:$0xff] %v1726
          %2940 = vst [vmem:[%s2910] ss:$9 sm:$0xff] %v1734
          %2941 = vst [vmem:[%s2912] ss:$9 sm:$0xff] %v1742
          %2942 = vst [vmem:[%s2914] ss:$9 sm:$0xff] %v1749
          %v2943 = vld [vmem:[#allocation1] sm:$0xff]
          %2944 = vst [vmem:[#allocation1] ss:$9 sm:$0xff] %v1758
          %2945 = vst [vmem:[%s2902] ss:$9 sm:$0xff] %v1766
          %2946 = vst [vmem:[%s2904] ss:$9 sm:$0xff] %v1773
          %2947 = vst [vmem:[%s2906] ss:$9 sm:$0xff] %v1781
          %2948 = vst [vmem:[%s2908] ss:$9 sm:$0xff] %v1789
          %2949 = vst [vmem:[%s2910] ss:$9 sm:$0xff] %v1797
          %2950 = vst [vmem:[%s2912] ss:$9 sm:$0xff] %v1804
          %2951 = vst [vmem:[%s2914] ss:$9 sm:$0xff] %v1812
          %v2952 = vld [vmem:[#allocation1] sm:$0xff]
          %2953 = vst [vmem:[#allocation1] ss:$9 sm:$0xff] %v1821
          %2954 = vst [vmem:[%s2902] ss:$9 sm:$0xff] %v1828
          %2955 = vst [vmem:[%s2904] ss:$9 sm:$0xff] %v1836
          %2956 = vst [vmem:[%s2906] ss:$9 sm:$0xff] %v1844
          %2957 = vst [vmem:[%s2908] ss:$9 sm:$0xff] %v1852
          %2958 = vst [vmem:[%s2910] ss:$9 sm:$0xff] %v1859
          %2959 = vst [vmem:[%s2912] ss:$9 sm:$0xff] %v1867
          %2960 = vst [vmem:[%s2914] ss:$9 sm:$0xff] %v1875
          %v2961 = vld [vmem:[#allocation1] sm:$0xff]
          %2962 = vst [vmem:[#allocation1] ss:$9 sm:$0xff] %v1883
          %2963 = vst [vmem:[%s2902] ss:$9 sm:$0xff] %v1891
          %2964 = vst [vmem:[%s2904] ss:$9 sm:$0xff] %v1899
          %2965 = vst [vmem:[%s2906] ss:$9 sm:$0xff] %v1907
          %2966 = vst [vmem:[%s2908] ss:$9 sm:$0xff] %v1914
          %2967 = vst [vmem:[%s2910] ss:$9 sm:$0xff] %v1922
          %2968 = vst [vmem:[%s2912] ss:$9 sm:$0xff] %v1930
          %2969 = vst [vmem:[%s2914] ss:$9 sm:$0xff] %v1938
          %v2970 = vld [vmem:[#allocation1] sm:$0xff]
          %2972 = vst [vmem:[#allocation1] ss:$9 sm:$0xff] %v2834
          %2974 = vst [vmem:[%s2902] ss:$9 sm:$0xff] %v2841
          %2976 = vst [vmem:[%s2904] ss:$9 sm:$0xff] %v2848
          %2978 = vst [vmem:[%s2906] ss:$9 sm:$0xff] %v2855
          %2980 = vst [vmem:[%s2908] ss:$9 sm:$0xff] %v2862
          %2982 = vst [vmem:[%s2910] ss:$9 sm:$0xff] %v2869
          %2984 = vst [vmem:[%s2912] ss:$9 sm:$0xff] %v2876
          %2986 = vst [vmem:[%s2914] ss:$9 sm:$0xff] %v2883
          %v2987 = vld [vmem:[#allocation1] sm:$0xff]
          %v3012 = vunpack.c.l.b16 %v2885
          %v3013 = vunpack.c.l.b16 %v2886
          %v3014 = vunpack.c.l.b16 %v2887
          %v3015 = vunpack.c.l.b16 %v2888
          %v3016 = vunpack.c.l.b16 %v2889
          %v3017 = vunpack.c.l.b16 %v2890
          %v3018 = vunpack.c.l.b16 %v2891
          %v3019 = vunpack.c.l.b16 %v2892
          %v3020 = vunpack.c.l.b16 %v2893
          %v3021 = vunpack.c.l.b16 %v2894
          %v3022 = vunpack.c.l.b16 %v2895
          %v3023 = vunpack.c.l.b16 %v2896
          %v3024 = vunpack.c.l.b16 %v2897
          %v3025 = vunpack.c.l.b16 %v2898
          %v3026 = vunpack.c.l.b16 %v2899
          %v3027 = vunpack.c.l.b16 %v2900
          %v3028 = vpack.c.b16 %v3013, %v3012
          %v3029 = vpack.c.b16 %v3015, %v3014
          %v3030 = vpack.c.b16 %v3017, %v3016
          %v3031 = vpack.c.b16 %v3019, %v3018
          %v3032 = vpack.c.b16 %v3021, %v3020
          %v3033 = vpack.c.b16 %v3023, %v3022
          %v3034 = vpack.c.b16 %v3025, %v3024
          %v3035 = vpack.c.b16 %v3027, %v3026
          %3044 = vmatpush.bf16.msra.mxu0 %v3035
          %3045 = vmatpush.bf16.msra.mxu0 %v3034
          %3046 = vmatpush.bf16.msra.mxu0 %v3033
          %3047 = vmatpush.bf16.msra.mxu0 %v3032
          %3048 = vmatpush.bf16.msra.mxu0 %v3031
          %3049 = vmatpush.bf16.msra.mxu0 %v3030
          %3050 = vmatpush.bf16.msra.mxu0 %v3029
          %3051 = vmatpush.bf16.msra.mxu0 %v3028
          %3052 = vmatmul.bf16.gmra.mxu0 %v2916
          %v3053 = vpop.f32.mrf.mxu0
          %v3054 = vadd.f32 0.0, %v3053
          %v3055 = vpop.f32.mrf.mxu0
          %v3056 = vadd.f32 0.0, %v3055
          %3057 = vmatmul.bf16.gmra.mxu0 %v2925
          %v3058 = vpop.f32.mrf.mxu0
          %v3059 = vadd.f32 0.0, %v3058
          %v3060 = vpop.f32.mrf.mxu0
          %v3061 = vadd.f32 0.0, %v3060
          %3062 = vmatmul.bf16.gmra.mxu0 %v2934
          %v3063 = vpop.f32.mrf.mxu0
          %v3064 = vadd.f32 0.0, %v3063
          %v3065 = vpop.f32.mrf.mxu0
          %v3066 = vadd.f32 0.0, %v3065
          %3067 = vmatmul.bf16.gmra.mxu0 %v2943
          %v3068 = vpop.f32.mrf.mxu0
          %v3069 = vadd.f32 0.0, %v3068
          %v3070 = vpop.f32.mrf.mxu0
          %v3071 = vadd.f32 0.0, %v3070
          %3072 = vmatmul.bf16.gmra.mxu0 %v2952
          %v3073 = vpop.f32.mrf.mxu0
          %v3074 = vadd.f32 0.0, %v3073
          %v3075 = vpop.f32.mrf.mxu0
          %v3076 = vadd.f32 0.0, %v3075
          %3077 = vmatmul.bf16.gmra.mxu0 %v2961
          %v3078 = vpop.f32.mrf.mxu0
          %v3079 = vadd.f32 0.0, %v3078
          %v3080 = vpop.f32.mrf.mxu0
          %v3081 = vadd.f32 0.0, %v3080
          %3082 = vmatmul.bf16.gmra.mxu0 %v2970
          %v3083 = vpop.f32.mrf.mxu0
          %v3084 = vadd.f32 0.0, %v3083
          %v3085 = vpop.f32.mrf.mxu0
          %v3086 = vadd.f32 0.0, %v3085
          %3087 = vmatmul.bf16.gmra.mxu0 %v2987
          %v3088 = vpop.f32.mrf.mxu0
          %v3089 = vadd.f32 0.0, %v3088
          %v3090 = vpop.f32.mrf.mxu0
          %v3091 = vadd.f32 0.0, %v3090
          %3092 = vdwg.mxu0
          %v3093 = vadd.f32 %v2812, %v3054
          %v3094 = vadd.f32 %v2813, %v3056
          %v3095 = vadd.f32 %v2814, %v3059
          %v3096 = vadd.f32 %v2815, %v3061
          %v3097 = vadd.f32 %v2816, %v3064
          %v3098 = vadd.f32 %v2817, %v3066
          %v3099 = vadd.f32 %v2818, %v3069
          %v3100 = vadd.f32 %v2819, %v3071
          %v3101 = vadd.f32 %v2820, %v3074
          %v3102 = vadd.f32 %v2821, %v3076
          %v3103 = vadd.f32 %v2822, %v3079
          %v3104 = vadd.f32 %v2823, %v3081
          %v3105 = vadd.f32 %v2824, %v3084
          %v3106 = vadd.f32 %v2825, %v3086
          %v3107 = vadd.f32 %v2826, %v3089
          %v3108 = vadd.f32 %v2827, %v3091
          %s3109 = scalar_lea.vmem [#allocation5], 320
          %v3110 = vld [vmem:[%s3109] sm:$0xf]
          %v3111 = vld [vmem:[%s3109 + $0x4] sm:$0xf]
          %v3112 = vld [vmem:[%s3109 + $0x8] sm:$0xf]
          %v3113 = vld [vmem:[%s3109 + $0xc] sm:$0xf]
          %v3114 = vld [vmem:[%s3109 + $0x10] sm:$0xf]
          %v3115 = vld [vmem:[%s3109 + $0x14] sm:$0xf]
          %v3116 = vld [vmem:[%s3109 + $0x18] sm:$0xf]
          %v3117 = vld [vmem:[%s3109 + $0x1c] sm:$0xf]
          %v3118 = vld [vmem:[%s3109 + $0x20] sm:$0xf]
          %v3119 = vld [vmem:[%s3109 + $0x24] sm:$0xf]
          %v3120 = vld [vmem:[%s3109 + $0x28] sm:$0xf]
          %v3121 = vld [vmem:[%s3109 + $0x2c] sm:$0xf]
          %v3122 = vld [vmem:[%s3109 + $0x30] sm:$0xf]
          %v3123 = vld [vmem:[%s3109 + $0x34] sm:$0xf]
          %v3124 = vld [vmem:[%s3109 + $0x38] sm:$0xf]
          %v3125 = vld [vmem:[%s3109 + $0x3c] sm:$0xf]
          %3126 = vst [vmem:[#allocation1] ss:$9 sm:$0xff] %v1168
          %s3127 = scalar_lea.vmem [#allocation1], 1
          %3128 = vst [vmem:[%s3127] ss:$9 sm:$0xff] %v1171
          %s3129 = scalar_lea.vmem [#allocation1], 2
          %3130 = vst [vmem:[%s3129] ss:$9 sm:$0xff] %v1174
          %s3131 = scalar_lea.vmem [#allocation1], 3
          %3132 = vst [vmem:[%s3131] ss:$9 sm:$0xff] %v1177
          %s3133 = scalar_lea.vmem [#allocation1], 4
          %3134 = vst [vmem:[%s3133] ss:$9 sm:$0xff] %v1180
          %s3135 = scalar_lea.vmem [#allocation1], 5
          %3136 = vst [vmem:[%s3135] ss:$9 sm:$0xff] %v1183
          %s3137 = scalar_lea.vmem [#allocation1], 6
          %3138 = vst [vmem:[%s3137] ss:$9 sm:$0xff] %v1186
          %s3139 = scalar_lea.vmem [#allocation1], 7
          %3140 = vst [vmem:[%s3139] ss:$9 sm:$0xff] %v1189
          %v3141 = vld [vmem:[#allocation1] sm:$0xff]
          %3142 = vst [vmem:[#allocation1] ss:$9 sm:$0xff] %v1195
          %3143 = vst [vmem:[%s3127] ss:$9 sm:$0xff] %v1198
          %3144 = vst [vmem:[%s3129] ss:$9 sm:$0xff] %v1201
          %3145 = vst [vmem:[%s3131] ss:$9 sm:$0xff] %v1204
          %3146 = vst [vmem:[%s3133] ss:$9 sm:$0xff] %v1207
          %3147 = vst [vmem:[%s3135] ss:$9 sm:$0xff] %v1210
          %3148 = vst [vmem:[%s3137] ss:$9 sm:$0xff] %v1213
          %3149 = vst [vmem:[%s3139] ss:$9 sm:$0xff] %v1216
          %v3150 = vld [vmem:[#allocation1] sm:$0xff]
          %3151 = vst [vmem:[#allocation1] ss:$9 sm:$0xff] %v1222
          %3152 = vst [vmem:[%s3127] ss:$9 sm:$0xff] %v1225
          %3153 = vst [vmem:[%s3129] ss:$9 sm:$0xff] %v1228
          %3154 = vst [vmem:[%s3131] ss:$9 sm:$0xff] %v1231
          %3155 = vst [vmem:[%s3133] ss:$9 sm:$0xff] %v1234
          %3156 = vst [vmem:[%s3135] ss:$9 sm:$0xff] %v1237
          %3157 = vst [vmem:[%s3137] ss:$9 sm:$0xff] %v1240
          %3158 = vst [vmem:[%s3139] ss:$9 sm:$0xff] %v1243
          %v3159 = vld [vmem:[#allocation1] sm:$0xff]
          %3160 = vst [vmem:[#allocation1] ss:$9 sm:$0xff] %v1249
          %3161 = vst [vmem:[%s3127] ss:$9 sm:$0xff] %v1252
          %3162 = vst [vmem:[%s3129] ss:$9 sm:$0xff] %v1255
          %3163 = vst [vmem:[%s3131] ss:$9 sm:$0xff] %v1258
          %3164 = vst [vmem:[%s3133] ss:$9 sm:$0xff] %v1261
          %3165 = vst [vmem:[%s3135] ss:$9 sm:$0xff] %v1264
          %3166 = vst [vmem:[%s3137] ss:$9 sm:$0xff] %v1267
          %3167 = vst [vmem:[%s3139] ss:$9 sm:$0xff] %v1270
          %v3168 = vld [vmem:[#allocation1] sm:$0xff]
          %3169 = vst [vmem:[#allocation1] ss:$9 sm:$0xff] %v1276
          %3170 = vst [vmem:[%s3127] ss:$9 sm:$0xff] %v1279
          %3171 = vst [vmem:[%s3129] ss:$9 sm:$0xff] %v1282
          %3172 = vst [vmem:[%s3131] ss:$9 sm:$0xff] %v1285
          %3173 = vst [vmem:[%s3133] ss:$9 sm:$0xff] %v1288
          %3174 = vst [vmem:[%s3135] ss:$9 sm:$0xff] %v1291
          %3175 = vst [vmem:[%s3137] ss:$9 sm:$0xff] %v1294
          %3176 = vst [vmem:[%s3139] ss:$9 sm:$0xff] %v1297
          %v3177 = vld [vmem:[#allocation1] sm:$0xff]
          %3178 = vst [vmem:[#allocation1] ss:$9 sm:$0xff] %v1303
          %3179 = vst [vmem:[%s3127] ss:$9 sm:$0xff] %v1306
          %3180 = vst [vmem:[%s3129] ss:$9 sm:$0xff] %v1309
          %3181 = vst [vmem:[%s3131] ss:$9 sm:$0xff] %v1312
          %3182 = vst [vmem:[%s3133] ss:$9 sm:$0xff] %v1315
          %3183 = vst [vmem:[%s3135] ss:$9 sm:$0xff] %v1318
          %3184 = vst [vmem:[%s3137] ss:$9 sm:$0xff] %v1321
          %3185 = vst [vmem:[%s3139] ss:$9 sm:$0xff] %v1324
          %v3186 = vld [vmem:[#allocation1] sm:$0xff]
          %3187 = vst [vmem:[#allocation1] ss:$9 sm:$0xff] %v1330
          %3188 = vst [vmem:[%s3127] ss:$9 sm:$0xff] %v1333
          %3189 = vst [vmem:[%s3129] ss:$9 sm:$0xff] %v1336
          %3190 = vst [vmem:[%s3131] ss:$9 sm:$0xff] %v1339
          %3191 = vst [vmem:[%s3133] ss:$9 sm:$0xff] %v1342
          %3192 = vst [vmem:[%s3135] ss:$9 sm:$0xff] %v1345
          %3193 = vst [vmem:[%s3137] ss:$9 sm:$0xff] %v1348
          %3194 = vst [vmem:[%s3139] ss:$9 sm:$0xff] %v1351
          %v3195 = vld [vmem:[#allocation1] sm:$0xff]
          %3196 = vst [vmem:[#allocation1] ss:$9 sm:$0xff] %v1357
          %3197 = vst [vmem:[%s3127] ss:$9 sm:$0xff] %v1360
          %3198 = vst [vmem:[%s3129] ss:$9 sm:$0xff] %v1363
          %3199 = vst [vmem:[%s3131] ss:$9 sm:$0xff] %v1366
          %3200 = vst [vmem:[%s3133] ss:$9 sm:$0xff] %v1369
          %3201 = vst [vmem:[%s3135] ss:$9 sm:$0xff] %v1372
          %3202 = vst [vmem:[%s3137] ss:$9 sm:$0xff] %v1375
          %3203 = vst [vmem:[%s3139] ss:$9 sm:$0xff] %v1378
          %v3204 = vld [vmem:[#allocation1] sm:$0xff]
          %v3229 = vunpack.c.l.b16 %v3110
          %v3230 = vunpack.c.l.b16 %v3111
          %v3231 = vunpack.c.l.b16 %v3112
          %v3232 = vunpack.c.l.b16 %v3113
          %v3233 = vunpack.c.l.b16 %v3114
          %v3234 = vunpack.c.l.b16 %v3115
          %v3235 = vunpack.c.l.b16 %v3116
          %v3236 = vunpack.c.l.b16 %v3117
          %v3237 = vunpack.c.l.b16 %v3118
          %v3238 = vunpack.c.l.b16 %v3119
          %v3239 = vunpack.c.l.b16 %v3120
          %v3240 = vunpack.c.l.b16 %v3121
          %v3241 = vunpack.c.l.b16 %v3122
          %v3242 = vunpack.c.l.b16 %v3123
          %v3243 = vunpack.c.l.b16 %v3124
          %v3244 = vunpack.c.l.b16 %v3125
          %v3245 = vpack.c.b16 %v3230, %v3229
          %v3246 = vpack.c.b16 %v3232, %v3231
          %v3247 = vpack.c.b16 %v3234, %v3233
          %v3248 = vpack.c.b16 %v3236, %v3235
          %v3249 = vpack.c.b16 %v3238, %v3237
          %v3250 = vpack.c.b16 %v3240, %v3239
          %v3251 = vpack.c.b16 %v3242, %v3241
          %v3252 = vpack.c.b16 %v3244, %v3243
          %3261 = vmatpush.bf16.msra.mxu0 %v3252
          %3262 = vmatpush.bf16.msra.mxu0 %v3251
          %3263 = vmatpush.bf16.msra.mxu0 %v3250
          %3264 = vmatpush.bf16.msra.mxu0 %v3249
          %3265 = vmatpush.bf16.msra.mxu0 %v3248
          %3266 = vmatpush.bf16.msra.mxu0 %v3247
          %3267 = vmatpush.bf16.msra.mxu0 %v3246
          %3268 = vmatpush.bf16.msra.mxu0 %v3245
          %3269 = vmatmul.bf16.gmra.mxu0 %v3141
          %v3270 = vpop.f32.mrf.mxu0
          %v3271 = vadd.f32 0.0, %v3270
          %v3272 = vpop.f32.mrf.mxu0
          %v3273 = vadd.f32 0.0, %v3272
          %3274 = vmatmul.bf16.gmra.mxu0 %v3150
          %v3275 = vpop.f32.mrf.mxu0
          %v3276 = vadd.f32 0.0, %v3275
          %v3277 = vpop.f32.mrf.mxu0
          %v3278 = vadd.f32 0.0, %v3277
          %3279 = vmatmul.bf16.gmra.mxu0 %v3159
          %v3280 = vpop.f32.mrf.mxu0
          %v3281 = vadd.f32 0.0, %v3280
          %v3282 = vpop.f32.mrf.mxu0
          %v3283 = vadd.f32 0.0, %v3282
          %3284 = vmatmul.bf16.gmra.mxu0 %v3168
          %v3285 = vpop.f32.mrf.mxu0
          %v3286 = vadd.f32 0.0, %v3285
          %v3287 = vpop.f32.mrf.mxu0
          %v3288 = vadd.f32 0.0, %v3287
          %3289 = vmatmul.bf16.gmra.mxu0 %v3177
          %v3290 = vpop.f32.mrf.mxu0
          %v3291 = vadd.f32 0.0, %v3290
          %v3292 = vpop.f32.mrf.mxu0
          %v3293 = vadd.f32 0.0, %v3292
          %3294 = vmatmul.bf16.gmra.mxu0 %v3186
          %v3295 = vpop.f32.mrf.mxu0
          %v3296 = vadd.f32 0.0, %v3295
          %v3297 = vpop.f32.mrf.mxu0
          %v3298 = vadd.f32 0.0, %v3297
          %3299 = vmatmul.bf16.gmra.mxu0 %v3195
          %v3300 = vpop.f32.mrf.mxu0
          %v3301 = vadd.f32 0.0, %v3300
          %v3302 = vpop.f32.mrf.mxu0
          %v3303 = vadd.f32 0.0, %v3302
          %3304 = vmatmul.bf16.gmra.mxu0 %v3204
          %v3305 = vpop.f32.mrf.mxu0
          %v3306 = vadd.f32 0.0, %v3305
          %v3307 = vpop.f32.mrf.mxu0
          %v3308 = vadd.f32 0.0, %v3307
          %3309 = vdwg.mxu0
          %v3310 = vadd.f32 %v3093, %v3271
          %v3311 = vadd.f32 %v3094, %v3273
          %v3312 = vadd.f32 %v3095, %v3276
          %v3313 = vadd.f32 %v3096, %v3278
          %v3314 = vadd.f32 %v3097, %v3281
          %v3315 = vadd.f32 %v3098, %v3283
          %v3316 = vadd.f32 %v3099, %v3286
          %v3317 = vadd.f32 %v3100, %v3288
          %v3318 = vadd.f32 %v3101, %v3291
          %v3319 = vadd.f32 %v3102, %v3293
          %v3320 = vadd.f32 %v3103, %v3296
          %v3321 = vadd.f32 %v3104, %v3298
          %v3322 = vadd.f32 %v3105, %v3301
          %v3323 = vadd.f32 %v3106, %v3303
          %v3324 = vadd.f32 %v3107, %v3306
          %v3325 = vadd.f32 %v3108, %v3308
          %s3326 = scalar_lea.vmem [#allocation5], 384
          %v3327 = vld [vmem:[%s3326] sm:$0xf]
          %v3328 = vld [vmem:[%s3326 + $0x4] sm:$0xf]
          %v3329 = vld [vmem:[%s3326 + $0x8] sm:$0xf]
          %v3330 = vld [vmem:[%s3326 + $0xc] sm:$0xf]
          %v3331 = vld [vmem:[%s3326 + $0x10] sm:$0xf]
          %v3332 = vld [vmem:[%s3326 + $0x14] sm:$0xf]
          %v3333 = vld [vmem:[%s3326 + $0x18] sm:$0xf]
          %v3334 = vld [vmem:[%s3326 + $0x1c] sm:$0xf]
          %v3335 = vld [vmem:[%s3326 + $0x20] sm:$0xf]
          %v3336 = vld [vmem:[%s3326 + $0x24] sm:$0xf]
          %v3337 = vld [vmem:[%s3326 + $0x28] sm:$0xf]
          %v3338 = vld [vmem:[%s3326 + $0x2c] sm:$0xf]
          %v3339 = vld [vmem:[%s3326 + $0x30] sm:$0xf]
          %v3340 = vld [vmem:[%s3326 + $0x34] sm:$0xf]
          %v3341 = vld [vmem:[%s3326 + $0x38] sm:$0xf]
          %v3342 = vld [vmem:[%s3326 + $0x3c] sm:$0xf]
          %3343 = vst [vmem:[#allocation1] ss:$9 sm:$0xff] %v1192
          %s3344 = scalar_lea.vmem [#allocation1], 1
          %3345 = vst [vmem:[%s3344] ss:$9 sm:$0xff] %v1195
          %s3346 = scalar_lea.vmem [#allocation1], 2
          %3347 = vst [vmem:[%s3346] ss:$9 sm:$0xff] %v1198
          %s3348 = scalar_lea.vmem [#allocation1], 3
          %3349 = vst [vmem:[%s3348] ss:$9 sm:$0xff] %v1201
          %s3350 = scalar_lea.vmem [#allocation1], 4
          %3351 = vst [vmem:[%s3350] ss:$9 sm:$0xff] %v1204
          %s3352 = scalar_lea.vmem [#allocation1], 5
          %3353 = vst [vmem:[%s3352] ss:$9 sm:$0xff] %v1207
          %s3354 = scalar_lea.vmem [#allocation1], 6
          %3355 = vst [vmem:[%s3354] ss:$9 sm:$0xff] %v1210
          %s3356 = scalar_lea.vmem [#allocation1], 7
          %3357 = vst [vmem:[%s3356] ss:$9 sm:$0xff] %v1213
          %v3358 = vld [vmem:[#allocation1] sm:$0xff]
          %3359 = vst [vmem:[#allocation1] ss:$9 sm:$0xff] %v1219
          %3360 = vst [vmem:[%s3344] ss:$9 sm:$0xff] %v1222
          %3361 = vst [vmem:[%s3346] ss:$9 sm:$0xff] %v1225
          %3362 = vst [vmem:[%s3348] ss:$9 sm:$0xff] %v1228
          %3363 = vst [vmem:[%s3350] ss:$9 sm:$0xff] %v1231
          %3364 = vst [vmem:[%s3352] ss:$9 sm:$0xff] %v1234
          %3365 = vst [vmem:[%s3354] ss:$9 sm:$0xff] %v1237
          %3366 = vst [vmem:[%s3356] ss:$9 sm:$0xff] %v1240
          %v3367 = vld [vmem:[#allocation1] sm:$0xff]
          %3368 = vst [vmem:[#allocation1] ss:$9 sm:$0xff] %v1246
          %3369 = vst [vmem:[%s3344] ss:$9 sm:$0xff] %v1249
          %3370 = vst [vmem:[%s3346] ss:$9 sm:$0xff] %v1252
          %3371 = vst [vmem:[%s3348] ss:$9 sm:$0xff] %v1255
          %3372 = vst [vmem:[%s3350] ss:$9 sm:$0xff] %v1258
          %3373 = vst [vmem:[%s3352] ss:$9 sm:$0xff] %v1261
          %3374 = vst [vmem:[%s3354] ss:$9 sm:$0xff] %v1264
          %3375 = vst [vmem:[%s3356] ss:$9 sm:$0xff] %v1267
          %v3376 = vld [vmem:[#allocation1] sm:$0xff]
          %3377 = vst [vmem:[#allocation1] ss:$9 sm:$0xff] %v1273
          %3378 = vst [vmem:[%s3344] ss:$9 sm:$0xff] %v1276
          %3379 = vst [vmem:[%s3346] ss:$9 sm:$0xff] %v1279
          %3380 = vst [vmem:[%s3348] ss:$9 sm:$0xff] %v1282
          %3381 = vst [vmem:[%s3350] ss:$9 sm:$0xff] %v1285
          %3382 = vst [vmem:[%s3352] ss:$9 sm:$0xff] %v1288
          %3383 = vst [vmem:[%s3354] ss:$9 sm:$0xff] %v1291
          %3384 = vst [vmem:[%s3356] ss:$9 sm:$0xff] %v1294
          %v3385 = vld [vmem:[#allocation1] sm:$0xff]
          %3386 = vst [vmem:[#allocation1] ss:$9 sm:$0xff] %v1300
          %3387 = vst [vmem:[%s3344] ss:$9 sm:$0xff] %v1303
          %3388 = vst [vmem:[%s3346] ss:$9 sm:$0xff] %v1306
          %3389 = vst [vmem:[%s3348] ss:$9 sm:$0xff] %v1309
          %3390 = vst [vmem:[%s3350] ss:$9 sm:$0xff] %v1312
          %3391 = vst [vmem:[%s3352] ss:$9 sm:$0xff] %v1315
          %3392 = vst [vmem:[%s3354] ss:$9 sm:$0xff] %v1318
          %3393 = vst [vmem:[%s3356] ss:$9 sm:$0xff] %v1321
          %v3394 = vld [vmem:[#allocation1] sm:$0xff]
          %3395 = vst [vmem:[#allocation1] ss:$9 sm:$0xff] %v1327
          %3396 = vst [vmem:[%s3344] ss:$9 sm:$0xff] %v1330
          %3397 = vst [vmem:[%s3346] ss:$9 sm:$0xff] %v1333
          %3398 = vst [vmem:[%s3348] ss:$9 sm:$0xff] %v1336
          %3399 = vst [vmem:[%s3350] ss:$9 sm:$0xff] %v1339
          %3400 = vst [vmem:[%s3352] ss:$9 sm:$0xff] %v1342
          %3401 = vst [vmem:[%s3354] ss:$9 sm:$0xff] %v1345
          %3402 = vst [vmem:[%s3356] ss:$9 sm:$0xff] %v1348
          %v3403 = vld [vmem:[#allocation1] sm:$0xff]
          %3404 = vst [vmem:[#allocation1] ss:$9 sm:$0xff] %v1354
          %3405 = vst [vmem:[%s3344] ss:$9 sm:$0xff] %v1357
          %3406 = vst [vmem:[%s3346] ss:$9 sm:$0xff] %v1360
          %3407 = vst [vmem:[%s3348] ss:$9 sm:$0xff] %v1363
          %3408 = vst [vmem:[%s3350] ss:$9 sm:$0xff] %v1366
          %3409 = vst [vmem:[%s3352] ss:$9 sm:$0xff] %v1369
          %3410 = vst [vmem:[%s3354] ss:$9 sm:$0xff] %v1372
          %3411 = vst [vmem:[%s3356] ss:$9 sm:$0xff] %v1375
          %v3412 = vld [vmem:[#allocation1] sm:$0xff]
          %3414 = vst [vmem:[#allocation1] ss:$9 sm:$0xff] %v1381
          %3416 = vst [vmem:[%s3344] ss:$9 sm:$0xff] %v1384
          %3418 = vst [vmem:[%s3346] ss:$9 sm:$0xff] %v1387
          %3419 = vst [vmem:[%s3348] ss:$9 sm:$0xff] %v1390
          %3421 = vst [vmem:[%s3350] ss:$9 sm:$0xff] %v1393
          %3423 = vst [vmem:[%s3352] ss:$9 sm:$0xff] %v1396
          %3425 = vst [vmem:[%s3354] ss:$9 sm:$0xff] %v1399
          %3426 = vst [vmem:[%s3356] ss:$9 sm:$0xff] %v1402
          %v3427 = vld [vmem:[#allocation1] sm:$0xff]
          %v3452 = vunpack.c.l.b16 %v3327
          %v3453 = vunpack.c.l.b16 %v3328
          %v3454 = vunpack.c.l.b16 %v3329
          %v3455 = vunpack.c.l.b16 %v3330
          %v3456 = vunpack.c.l.b16 %v3331
          %v3457 = vunpack.c.l.b16 %v3332
          %v3458 = vunpack.c.l.b16 %v3333
          %v3459 = vunpack.c.l.b16 %v3334
          %v3460 = vunpack.c.l.b16 %v3335
          %v3461 = vunpack.c.l.b16 %v3336
          %v3462 = vunpack.c.l.b16 %v3337
          %v3463 = vunpack.c.l.b16 %v3338
          %v3464 = vunpack.c.l.b16 %v3339
          %v3465 = vunpack.c.l.b16 %v3340
          %v3466 = vunpack.c.l.b16 %v3341
          %v3467 = vunpack.c.l.b16 %v3342
          %v3468 = vpack.c.b16 %v3453, %v3452
          %v3469 = vpack.c.b16 %v3455, %v3454
          %v3470 = vpack.c.b16 %v3457, %v3456
          %v3471 = vpack.c.b16 %v3459, %v3458
          %v3472 = vpack.c.b16 %v3461, %v3460
          %v3473 = vpack.c.b16 %v3463, %v3462
          %v3474 = vpack.c.b16 %v3465, %v3464
          %v3475 = vpack.c.b16 %v3467, %v3466
          %3484 = vmatpush.bf16.msra.mxu0 %v3475
          %3485 = vmatpush.bf16.msra.mxu0 %v3474
          %3486 = vmatpush.bf16.msra.mxu0 %v3473
          %3487 = vmatpush.bf16.msra.mxu0 %v3472
          %3488 = vmatpush.bf16.msra.mxu0 %v3471
          %3489 = vmatpush.bf16.msra.mxu0 %v3470
          %3490 = vmatpush.bf16.msra.mxu0 %v3469
          %3491 = vmatpush.bf16.msra.mxu0 %v3468
          %3492 = vmatmul.bf16.gmra.mxu0 %v3358
          %v3493 = vpop.f32.mrf.mxu0
          %v3494 = vadd.f32 0.0, %v3493
          %v3495 = vpop.f32.mrf.mxu0
          %v3496 = vadd.f32 0.0, %v3495
          %3497 = vmatmul.bf16.gmra.mxu0 %v3367
          %v3498 = vpop.f32.mrf.mxu0
          %v3499 = vadd.f32 0.0, %v3498
          %v3500 = vpop.f32.mrf.mxu0
          %v3501 = vadd.f32 0.0, %v3500
          %3502 = vmatmul.bf16.gmra.mxu0 %v3376
          %v3503 = vpop.f32.mrf.mxu0
          %v3504 = vadd.f32 0.0, %v3503
          %v3505 = vpop.f32.mrf.mxu0
          %v3506 = vadd.f32 0.0, %v3505
          %3507 = vmatmul.bf16.gmra.mxu0 %v3385
          %v3508 = vpop.f32.mrf.mxu0
          %v3509 = vadd.f32 0.0, %v3508
          %v3510 = vpop.f32.mrf.mxu0
          %v3511 = vadd.f32 0.0, %v3510
          %3512 = vmatmul.bf16.gmra.mxu0 %v3394
          %v3513 = vpop.f32.mrf.mxu0
          %v3514 = vadd.f32 0.0, %v3513
          %v3515 = vpop.f32.mrf.mxu0
          %v3516 = vadd.f32 0.0, %v3515
          %3517 = vmatmul.bf16.gmra.mxu0 %v3403
          %v3518 = vpop.f32.mrf.mxu0
          %v3519 = vadd.f32 0.0, %v3518
          %v3520 = vpop.f32.mrf.mxu0
          %v3521 = vadd.f32 0.0, %v3520
          %3522 = vmatmul.bf16.gmra.mxu0 %v3412
          %v3523 = vpop.f32.mrf.mxu0
          %v3524 = vadd.f32 0.0, %v3523
          %v3525 = vpop.f32.mrf.mxu0
          %v3526 = vadd.f32 0.0, %v3525
          %3527 = vmatmul.bf16.gmra.mxu0 %v3427
          %v3528 = vpop.f32.mrf.mxu0
          %v3529 = vadd.f32 0.0, %v3528
          %v3530 = vpop.f32.mrf.mxu0
          %v3531 = vadd.f32 0.0, %v3530
          %3532 = vdwg.mxu0
          %v3533 = vadd.f32 %v3310, %v3494
          %v3534 = vadd.f32 %v3311, %v3496
          %v3535 = vadd.f32 %v3312, %v3499
          %v3536 = vadd.f32 %v3313, %v3501
          %v3537 = vadd.f32 %v3314, %v3504
          %v3538 = vadd.f32 %v3315, %v3506
          %v3539 = vadd.f32 %v3316, %v3509
          %v3540 = vadd.f32 %v3317, %v3511
          %v3541 = vadd.f32 %v3318, %v3514
          %v3542 = vadd.f32 %v3319, %v3516
          %v3543 = vadd.f32 %v3320, %v3519
          %v3544 = vadd.f32 %v3321, %v3521
          %v3545 = vadd.f32 %v3322, %v3524
          %v3546 = vadd.f32 %v3323, %v3526
          %v3547 = vadd.f32 %v3324, %v3529
          %v3548 = vadd.f32 %v3325, %v3531
          %v3549 = vshrl.u32 %v1381, 16
          %v3551 = vrot.slane %v3549, 7
          %v3552 = vrot.slane %v3551, 1
          %v3553 = vshll.u32 %v1384, 16
          %v3555 = vsel %vm1436, %v3552, %v3553
          %v3556 = vshrl.u32 %v1384, 16
          %v3558 = vrot.slane %v3556, 7
          %v3559 = vrot.slane %v3558, 1
          %v3560 = vshll.u32 %v1387, 16
          %v3562 = vsel %vm1436, %v3559, %v3560
          %v3563 = vshrl.u32 %v1387, 16
          %v3565 = vrot.slane %v3563, 7
          %v3566 = vrot.slane %v3565, 1
          %v3567 = vshll.u32 %v1390, 16
          %v3569 = vsel %vm1436, %v3566, %v3567
          %v3570 = vshrl.u32 %v1390, 16
          %v3572 = vrot.slane %v3570, 7
          %v3573 = vrot.slane %v3572, 1
          %v3574 = vshll.u32 %v1393, 16
          %v3576 = vsel %vm1436, %v3573, %v3574
          %v3577 = vshrl.u32 %v1393, 16
          %v3579 = vrot.slane %v3577, 7
          %v3580 = vrot.slane %v3579, 1
          %v3581 = vshll.u32 %v1396, 16
          %v3583 = vsel %vm1436, %v3580, %v3581
          %v3584 = vshrl.u32 %v1396, 16
          %v3586 = vrot.slane %v3584, 7
          %v3587 = vrot.slane %v3586, 1
          %v3588 = vshll.u32 %v1399, 16
          %v3590 = vsel %vm1436, %v3587, %v3588
          %v3591 = vshrl.u32 %v1399, 16
          %v3593 = vrot.slane %v3591, 7
          %v3594 = vrot.slane %v3593, 1
          %v3595 = vshll.u32 %v1402, 16
          %v3597 = vsel %vm1436, %v3594, %v3595
          %v3598 = vshrl.u32 %v1402, 16
          %v3600 = vrot.slane %v3598, 7
          %v3601 = vrot.slane %v3600, 1
          %v3603 = vshll.u32 %v1405, 16
          %v3605 = vsel %vm1436, %v3601, %v3603
          %s3606 = scalar_lea.vmem [#allocation5], 448
          %v3607 = vld [vmem:[%s3606] sm:$0xf]
          %v3608 = vld [vmem:[%s3606 + $0x4] sm:$0xf]
          %v3609 = vld [vmem:[%s3606 + $0x8] sm:$0xf]
          %v3610 = vld [vmem:[%s3606 + $0xc] sm:$0xf]
          %v3611 = vld [vmem:[%s3606 + $0x10] sm:$0xf]
          %v3612 = vld [vmem:[%s3606 + $0x14] sm:$0xf]
          %v3613 = vld [vmem:[%s3606 + $0x18] sm:$0xf]
          %v3614 = vld [vmem:[%s3606 + $0x1c] sm:$0xf]
          %v3615 = vld [vmem:[%s3606 + $0x20] sm:$0xf]
          %v3616 = vld [vmem:[%s3606 + $0x24] sm:$0xf]
          %v3617 = vld [vmem:[%s3606 + $0x28] sm:$0xf]
          %v3618 = vld [vmem:[%s3606 + $0x2c] sm:$0xf]
          %v3619 = vld [vmem:[%s3606 + $0x30] sm:$0xf]
          %v3620 = vld [vmem:[%s3606 + $0x34] sm:$0xf]
          %v3621 = vld [vmem:[%s3606 + $0x38] sm:$0xf]
          %v3622 = vld [vmem:[%s3606 + $0x3c] sm:$0xf]
          %3623 = vst [vmem:[#allocation1] ss:$9 sm:$0xff] %v1570
          %s3624 = scalar_lea.vmem [#allocation1], 1
          %3625 = vst [vmem:[%s3624] ss:$9 sm:$0xff] %v1577
          %s3626 = scalar_lea.vmem [#allocation1], 2
          %3627 = vst [vmem:[%s3626] ss:$9 sm:$0xff] %v1585
          %s3628 = scalar_lea.vmem [#allocation1], 3
          %3629 = vst [vmem:[%s3628] ss:$9 sm:$0xff] %v1593
          %s3630 = scalar_lea.vmem [#allocation1], 4
          %3631 = vst [vmem:[%s3630] ss:$9 sm:$0xff] %v1601
          %s3632 = scalar_lea.vmem [#allocation1], 5
          %3633 = vst [vmem:[%s3632] ss:$9 sm:$0xff] %v1608
          %s3634 = scalar_lea.vmem [#allocation1], 6
          %3635 = vst [vmem:[%s3634] ss:$9 sm:$0xff] %v1616
          %s3636 = scalar_lea.vmem [#allocation1], 7
          %3637 = vst [vmem:[%s3636] ss:$9 sm:$0xff] %v1624
          %v3638 = vld [vmem:[#allocation1] sm:$0xff]
          %3639 = vst [vmem:[#allocation1] ss:$9 sm:$0xff] %v1632
          %3640 = vst [vmem:[%s3624] ss:$9 sm:$0xff] %v1640
          %3641 = vst [vmem:[%s3626] ss:$9 sm:$0xff] %v1648
          %3642 = vst [vmem:[%s3628] ss:$9 sm:$0xff] %v1656
          %3643 = vst [vmem:[%s3630] ss:$9 sm:$0xff] %v1663
          %3644 = vst [vmem:[%s3632] ss:$9 sm:$0xff] %v1671
          %3645 = vst [vmem:[%s3634] ss:$9 sm:$0xff] %v1679
          %3646 = vst [vmem:[%s3636] ss:$9 sm:$0xff] %v1687
          %v3647 = vld [vmem:[#allocation1] sm:$0xff]
          %3648 = vst [vmem:[#allocation1] ss:$9 sm:$0xff] %v1695
          %3649 = vst [vmem:[%s3624] ss:$9 sm:$0xff] %v1703
          %3650 = vst [vmem:[%s3626] ss:$9 sm:$0xff] %v1711
          %3651 = vst [vmem:[%s3628] ss:$9 sm:$0xff] %v1718
          %3652 = vst [vmem:[%s3630] ss:$9 sm:$0xff] %v1726
          %3653 = vst [vmem:[%s3632] ss:$9 sm:$0xff] %v1734
          %3654 = vst [vmem:[%s3634] ss:$9 sm:$0xff] %v1742
          %3655 = vst [vmem:[%s3636] ss:$9 sm:$0xff] %v1749
          %v3656 = vld [vmem:[#allocation1] sm:$0xff]
          %3657 = vst [vmem:[#allocation1] ss:$9 sm:$0xff] %v1758
          %3658 = vst [vmem:[%s3624] ss:$9 sm:$0xff] %v1766
          %3659 = vst [vmem:[%s3626] ss:$9 sm:$0xff] %v1773
          %3660 = vst [vmem:[%s3628] ss:$9 sm:$0xff] %v1781
          %3661 = vst [vmem:[%s3630] ss:$9 sm:$0xff] %v1789
          %3662 = vst [vmem:[%s3632] ss:$9 sm:$0xff] %v1797
          %3663 = vst [vmem:[%s3634] ss:$9 sm:$0xff] %v1804
          %3664 = vst [vmem:[%s3636] ss:$9 sm:$0xff] %v1812
          %v3665 = vld [vmem:[#allocation1] sm:$0xff]
          %3666 = vst [vmem:[#allocation1] ss:$9 sm:$0xff] %v1821
          %3667 = vst [vmem:[%s3624] ss:$9 sm:$0xff] %v1828
          %3668 = vst [vmem:[%s3626] ss:$9 sm:$0xff] %v1836
          %3669 = vst [vmem:[%s3628] ss:$9 sm:$0xff] %v1844
          %3670 = vst [vmem:[%s3630] ss:$9 sm:$0xff] %v1852
          %3671 = vst [vmem:[%s3632] ss:$9 sm:$0xff] %v1859
          %3672 = vst [vmem:[%s3634] ss:$9 sm:$0xff] %v1867
          %3673 = vst [vmem:[%s3636] ss:$9 sm:$0xff] %v1875
          %v3674 = vld [vmem:[#allocation1] sm:$0xff]
          %3675 = vst [vmem:[#allocation1] ss:$9 sm:$0xff] %v1883
          %3676 = vst [vmem:[%s3624] ss:$9 sm:$0xff] %v1891
          %3677 = vst [vmem:[%s3626] ss:$9 sm:$0xff] %v1899
          %3678 = vst [vmem:[%s3628] ss:$9 sm:$0xff] %v1907
          %3679 = vst [vmem:[%s3630] ss:$9 sm:$0xff] %v1914
          %3680 = vst [vmem:[%s3632] ss:$9 sm:$0xff] %v1922
          %3681 = vst [vmem:[%s3634] ss:$9 sm:$0xff] %v1930
          %3682 = vst [vmem:[%s3636] ss:$9 sm:$0xff] %v1938
          %v3683 = vld [vmem:[#allocation1] sm:$0xff]
          %3684 = vst [vmem:[#allocation1] ss:$9 sm:$0xff] %v2834
          %3685 = vst [vmem:[%s3624] ss:$9 sm:$0xff] %v2841
          %3686 = vst [vmem:[%s3626] ss:$9 sm:$0xff] %v2848
          %3687 = vst [vmem:[%s3628] ss:$9 sm:$0xff] %v2855
          %3688 = vst [vmem:[%s3630] ss:$9 sm:$0xff] %v2862
          %3689 = vst [vmem:[%s3632] ss:$9 sm:$0xff] %v2869
          %3690 = vst [vmem:[%s3634] ss:$9 sm:$0xff] %v2876
          %3691 = vst [vmem:[%s3636] ss:$9 sm:$0xff] %v2883
          %v3692 = vld [vmem:[#allocation1] sm:$0xff]
          %3694 = vst [vmem:[#allocation1] ss:$9 sm:$0xff] %v3555
          %3696 = vst [vmem:[%s3624] ss:$9 sm:$0xff] %v3562
          %3698 = vst [vmem:[%s3626] ss:$9 sm:$0xff] %v3569
          %3700 = vst [vmem:[%s3628] ss:$9 sm:$0xff] %v3576
          %3702 = vst [vmem:[%s3630] ss:$9 sm:$0xff] %v3583
          %3704 = vst [vmem:[%s3632] ss:$9 sm:$0xff] %v3590
          %3706 = vst [vmem:[%s3634] ss:$9 sm:$0xff] %v3597
          %3708 = vst [vmem:[%s3636] ss:$9 sm:$0xff] %v3605
          %v3709 = vld [vmem:[#allocation1] sm:$0xff]
          %v3734 = vunpack.c.l.b16 %v3607
          %v3735 = vunpack.c.l.b16 %v3608
          %v3736 = vunpack.c.l.b16 %v3609
          %v3737 = vunpack.c.l.b16 %v3610
          %v3738 = vunpack.c.l.b16 %v3611
          %v3739 = vunpack.c.l.b16 %v3612
          %v3740 = vunpack.c.l.b16 %v3613
          %v3741 = vunpack.c.l.b16 %v3614
          %v3742 = vunpack.c.l.b16 %v3615
          %v3743 = vunpack.c.l.b16 %v3616
          %v3744 = vunpack.c.l.b16 %v3617
          %v3745 = vunpack.c.l.b16 %v3618
          %v3746 = vunpack.c.l.b16 %v3619
          %v3747 = vunpack.c.l.b16 %v3620
          %v3748 = vunpack.c.l.b16 %v3621
          %v3749 = vunpack.c.l.b16 %v3622
          %v3750 = vpack.c.b16 %v3735, %v3734
          %v3751 = vpack.c.b16 %v3737, %v3736
          %v3752 = vpack.c.b16 %v3739, %v3738
          %v3753 = vpack.c.b16 %v3741, %v3740
          %v3754 = vpack.c.b16 %v3743, %v3742
          %v3755 = vpack.c.b16 %v3745, %v3744
          %v3756 = vpack.c.b16 %v3747, %v3746
          %v3757 = vpack.c.b16 %v3749, %v3748
          %3766 = vmatpush.bf16.msra.mxu0 %v3757
          %3767 = vmatpush.bf16.msra.mxu0 %v3756
          %3768 = vmatpush.bf16.msra.mxu0 %v3755
          %3769 = vmatpush.bf16.msra.mxu0 %v3754
          %3770 = vmatpush.bf16.msra.mxu0 %v3753
          %3771 = vmatpush.bf16.msra.mxu0 %v3752
          %3772 = vmatpush.bf16.msra.mxu0 %v3751
          %3773 = vmatpush.bf16.msra.mxu0 %v3750
          %3774 = vmatmul.bf16.gmra.mxu0 %v3638
          %v3775 = vpop.f32.mrf.mxu0
          %v3776 = vadd.f32 0.0, %v3775
          %v3777 = vpop.f32.mrf.mxu0
          %v3778 = vadd.f32 0.0, %v3777
          %3779 = vmatmul.bf16.gmra.mxu0 %v3647
          %v3780 = vpop.f32.mrf.mxu0
          %v3781 = vadd.f32 0.0, %v3780
          %v3782 = vpop.f32.mrf.mxu0
          %v3783 = vadd.f32 0.0, %v3782
          %3784 = vmatmul.bf16.gmra.mxu0 %v3656
          %v3785 = vpop.f32.mrf.mxu0
          %v3786 = vadd.f32 0.0, %v3785
          %v3787 = vpop.f32.mrf.mxu0
          %v3788 = vadd.f32 0.0, %v3787
          %3789 = vmatmul.bf16.gmra.mxu0 %v3665
          %v3790 = vpop.f32.mrf.mxu0
          %v3791 = vadd.f32 0.0, %v3790
          %v3792 = vpop.f32.mrf.mxu0
          %v3793 = vadd.f32 0.0, %v3792
          %3794 = vmatmul.bf16.gmra.mxu0 %v3674
          %v3795 = vpop.f32.mrf.mxu0
          %v3796 = vadd.f32 0.0, %v3795
          %v3797 = vpop.f32.mrf.mxu0
          %v3798 = vadd.f32 0.0, %v3797
          %3799 = vmatmul.bf16.gmra.mxu0 %v3683
          %v3800 = vpop.f32.mrf.mxu0
          %v3801 = vadd.f32 0.0, %v3800
          %v3802 = vpop.f32.mrf.mxu0
          %v3803 = vadd.f32 0.0, %v3802
          %3804 = vmatmul.bf16.gmra.mxu0 %v3692
          %v3805 = vpop.f32.mrf.mxu0
          %v3806 = vadd.f32 0.0, %v3805
          %v3807 = vpop.f32.mrf.mxu0
          %v3808 = vadd.f32 0.0, %v3807
          %3809 = vmatmul.bf16.gmra.mxu0 %v3709
          %v3810 = vpop.f32.mrf.mxu0
          %v3811 = vadd.f32 0.0, %v3810
          %v3812 = vpop.f32.mrf.mxu0
          %v3813 = vadd.f32 0.0, %v3812
          %3814 = vdwg.mxu0
          %v3815 = vadd.f32 %v3533, %v3776
          %v3816 = vadd.f32 %v3534, %v3778
          %v3817 = vadd.f32 %v3535, %v3781
          %v3818 = vadd.f32 %v3536, %v3783
          %v3819 = vadd.f32 %v3537, %v3786
          %v3820 = vadd.f32 %v3538, %v3788
          %v3821 = vadd.f32 %v3539, %v3791
          %v3822 = vadd.f32 %v3540, %v3793
          %v3823 = vadd.f32 %v3541, %v3796
          %v3824 = vadd.f32 %v3542, %v3798
          %v3825 = vadd.f32 %v3543, %v3801
          %v3826 = vadd.f32 %v3544, %v3803
          %v3827 = vadd.f32 %v3545, %v3806
          %v3828 = vadd.f32 %v3546, %v3808
          %v3829 = vadd.f32 %v3547, %v3811
          %v3830 = vadd.f32 %v3548, %v3813
          %s3831 = scalar_lea.vmem [#allocation5], 512
          %v3832 = vld [vmem:[%s3831] sm:$0xf]
          %v3833 = vld [vmem:[%s3831 + $0x4] sm:$0xf]
          %v3834 = vld [vmem:[%s3831 + $0x8] sm:$0xf]
          %v3835 = vld [vmem:[%s3831 + $0xc] sm:$0xf]
          %v3836 = vld [vmem:[%s3831 + $0x10] sm:$0xf]
          %v3837 = vld [vmem:[%s3831 + $0x14] sm:$0xf]
          %v3838 = vld [vmem:[%s3831 + $0x18] sm:$0xf]
          %v3839 = vld [vmem:[%s3831 + $0x1c] sm:$0xf]
          %v3840 = vld [vmem:[%s3831 + $0x20] sm:$0xf]
          %v3841 = vld [vmem:[%s3831 + $0x24] sm:$0xf]
          %v3842 = vld [vmem:[%s3831 + $0x28] sm:$0xf]
          %v3843 = vld [vmem:[%s3831 + $0x2c] sm:$0xf]
          %v3844 = vld [vmem:[%s3831 + $0x30] sm:$0xf]
          %v3845 = vld [vmem:[%s3831 + $0x34] sm:$0xf]
          %v3846 = vld [vmem:[%s3831 + $0x38] sm:$0xf]
          %v3847 = vld [vmem:[%s3831 + $0x3c] sm:$0xf]
          %3848 = vst [vmem:[#allocation1] ss:$9 sm:$0xff] %v1195
          %s3849 = scalar_lea.vmem [#allocation1], 1
          %3850 = vst [vmem:[%s3849] ss:$9 sm:$0xff] %v1198
          %s3851 = scalar_lea.vmem [#allocation1], 2
          %3852 = vst [vmem:[%s3851] ss:$9 sm:$0xff] %v1201
          %s3853 = scalar_lea.vmem [#allocation1], 3
          %3854 = vst [vmem:[%s3853] ss:$9 sm:$0xff] %v1204
          %s3855 = scalar_lea.vmem [#allocation1], 4
          %3856 = vst [vmem:[%s3855] ss:$9 sm:$0xff] %v1207
          %s3857 = scalar_lea.vmem [#allocation1], 5
          %3858 = vst [vmem:[%s3857] ss:$9 sm:$0xff] %v1210
          %s3859 = scalar_lea.vmem [#allocation1], 6
          %3860 = vst [vmem:[%s3859] ss:$9 sm:$0xff] %v1213
          %s3861 = scalar_lea.vmem [#allocation1], 7
          %3862 = vst [vmem:[%s3861] ss:$9 sm:$0xff] %v1216
          %v3863 = vld [vmem:[#allocation1] sm:$0xff]
          %3864 = vst [vmem:[#allocation1] ss:$9 sm:$0xff] %v1222
          %3865 = vst [vmem:[%s3849] ss:$9 sm:$0xff] %v1225
          %3866 = vst [vmem:[%s3851] ss:$9 sm:$0xff] %v1228
          %3867 = vst [vmem:[%s3853] ss:$9 sm:$0xff] %v1231
          %3868 = vst [vmem:[%s3855] ss:$9 sm:$0xff] %v1234
          %3869 = vst [vmem:[%s3857] ss:$9 sm:$0xff] %v1237
          %3870 = vst [vmem:[%s3859] ss:$9 sm:$0xff] %v1240
          %3871 = vst [vmem:[%s3861] ss:$9 sm:$0xff] %v1243
          %v3872 = vld [vmem:[#allocation1] sm:$0xff]
          %3873 = vst [vmem:[#allocation1] ss:$9 sm:$0xff] %v1249
          %3874 = vst [vmem:[%s3849] ss:$9 sm:$0xff] %v1252
          %3875 = vst [vmem:[%s3851] ss:$9 sm:$0xff] %v1255
          %3876 = vst [vmem:[%s3853] ss:$9 sm:$0xff] %v1258
          %3877 = vst [vmem:[%s3855] ss:$9 sm:$0xff] %v1261
          %3878 = vst [vmem:[%s3857] ss:$9 sm:$0xff] %v1264
          %3879 = vst [vmem:[%s3859] ss:$9 sm:$0xff] %v1267
          %3880 = vst [vmem:[%s3861] ss:$9 sm:$0xff] %v1270
          %v3881 = vld [vmem:[#allocation1] sm:$0xff]
          %3882 = vst [vmem:[#allocation1] ss:$9 sm:$0xff] %v1276
          %3883 = vst [vmem:[%s3849] ss:$9 sm:$0xff] %v1279
          %3884 = vst [vmem:[%s3851] ss:$9 sm:$0xff] %v1282
          %3885 = vst [vmem:[%s3853] ss:$9 sm:$0xff] %v1285
          %3886 = vst [vmem:[%s3855] ss:$9 sm:$0xff] %v1288
          %3887 = vst [vmem:[%s3857] ss:$9 sm:$0xff] %v1291
          %3888 = vst [vmem:[%s3859] ss:$9 sm:$0xff] %v1294
          %3889 = vst [vmem:[%s3861] ss:$9 sm:$0xff] %v1297
          %v3890 = vld [vmem:[#allocation1] sm:$0xff]
          %3891 = vst [vmem:[#allocation1] ss:$9 sm:$0xff] %v1303
          %3892 = vst [vmem:[%s3849] ss:$9 sm:$0xff] %v1306
          %3893 = vst [vmem:[%s3851] ss:$9 sm:$0xff] %v1309
          %3894 = vst [vmem:[%s3853] ss:$9 sm:$0xff] %v1312
          %3895 = vst [vmem:[%s3855] ss:$9 sm:$0xff] %v1315
          %3896 = vst [vmem:[%s3857] ss:$9 sm:$0xff] %v1318
          %3897 = vst [vmem:[%s3859] ss:$9 sm:$0xff] %v1321
          %3898 = vst [vmem:[%s3861] ss:$9 sm:$0xff] %v1324
          %v3899 = vld [vmem:[#allocation1] sm:$0xff]
          %3900 = vst [vmem:[#allocation1] ss:$9 sm:$0xff] %v1330
          %3901 = vst [vmem:[%s3849] ss:$9 sm:$0xff] %v1333
          %3902 = vst [vmem:[%s3851] ss:$9 sm:$0xff] %v1336
          %3903 = vst [vmem:[%s3853] ss:$9 sm:$0xff] %v1339
          %3904 = vst [vmem:[%s3855] ss:$9 sm:$0xff] %v1342
          %3905 = vst [vmem:[%s3857] ss:$9 sm:$0xff] %v1345
          %3906 = vst [vmem:[%s3859] ss:$9 sm:$0xff] %v1348
          %3907 = vst [vmem:[%s3861] ss:$9 sm:$0xff] %v1351
          %v3908 = vld [vmem:[#allocation1] sm:$0xff]
          %3909 = vst [vmem:[#allocation1] ss:$9 sm:$0xff] %v1357
          %3910 = vst [vmem:[%s3849] ss:$9 sm:$0xff] %v1360
          %3911 = vst [vmem:[%s3851] ss:$9 sm:$0xff] %v1363
          %3912 = vst [vmem:[%s3853] ss:$9 sm:$0xff] %v1366
          %3913 = vst [vmem:[%s3855] ss:$9 sm:$0xff] %v1369
          %3914 = vst [vmem:[%s3857] ss:$9 sm:$0xff] %v1372
          %3915 = vst [vmem:[%s3859] ss:$9 sm:$0xff] %v1375
          %3916 = vst [vmem:[%s3861] ss:$9 sm:$0xff] %v1378
          %v3917 = vld [vmem:[#allocation1] sm:$0xff]
          %3918 = vst [vmem:[#allocation1] ss:$9 sm:$0xff] %v1384
          %3919 = vst [vmem:[%s3849] ss:$9 sm:$0xff] %v1387
          %3920 = vst [vmem:[%s3851] ss:$9 sm:$0xff] %v1390
          %3921 = vst [vmem:[%s3853] ss:$9 sm:$0xff] %v1393
          %3922 = vst [vmem:[%s3855] ss:$9 sm:$0xff] %v1396
          %3923 = vst [vmem:[%s3857] ss:$9 sm:$0xff] %v1399
          %3924 = vst [vmem:[%s3859] ss:$9 sm:$0xff] %v1402
          %3925 = vst [vmem:[%s3861] ss:$9 sm:$0xff] %v1405
          %v3926 = vld [vmem:[#allocation1] sm:$0xff]
          %v3951 = vunpack.c.l.b16 %v3832
          %v3952 = vunpack.c.l.b16 %v3833
          %v3953 = vunpack.c.l.b16 %v3834
          %v3954 = vunpack.c.l.b16 %v3835
          %v3955 = vunpack.c.l.b16 %v3836
          %v3956 = vunpack.c.l.b16 %v3837
          %v3957 = vunpack.c.l.b16 %v3838
          %v3958 = vunpack.c.l.b16 %v3839
          %v3959 = vunpack.c.l.b16 %v3840
          %v3960 = vunpack.c.l.b16 %v3841
          %v3961 = vunpack.c.l.b16 %v3842
          %v3962 = vunpack.c.l.b16 %v3843
          %v3963 = vunpack.c.l.b16 %v3844
          %v3964 = vunpack.c.l.b16 %v3845
          %v3965 = vunpack.c.l.b16 %v3846
          %v3966 = vunpack.c.l.b16 %v3847
          %v3967 = vpack.c.b16 %v3952, %v3951
          %v3968 = vpack.c.b16 %v3954, %v3953
          %v3969 = vpack.c.b16 %v3956, %v3955
          %v3970 = vpack.c.b16 %v3958, %v3957
          %v3971 = vpack.c.b16 %v3960, %v3959
          %v3972 = vpack.c.b16 %v3962, %v3961
          %v3973 = vpack.c.b16 %v3964, %v3963
          %v3974 = vpack.c.b16 %v3966, %v3965
          %3983 = vmatpush.bf16.msra.mxu0 %v3974
          %3984 = vmatpush.bf16.msra.mxu0 %v3973
          %3985 = vmatpush.bf16.msra.mxu0 %v3972
          %3986 = vmatpush.bf16.msra.mxu0 %v3971
          %3987 = vmatpush.bf16.msra.mxu0 %v3970
          %3988 = vmatpush.bf16.msra.mxu0 %v3969
          %3989 = vmatpush.bf16.msra.mxu0 %v3968
          %3990 = vmatpush.bf16.msra.mxu0 %v3967
          %3991 = vmatmul.bf16.gmra.mxu0 %v3863
          %v3992 = vpop.f32.mrf.mxu0
          %v3993 = vadd.f32 0.0, %v3992
          %v3994 = vpop.f32.mrf.mxu0
          %v3995 = vadd.f32 0.0, %v3994
          %3996 = vmatmul.bf16.gmra.mxu0 %v3872
          %v3997 = vpop.f32.mrf.mxu0
          %v3998 = vadd.f32 0.0, %v3997
          %v3999 = vpop.f32.mrf.mxu0
          %v4000 = vadd.f32 0.0, %v3999
          %4001 = vmatmul.bf16.gmra.mxu0 %v3881
          %v4002 = vpop.f32.mrf.mxu0
          %v4003 = vadd.f32 0.0, %v4002
          %v4004 = vpop.f32.mrf.mxu0
          %v4005 = vadd.f32 0.0, %v4004
          %4006 = vmatmul.bf16.gmra.mxu0 %v3890
          %v4007 = vpop.f32.mrf.mxu0
          %v4008 = vadd.f32 0.0, %v4007
          %v4009 = vpop.f32.mrf.mxu0
          %v4010 = vadd.f32 0.0, %v4009
          %4011 = vmatmul.bf16.gmra.mxu0 %v3899
          %v4012 = vpop.f32.mrf.mxu0
          %v4013 = vadd.f32 0.0, %v4012
          %v4014 = vpop.f32.mrf.mxu0
          %v4015 = vadd.f32 0.0, %v4014
          %4016 = vmatmul.bf16.gmra.mxu0 %v3908
          %v4017 = vpop.f32.mrf.mxu0
          %v4018 = vadd.f32 0.0, %v4017
          %v4019 = vpop.f32.mrf.mxu0
          %v4020 = vadd.f32 0.0, %v4019
          %4021 = vmatmul.bf16.gmra.mxu0 %v3917
          %v4022 = vpop.f32.mrf.mxu0
          %v4023 = vadd.f32 0.0, %v4022
          %v4024 = vpop.f32.mrf.mxu0
          %v4025 = vadd.f32 0.0, %v4024
          %4026 = vmatmul.bf16.gmra.mxu0 %v3926
          %v4027 = vpop.f32.mrf.mxu0
          %v4028 = vadd.f32 0.0, %v4027
          %v4029 = vpop.f32.mrf.mxu0
          %v4030 = vadd.f32 0.0, %v4029
          %4031 = vdwg.mxu0
          %v4032 = vadd.f32 %v3815, %v3993
          %v4033 = vadd.f32 %v3816, %v3995
          %v4034 = vadd.f32 %v3817, %v3998
          %v4035 = vadd.f32 %v3818, %v4000
          %v4036 = vadd.f32 %v3819, %v4003
          %v4037 = vadd.f32 %v3820, %v4005
          %v4038 = vadd.f32 %v3821, %v4008
          %v4039 = vadd.f32 %v3822, %v4010
          %v4040 = vadd.f32 %v3823, %v4013
          %v4041 = vadd.f32 %v3824, %v4015
          %v4042 = vadd.f32 %v3825, %v4018
          %v4043 = vadd.f32 %v3826, %v4020
          %v4044 = vadd.f32 %v3827, %v4023
          %v4045 = vadd.f32 %v3828, %v4025
          %v4046 = vadd.f32 %v3829, %v4028
          %v4047 = vadd.f32 %v3830, %v4030
          %v4048 = vld [vmem:[%s4] sm:$0x1]
          %v4050 = vperm.slane %v4048, 0
          %v4052 = vadd.f32 %v4032, %v4050
          %v4053 = vadd.f32 %v4033, %v4050
          %v4054 = vadd.f32 %v4034, %v4050
          %v4055 = vadd.f32 %v4035, %v4050
          %v4056 = vadd.f32 %v4036, %v4050
          %v4057 = vadd.f32 %v4037, %v4050
          %v4058 = vadd.f32 %v4038, %v4050
          %v4059 = vadd.f32 %v4039, %v4050
          %v4060 = vadd.f32 %v4040, %v4050
          %v4061 = vadd.f32 %v4041, %v4050
          %v4062 = vadd.f32 %v4042, %v4050
          %v4063 = vadd.f32 %v4043, %v4050
          %v4064 = vadd.f32 %v4044, %v4050
          %v4065 = vadd.f32 %v4045, %v4050
          %v4066 = vadd.f32 %v4046, %v4050
          %v4067 = vadd.f32 %v4047, %v4050
          %v4068 = vmax.f32 %v4052, 0.0
          %v4069 = vmax.f32 %v4053, 0.0
          %v4070 = vmax.f32 %v4054, 0.0
          %v4071 = vmax.f32 %v4055, 0.0
          %v4072 = vmax.f32 %v4056, 0.0
          %v4073 = vmax.f32 %v4057, 0.0
          %v4074 = vmax.f32 %v4058, 0.0
          %v4075 = vmax.f32 %v4059, 0.0
          %v4076 = vmax.f32 %v4060, 0.0
          %v4077 = vmax.f32 %v4061, 0.0
          %v4078 = vmax.f32 %v4062, 0.0
          %v4079 = vmax.f32 %v4063, 0.0
          %v4080 = vmax.f32 %v4064, 0.0
          %v4081 = vmax.f32 %v4065, 0.0
          %v4082 = vmax.f32 %v4066, 0.0
          %v4083 = vmax.f32 %v4067, 0.0
          %v4084 = vld [vmem:[#allocation2] sm:$0x1]
          %v4085 = vadd.f32 %v4068, %v4069
          %v4086 = vadd.f32 %v4085, %v4070
          %v4087 = vadd.f32 %v4086, %v4071
          %v4088 = vadd.f32 %v4087, %v4072
          %v4089 = vadd.f32 %v4088, %v4073
          %v4090 = vadd.f32 %v4089, %v4074
          %v4091 = vadd.f32 %v4090, %v4075
          %v4092 = vadd.f32 %v4091, %v4076
          %v4093 = vadd.f32 %v4092, %v4077
          %v4094 = vadd.f32 %v4093, %v4078
          %v4095 = vadd.f32 %v4094, %v4079
          %v4096 = vadd.f32 %v4095, %v4080
          %v4097 = vadd.f32 %v4096, %v4081
          %v4098 = vadd.f32 %v4097, %v4082
          %v4099 = vadd.f32 %v4098, %v4083
          %v4100 = vrot.slane %v4099, 4
          %v4101 = vadd.f32 %v4099, %v4100
          %v4102 = vrot.slane %v4101, 2
          %v4103 = vadd.f32 %v4101, %v4102
          %v4104 = vrot.slane %v4103, 1
          %v4105 = vadd.f32 %v4103, %v4104
          %v4106 = vadd.f32 %v4084, %v4105
          %4107 = vst [vmem:[#allocation2] sm:$0x1] %v4106
        $region60: #{_forward_impl.1} parent=43 // pred_fallthru
          _
        %p4108 = scmp.eq.s32.totalorder %s328, 0
        // Predicated region
        $region61: #{_forward_impl.1} parent=43 // pred_check
          %p4109 = pneg %p4108
        $region62: #{_forward_impl.1} parent=43 // pred_check_branch
          %4111 = sbr.rel (%p4109) target = $region64
        $region63: #{_forward_impl.1} parent=43 // pred_region
          %s4112 = smul.u32 %s332, 16
          %s4113 = scvt.s32.f32 %s4112
          %v4114 = vld [vmem:[#allocation2] sm:$0x1]
          %v4115 = vld [vmem:[%s4] sm:$0x1]
          %v4116 = vmax.f32 %v4115, 0.0
          %v4117 = vstv %s4113
          %v4118 = vmul.f32 %v4117, %v4116
          %v4119 = vadd.f32 %v4114, %v4118
          %4120 = vst [vmem:[#allocation2] sm:$0x1] %v4119
        $region64: #{_forward_impl.1} parent=43 // pred_fallthru
          _
        %p4121 = scmp.eq.s32.totalorder %s36, 1
        // Predicated region
        $region65: #{_forward_impl.1} parent=43 // pred_check
          %p4122 = pneg %p4121
        $region66: #{_forward_impl.1} parent=43 // pred_check_branch
          %4124 = sbr.rel (%p4122) target = $region68
        $region67: #{_forward_impl.1} parent=43 // pred_region
          %v4125 = vld [vmem:[#allocation2] sm:$0x1]
          %v4126 = vmul.f32 %v4125, 0.00390625
          %v4127 = vld [vmem:[#allocation8] sm:$0xff]
          %v4128 = vld [vmem:[#allocation8 + $0x8] sm:$0xff]
          %v4129 = vld [vmem:[#allocation8 + $0x10] sm:$0xff]
          %v4130 = vld [vmem:[#allocation8 + $0x18] sm:$0xff]
          %v4131 = vld [vmem:[#allocation8 + $0x20] sm:$0xff]
          %v4132 = vld [vmem:[#allocation8 + $0x28] sm:$0xff]
          %v4133 = vld [vmem:[#allocation8 + $0x30] sm:$0xff]
          %v4134 = vld [vmem:[#allocation8 + $0x38] sm:$0xff]
          %v4135 = vld [vmem:[#allocation8 + $0x40] sm:$0xff]
          %v4136 = vld [vmem:[#allocation8 + $0x48] sm:$0xff]
          %v4137 = vld [vmem:[#allocation8 + $0x50] sm:$0xff]
          %v4138 = vld [vmem:[#allocation8 + $0x58] sm:$0xff]
          %v4139 = vld [vmem:[#allocation8 + $0x60] sm:$0xff]
          %v4140 = vld [vmem:[#allocation8 + $0x68] sm:$0xff]
          %v4141 = vld [vmem:[#allocation8 + $0x70] sm:$0xff]
          %v4142 = vld [vmem:[#allocation8 + $0x78] sm:$0xff]
          %v4143 = vld [vmem:[%s6] sm:$0x1]
          %4144 = vmatpush.msra.mxu0 %v4142
          %4145 = vmatpush.msra.mxu0 %v4141
          %4146 = vmatpush.msra.mxu0 %v4140
          %4147 = vmatpush.msra.mxu0 %v4139
          %4148 = vmatpush.msra.mxu0 %v4138
          %4149 = vmatpush.msra.mxu0 %v4137
          %4150 = vmatpush.msra.mxu0 %v4136
          %4151 = vmatpush.msra.mxu0 %v4135
          %4152 = vmatpush.msra.mxu0 %v4134
          %4153 = vmatpush.msra.mxu0 %v4133
          %4154 = vmatpush.msra.mxu0 %v4132
          %4155 = vmatpush.msra.mxu0 %v4131
          %4156 = vmatpush.msra.mxu0 %v4130
          %4157 = vmatpush.msra.mxu0 %v4129
          %4158 = vmatpush.msra.mxu0 %v4128
          %4159 = vmatpush.msra.mxu0 %v4127
          %4160 = vmatmul.f32.gmra.mxu0 %v4126
          %v4161 = vpop.f32.mrf.mxu0
          %v4162 = vadd.f32 %v4143, %v4161
          %4163 = vdwg.mxu0
          %vm4164 = vcmask 24576
          %4165 = vst.msk [vmem:[%s307] sm:$0x1] %vm4164, %v4162
        $region68: #{_forward_impl.1} parent=43 // pred_fallthru
          _
        %s4166 = sand.u32 %s187, 1
        %s4167 = scalar_lea.sflag [#allocation7], %s4166
        %s4168 = sand.u32 %s187, 1
        %s4169 = scalar_lea.vmem [#allocation10], %s4168
        // Predicated region
        $region69: #{_forward_impl.1} parent=43 // pred_check
          %p4170 = pneg %p197
        $region70: #{_forward_impl.1} parent=43 // pred_check_branch
          %4172 = sbr.rel (%p4170) target = $region72
        $region71: #{_forward_impl.1} parent=43 // pred_region
          %4174 = vsyncadd %s4167, 0
          %s4175 = scalar_lea.hbm %s7, %s35
          %s4177 = sshll.u32 %s4169, 4
          %s4178 = int_to_ptr.vmem [resolvable:$true] %s4177
          %s4179 = sshll.u32 %s4175, 4
          %s4180 = int_to_ptr.hbm [resolvable:$true] %s4179
          %4182 = dma.vmem_to_hbm [thread:$0]  %s4178, 16, %s4180, %s4167
        $region72: #{_forward_impl.1} parent=43 // pred_fallthru
          _
      $region44: #{_forward_impl.1} parent=5 // pred_fallthru
        _
      %p4183 = scmp.le.s32.totalorder 2, %s26
      // Predicated region
      $region73: #{_forward_impl.1} parent=5 // pred_check
        %p4184 = pneg %p4183
      $region74: #{_forward_impl.1} parent=5 // pred_check_branch
        %4186 = sbr.rel (%p4184) target = $region76
      $region75: #{_forward_impl.1} parent=5 // pred_region
        %s4187 = ssub.s32 %s26, 2
        // Predicated region
        $region77: #{_forward_impl.1} parent=75 // pred_check
          %p4188 = pneg %p203
        $region78: #{_forward_impl.1} parent=75 // pred_check_branch
          %4190 = sbr.rel (%p4188) target = $region80
        $region79: #{_forward_impl.1} parent=75 // pred_region
          %s4191 = sand.u32 %s188, 1
          %s4192 = scalar_lea.sflag [#allocation7], %s4191
          %s4193 = sand.u32 %s188, 1
          %s4194 = scalar_lea.vmem [#allocation10], %s4193
          %4196 = dma.done %s4192, 16
        $region80: #{_forward_impl.1} parent=75 // pred_fallthru
          _
      $region76: #{_forward_impl.1} parent=5 // pred_fallthru
        _
    $region6: #{_forward_impl.1} parent=1 // loop_footer
      %s30 = sadd.s32 1, %s26
    $region7: #{_forward_impl.1} parent=1 // loop_footer_branch
      %25 = sbr.rel target = $region3
    $region8: #{_forward_impl.1} parent=1 // loop_exit
      _
    %4197 = vsyncpa [#allocation6], 1
    %s4198 = scalar_lea.sflag [#allocation6], 1
    %4199 = vsyncpa %s4198, 1
    %4200 = vsyncpa [#allocation9], 1
    %4201 = vsyncpa [#allocation7], 1
    %s4202 = scalar_lea.sflag [#allocation7], 1
    %4203 = vsyncpa %s4202, 1

</llo_original>
